<compile_context>
chip_gen: v7x
topology: tpu7x:2x2x1
jax: 0.10.0
libtpu: 0.0.40
codegen_flags: <defaults>
</compile_context>

<pallas_src>
import math

import jax
import jax.numpy as jnp
from jax import lax
from jax.experimental import pallas as pl
from jax.experimental.pallas import tpu as pltpu

EPS = 1e-5
D_IN, D1, D2, D3 = 4096, 1024, 512, 256
TN1 = 256          # layer-1 output-feature tile -> grid = (D1 // TN1,) = (4,)


def _bn_relu(y, gamma, beta):
    """Training-mode BatchNorm1d (batch stats, biased variance) + ReLU.

    y: (B, N) f32 with the FULL batch present; gamma/beta: (1, N) f32.
    """
    mean = jnp.mean(y, axis=0, keepdims=True)
    var = jnp.mean((y - mean) ** 2, axis=0, keepdims=True)
    y_hat = (y - mean) * lax.rsqrt(var + EPS)
    return jnp.maximum(y_hat * gamma + beta, 0.0)


# -----------------------------------------------------------------------------
# Single fused kernel: grid over layer-1 feature tiles; tail on the last step.
# -----------------------------------------------------------------------------
def _encoder_kernel(x_ref, w1_ref, g1_ref, b1_ref,
                    w2_ref, g2_ref, b2_ref,
                    w3_ref, g3_ref, b3_ref,
                    o_ref, h1_ref):
    j = pl.program_id(0)
    tn = w1_ref.shape[2]                                     # static tile width

    # ---- Layer 1, feature tile j: x @ W1[:, tile_j] -> BN -> ReLU ----------
    w1 = w1_ref[0].astype(jnp.float32)                       # bf16 -> f32 on-chip
    y1 = jnp.dot(x_ref[...], w1, preferred_element_type=jnp.float32)
    start = pl.multiple_of(j * tn, tn)
    h1_ref[:, pl.ds(start, tn)] = _bn_relu(y1, g1_ref[...], b1_ref[...])

    # ---- Last step: layers 2 & 3 on the fully-populated h1 scratch ---------
    @pl.when(j == pl.num_programs(0) - 1)
    def _():
        h1 = h1_ref[...]
        y2 = jnp.dot(h1, w2_ref[...].astype(jnp.float32),
                     preferred_element_type=jnp.float32)
        h2 = _bn_relu(y2, g2_ref[...], b2_ref[...])
        y3 = jnp.dot(h2, w3_ref[...].astype(jnp.float32),
                     preferred_element_type=jnp.float32)
        o_ref[...] = _bn_relu(y3, g3_ref[...], b3_ref[...]).astype(o_ref.dtype)


def encoder_pallas(params, x):
    B = x.shape[0]
    h = x.reshape(B, -1)                                     # x.view(batch, -1)
    assert h.shape[1] == D_IN, h.shape
    # Training-mode BN needs the whole batch resident in every feature tile;
    # never tile or shard the batch dimension of this kernel.
    assert B >= 2, "BatchNorm1d in training mode needs batch >= 2"

    n_tiles = D1 // TN1
    grid_spec = pltpu.PrefetchScalarGridSpec(
        num_scalar_prefetch=0,
        grid=(n_tiles,),
        in_specs=[
            pl.BlockSpec((B, D_IN), lambda j: (0, 0)),         # x (fetched once)
            pl.BlockSpec((1, D_IN, TN1), lambda j: (j, 0, 0)), # contiguous W1 tile
            pl.BlockSpec((1, TN1), lambda j: (0, j)),          # gamma1 tile
            pl.BlockSpec((1, TN1), lambda j: (0, j)),          # beta1 tile
            pl.BlockSpec((D1, D2), lambda j: (0, 0)),          # W2 (fetched once)
            pl.BlockSpec((1, D2), lambda j: (0, 0)),           # gamma2
            pl.BlockSpec((1, D2), lambda j: (0, 0)),           # beta2
            pl.BlockSpec((D2, D3), lambda j: (0, 0)),          # W3 (fetched once)
            pl.BlockSpec((1, D3), lambda j: (0, 0)),           # gamma3
            pl.BlockSpec((1, D3), lambda j: (0, 0)),           # beta3
        ],
        out_specs=pl.BlockSpec((B, D3), lambda j: (0, 0)),     # written last step
        scratch_shapes=[pltpu.VMEM((B, D1), jnp.float32)],     # resident h1
    )
    return pl.pallas_call(
        _encoder_kernel,
        out_shape=jax.ShapeDtypeStruct((B, D3), jnp.float32),
        grid_spec=grid_spec,
        compiler_params=pltpu.CompilerParams(
            dimension_semantics=("arbitrary",),                # h1/output carried
            # ~10 MiB working set; above v5e's 16 MiB scoped default is not
            # required, but give headroom, well under v7x's 64 MiB physical.
            vmem_limit_bytes=32 * 1024 * 1024,
        ),
    )(h, params["w1"], params["g1"], params["b1"],
      params["w2"], params["g2"], params["b2"],
      params["w3"], params["g3"], params["b3"])


# -----------------------------------------------------------------------------
# Parameters / reference
# -----------------------------------------------------------------------------
def kaiming_normal(key, out_f, in_f):
    # nn.init.kaiming_normal_ defaults: fan_in, leaky_relu(a=0) -> gain=sqrt(2)
    std = math.sqrt(2.0 / in_f)
    return jax.random.normal(key, (out_f, in_f), dtype=jnp.float32) * std


def init_encoder_params(key):
    k1, k2, k3 = jax.random.split(key, 3)
    # PyTorch-style (out, in) weights, transposed ONCE at init to (in, out).
    w1 = kaiming_normal(k1, D1, D_IN).T            # (4096, 1024)
    w2 = kaiming_normal(k2, D2, D1).T              # (1024, 512)
    w3 = kaiming_normal(k3, D3, D2).T              # (512, 256)
    # Pre-tile W1 over output features so each grid step's weight DMA is a
    # single contiguous block; store all weights bf16 (HBM-traffic bound).
    w1_tiled = (w1.reshape(D_IN, D1 // TN1, TN1)
                  .transpose(1, 0, 2)
                  .astype(jnp.bfloat16))           # (4, 4096, 256)
    return {
        "w1": w1_tiled,
        "g1": jnp.ones((1, D1), jnp.float32),
        "b1": jnp.zeros((1, D1), jnp.float32),
        "w2": w2.astype(jnp.bfloat16),
        "g2": jnp.ones((1, D2), jnp.float32),
        "b2": jnp.zeros((1, D2), jnp.float32),
        "w3": w3.astype(jnp.bfloat16),
        "g3": jnp.ones((1, D3), jnp.float32),
        "b3": jnp.zeros((1, D3), jnp.float32),
    }


def encoder_reference(params, x):
    """Pure-JAX f32 reference (same bf16-rounded weight values as the kernel)."""
    B = x.shape[0]
    h = x.reshape(B, -1)
    w1 = (params["w1"].astype(jnp.float32)
          .transpose(1, 0, 2).reshape(D_IN, D1))
    layers = [
        (w1, params["g1"], params["b1"]),
        (params["w2"].astype(jnp.float32), params["g2"], params["b2"]),
        (params["w3"].astype(jnp.float32), params["g3"], params["b3"]),
    ]
    for wt, g, b in layers:
        y = jnp.dot(h, wt, precision=lax.Precision.HIGHEST)
        mean = jnp.mean(y, axis=0, keepdims=True)
        var = jnp.mean((y - mean) ** 2, axis=0, keepdims=True)
        y = (y - mean) * lax.rsqrt(var + EPS) * g + b
        h = jnp.maximum(y, 0.0)
    return h


if __name__ == "__main__":
    key = jax.random.PRNGKey(0)
    pkey, xkey = jax.random.split(key)

    params = init_encoder_params(pkey)

    # batch=8; x.view(batch_size, -1) flattens (8, 64, 64) -> (8, 4096)
    x = jax.random.normal(xkey, (8, 64, 64), dtype=jnp.float32)

    fwd = jax.jit(encoder_pallas)
    out = jax.block_until_ready(fwd(params, x))
    ref = jax.block_until_ready(encoder_reference(params, x))

    assert out.shape == (8, D3), out.shape
    max_err = float(jnp.max(jnp.abs(out - ref)))
    assert jnp.allclose(out, ref, atol=1e-3, rtol=1e-3), max_err
    print("KERNEL_OK")
</pallas_src>

<mosaic_0001>
module attributes {stable_mosaic.version = 11 : i64} {
  func.func @_encoder_kernel(%arg0: i32, %arg1: memref<8x4096xf32, #tpu.memory_space<vmem>>, %arg2: memref<1x4096x256xbf16, #tpu.memory_space<vmem>>, %arg3: memref<1x256xf32, #tpu.memory_space<vmem>>, %arg4: memref<1x256xf32, #tpu.memory_space<vmem>>, %arg5: memref<1024x512xbf16, #tpu.memory_space<vmem>>, %arg6: memref<1x512xf32, #tpu.memory_space<vmem>>, %arg7: memref<1x512xf32, #tpu.memory_space<vmem>>, %arg8: memref<512x256xbf16, #tpu.memory_space<vmem>>, %arg9: memref<1x256xf32, #tpu.memory_space<vmem>>, %arg10: memref<1x256xf32, #tpu.memory_space<vmem>>, %arg11: memref<8x256xf32, #tpu.memory_space<vmem>>, %arg12: memref<8x1024xf32, #tpu.memory_space<vmem>>) attributes {dimension_semantics = [#tpu.dimension_semantics<arbitrary>], iteration_bounds = array<i64: 4>, scalar_prefetch = 0 : i64, scratch_operands = 1 : i64, tpu.core_type = #tpu.core_type<tc>, window_params = [{pipeline_mode = #tpu.pipeline_mode<synchronous>, transform_indices = @transform_0, window_bounds = array<i64: 8, 4096>}, {transform_indices = @transform_1, window_bounds = array<i64: 1, 4096, 256>}, {transform_indices = @transform_2, window_bounds = array<i64: 1, 256>}, {transform_indices = @transform_3, window_bounds = array<i64: 1, 256>}, {pipeline_mode = #tpu.pipeline_mode<synchronous>, transform_indices = @transform_4, window_bounds = array<i64: 1024, 512>}, {pipeline_mode = #tpu.pipeline_mode<synchronous>, transform_indices = @transform_5, window_bounds = array<i64: 1, 512>}, {pipeline_mode = #tpu.pipeline_mode<synchronous>, transform_indices = @transform_6, window_bounds = array<i64: 1, 512>}, {pipeline_mode = #tpu.pipeline_mode<synchronous>, transform_indices = @transform_7, window_bounds = array<i64: 512, 256>}, {pipeline_mode = #tpu.pipeline_mode<synchronous>, transform_indices = @transform_8, window_bounds = array<i64: 1, 256>}, {pipeline_mode = #tpu.pipeline_mode<synchronous>, transform_indices = @transform_9, window_bounds = array<i64: 1, 256>}, {pipeline_mode = #tpu.pipeline_mode<synchronous>, transform_indices = @transform_10, window_bounds = array<i64: 8, 256>}]} {
    %c0 = arith.constant 0 : index
    %c0_0 = arith.constant 0 : index
    %c0_1 = arith.constant 0 : index
    %0 = vector.load %arg2[%c0, %c0_0, %c0_1] : memref<1x4096x256xbf16, #tpu.memory_space<vmem>>, vector<1x4096x256xbf16>
    %1 = vector.shape_cast %0 : vector<1x4096x256xbf16> to vector<4096x256xbf16>
    %2 = arith.extf %1 : vector<4096x256xbf16> to vector<4096x256xf32>
    %c0_2 = arith.constant 0 : index
    %c0_3 = arith.constant 0 : index
    %3 = vector.load %arg1[%c0_2, %c0_3] : memref<8x4096xf32, #tpu.memory_space<vmem>>, vector<8x4096xf32>
    %cst = arith.constant dense<0.000000e+00> : vector<8x256xf32>
    %4 = tpu.matmul %3, %2, %cst {dimension_numbers = #tpu.dot_dimension_numbers<[1], [0], [0], [1], [0, 0, 1, 1], [], []>} : vector<8x4096xf32>, vector<4096x256xf32>, vector<8x256xf32> -> vector<8x256xf32>
    %c256_i32 = arith.constant 256 : i32
    %5 = arith.muli %arg0, %c256_i32 : i32
    %6 = tpu.assume_multiple %5, 256 : i32
    %c0_4 = arith.constant 0 : index
    %c0_5 = arith.constant 0 : index
    %7 = vector.load %arg3[%c0_4, %c0_5] : memref<1x256xf32, #tpu.memory_space<vmem>>, vector<1x256xf32>
    %c0_6 = arith.constant 0 : index
    %c0_7 = arith.constant 0 : index
    %8 = vector.load %arg4[%c0_6, %c0_7] : memref<1x256xf32, #tpu.memory_space<vmem>>, vector<1x256xf32>
    %cst_8 = arith.constant dense<0.000000e+00> : vector<256xf32>
    %9 = vector.multi_reduction <add>, %4, %cst_8 [0] : vector<8x256xf32> to vector<256xf32>
    %10 = vector.shape_cast %9 : vector<256xf32> to vector<1x256xf32>
    %cst_9 = arith.constant 8.000000e+00 : f32
    %11 = vector.broadcast %cst_9 : f32 to vector<1x256xf32>
    %12 = arith.divf %10, %11 : vector<1x256xf32>
    %13 = vector.broadcast %12 : vector<1x256xf32> to vector<8x256xf32>
    %14 = arith.subf %4, %13 : vector<8x256xf32>
    %15 = arith.mulf %14, %14 : vector<8x256xf32>
    %cst_10 = arith.constant dense<0.000000e+00> : vector<256xf32>
    %16 = vector.multi_reduction <add>, %15, %cst_10 [0] : vector<8x256xf32> to vector<256xf32>
    %17 = vector.shape_cast %16 : vector<256xf32> to vector<1x256xf32>
    %cst_11 = arith.constant 8.000000e+00 : f32
    %18 = vector.broadcast %cst_11 : f32 to vector<1x256xf32>
    %19 = arith.divf %17, %18 : vector<1x256xf32>
    %20 = vector.broadcast %12 : vector<1x256xf32> to vector<8x256xf32>
    %21 = arith.subf %4, %20 : vector<8x256xf32>
    %cst_12 = arith.constant 9.99999974E-6 : f32
    %22 = vector.broadcast %cst_12 : f32 to vector<1x256xf32>
    %23 = arith.addf %19, %22 : vector<1x256xf32>
    %24 = math.rsqrt %23 : vector<1x256xf32>
    %25 = vector.broadcast %24 : vector<1x256xf32> to vector<8x256xf32>
    %26 = arith.mulf %21, %25 : vector<8x256xf32>
    %27 = vector.broadcast %7 : vector<1x256xf32> to vector<8x256xf32>
    %28 = arith.mulf %26, %27 : vector<8x256xf32>
    %29 = vector.broadcast %8 : vector<1x256xf32> to vector<8x256xf32>
    %30 = arith.addf %28, %29 : vector<8x256xf32>
    %cst_13 = arith.constant 0.000000e+00 : f32
    %31 = vector.broadcast %cst_13 : f32 to vector<8x256xf32>
    %32 = arith.maximumf %30, %31 : vector<8x256xf32>
    %c0_14 = arith.constant 0 : index
    %33 = arith.index_cast %6 : i32 to index
    %34 = vector.load %arg12[%c0_14, %33] : memref<8x1024xf32, #tpu.memory_space<vmem>>, vector<8x256xf32>
    tpu.vector_store %arg12[%c0_14, %33], %32 {strides = array<i32>} : memref<8x1024xf32, #tpu.memory_space<vmem>>, vector<8x256xf32>,
    %c3_i32 = arith.constant 3 : i32
    %35 = arith.cmpi eq, %arg0, %c3_i32 : i32
    %36 = arith.extui %35 : i1 to i32
    %c0_i32 = arith.constant 0 : i32
    %37 = arith.cmpi ne, %36, %c0_i32 : i32
    scf.if %37 {
      %c0_15 = arith.constant 0 : index
      %c0_16 = arith.constant 0 : index
      %38 = vector.load %arg12[%c0_15, %c0_16] : memref<8x1024xf32, #tpu.memory_space<vmem>>, vector<8x1024xf32>
      %c0_17 = arith.constant 0 : index
      %c0_18 = arith.constant 0 : index
      %39 = vector.load %arg5[%c0_17, %c0_18] : memref<1024x512xbf16, #tpu.memory_space<vmem>>, vector<1024x512xbf16>
      %40 = arith.extf %39 : vector<1024x512xbf16> to vector<1024x512xf32>
      %cst_19 = arith.constant dense<0.000000e+00> : vector<8x512xf32>
      %41 = tpu.matmul %38, %40, %cst_19 {dimension_numbers = #tpu.dot_dimension_numbers<[1], [0], [0], [1], [0, 0, 1, 1], [], []>} : vector<8x1024xf32>, vector<1024x512xf32>, vector<8x512xf32> -> vector<8x512xf32>
      %c0_20 = arith.constant 0 : index
      %c0_21 = arith.constant 0 : index
      %42 = vector.load %arg6[%c0_20, %c0_21] : memref<1x512xf32, #tpu.memory_space<vmem>>, vector<1x512xf32>
      %c0_22 = arith.constant 0 : index
      %c0_23 = arith.constant 0 : index
      %43 = vector.load %arg7[%c0_22, %c0_23] : memref<1x512xf32, #tpu.memory_space<vmem>>, vector<1x512xf32>
      %cst_24 = arith.constant dense<0.000000e+00> : vector<512xf32>
      %44 = vector.multi_reduction <add>, %41, %cst_24 [0] : vector<8x512xf32> to vector<512xf32>
      %45 = vector.shape_cast %44 : vector<512xf32> to vector<1x512xf32>
      %cst_25 = arith.constant 8.000000e+00 : f32
      %46 = vector.broadcast %cst_25 : f32 to vector<1x512xf32>
      %47 = arith.divf %45, %46 : vector<1x512xf32>
      %48 = vector.broadcast %47 : vector<1x512xf32> to vector<8x512xf32>
      %49 = arith.subf %41, %48 : vector<8x512xf32>
      %50 = arith.mulf %49, %49 : vector<8x512xf32>
      %cst_26 = arith.constant dense<0.000000e+00> : vector<512xf32>
      %51 = vector.multi_reduction <add>, %50, %cst_26 [0] : vector<8x512xf32> to vector<512xf32>
      %52 = vector.shape_cast %51 : vector<512xf32> to vector<1x512xf32>
      %cst_27 = arith.constant 8.000000e+00 : f32
      %53 = vector.broadcast %cst_27 : f32 to vector<1x512xf32>
      %54 = arith.divf %52, %53 : vector<1x512xf32>
      %55 = vector.broadcast %47 : vector<1x512xf32> to vector<8x512xf32>
      %56 = arith.subf %41, %55 : vector<8x512xf32>
      %cst_28 = arith.constant 9.99999974E-6 : f32
      %57 = vector.broadcast %cst_28 : f32 to vector<1x512xf32>
      %58 = arith.addf %54, %57 : vector<1x512xf32>
      %59 = math.rsqrt %58 : vector<1x512xf32>
      %60 = vector.broadcast %59 : vector<1x512xf32> to vector<8x512xf32>
      %61 = arith.mulf %56, %60 : vector<8x512xf32>
      %62 = vector.broadcast %42 : vector<1x512xf32> to vector<8x512xf32>
      %63 = arith.mulf %61, %62 : vector<8x512xf32>
      %64 = vector.broadcast %43 : vector<1x512xf32> to vector<8x512xf32>
      %65 = arith.addf %63, %64 : vector<8x512xf32>
      %cst_29 = arith.constant 0.000000e+00 : f32
      %66 = vector.broadcast %cst_29 : f32 to vector<8x512xf32>
      %67 = arith.maximumf %65, %66 : vector<8x512xf32>
      %c0_30 = arith.constant 0 : index
      %c0_31 = arith.constant 0 : index
      %68 = vector.load %arg8[%c0_30, %c0_31] : memref<512x256xbf16, #tpu.memory_space<vmem>>, vector<512x256xbf16>
      %69 = arith.extf %68 : vector<512x256xbf16> to vector<512x256xf32>
      %cst_32 = arith.constant dense<0.000000e+00> : vector<8x256xf32>
      %70 = tpu.matmul %67, %69, %cst_32 {dimension_numbers = #tpu.dot_dimension_numbers<[1], [0], [0], [1], [0, 0, 1, 1], [], []>} : vector<8x512xf32>, vector<512x256xf32>, vector<8x256xf32> -> vector<8x256xf32>
      %c0_33 = arith.constant 0 : index
      %c0_34 = arith.constant 0 : index
      %71 = vector.load %arg9[%c0_33, %c0_34] : memref<1x256xf32, #tpu.memory_space<vmem>>, vector<1x256xf32>
      %c0_35 = arith.constant 0 : index
      %c0_36 = arith.constant 0 : index
      %72 = vector.load %arg10[%c0_35, %c0_36] : memref<1x256xf32, #tpu.memory_space<vmem>>, vector<1x256xf32>
      %cst_37 = arith.constant dense<0.000000e+00> : vector<256xf32>
      %73 = vector.multi_reduction <add>, %70, %cst_37 [0] : vector<8x256xf32> to vector<256xf32>
      %74 = vector.shape_cast %73 : vector<256xf32> to vector<1x256xf32>
      %cst_38 = arith.constant 8.000000e+00 : f32
      %75 = vector.broadcast %cst_38 : f32 to vector<1x256xf32>
      %76 = arith.divf %74, %75 : vector<1x256xf32>
      %77 = vector.broadcast %76 : vector<1x256xf32> to vector<8x256xf32>
      %78 = arith.subf %70, %77 : vector<8x256xf32>
      %79 = arith.mulf %78, %78 : vector<8x256xf32>
      %cst_39 = arith.constant dense<0.000000e+00> : vector<256xf32>
      %80 = vector.multi_reduction <add>, %79, %cst_39 [0] : vector<8x256xf32> to vector<256xf32>
      %81 = vector.shape_cast %80 : vector<256xf32> to vector<1x256xf32>
      %cst_40 = arith.constant 8.000000e+00 : f32
      %82 = vector.broadcast %cst_40 : f32 to vector<1x256xf32>
      %83 = arith.divf %81, %82 : vector<1x256xf32>
      %84 = vector.broadcast %76 : vector<1x256xf32> to vector<8x256xf32>
      %85 = arith.subf %70, %84 : vector<8x256xf32>
      %cst_41 = arith.constant 9.99999974E-6 : f32
      %86 = vector.broadcast %cst_41 : f32 to vector<1x256xf32>
      %87 = arith.addf %83, %86 : vector<1x256xf32>
      %88 = math.rsqrt %87 : vector<1x256xf32>
      %89 = vector.broadcast %88 : vector<1x256xf32> to vector<8x256xf32>
      %90 = arith.mulf %85, %89 : vector<8x256xf32>
      %91 = vector.broadcast %71 : vector<1x256xf32> to vector<8x256xf32>
      %92 = arith.mulf %90, %91 : vector<8x256xf32>
      %93 = vector.broadcast %72 : vector<1x256xf32> to vector<8x256xf32>
      %94 = arith.addf %92, %93 : vector<8x256xf32>
      %cst_42 = arith.constant 0.000000e+00 : f32
      %95 = vector.broadcast %cst_42 : f32 to vector<8x256xf32>
      %96 = arith.maximumf %94, %95 : vector<8x256xf32>
      %c0_43 = arith.constant 0 : index
      %c0_44 = arith.constant 0 : index
      %97 = vector.load %arg11[%c0_43, %c0_44] : memref<8x256xf32, #tpu.memory_space<vmem>>, vector<8x256xf32>
      tpu.vector_store %arg11[%c0_43, %c0_44], %96 {strides = array<i32>} : memref<8x256xf32, #tpu.memory_space<vmem>>, vector<8x256xf32>,
    } else {
    }
    return
  }
  func.func @transform_0(%arg0: i32) -> (i32, i32) {
    %c0_i32 = arith.constant 0 : i32
    %c0_i32_0 = arith.constant 0 : i32
    %c0_i32_1 = arith.constant 0 : i32
    return %c0_i32, %c0_i32_0 : i32, i32
  }
  func.func @transform_1(%arg0: i32) -> (i32, i32, i32) {
    %c0_i32 = arith.constant 0 : i32
    %c0_i32_0 = arith.constant 0 : i32
    %c0_i32_1 = arith.constant 0 : i32
    return %arg0, %c0_i32, %c0_i32_0 : i32, i32, i32
  }
  func.func @transform_2(%arg0: i32) -> (i32, i32) {
    %c0_i32 = arith.constant 0 : i32
    %c0_i32_0 = arith.constant 0 : i32
    return %c0_i32, %arg0 : i32, i32
  }
  func.func @transform_3(%arg0: i32) -> (i32, i32) {
    %c0_i32 = arith.constant 0 : i32
    %c0_i32_0 = arith.constant 0 : i32
    return %c0_i32, %arg0 : i32, i32
  }
  func.func @transform_4(%arg0: i32) -> (i32, i32) {
    %c0_i32 = arith.constant 0 : i32
    %c0_i32_0 = arith.constant 0 : i32
    %c0_i32_1 = arith.constant 0 : i32
    return %c0_i32, %c0_i32_0 : i32, i32
  }
  func.func @transform_5(%arg0: i32) -> (i32, i32) {
    %c0_i32 = arith.constant 0 : i32
    %c0_i32_0 = arith.constant 0 : i32
    %c0_i32_1 = arith.constant 0 : i32
    return %c0_i32, %c0_i32_0 : i32, i32
  }
  func.func @transform_6(%arg0: i32) -> (i32, i32) {
    %c0_i32 = arith.constant 0 : i32
    %c0_i32_0 = arith.constant 0 : i32
    %c0_i32_1 = arith.constant 0 : i32
    return %c0_i32, %c0_i32_0 : i32, i32
  }
  func.func @transform_7(%arg0: i32) -> (i32, i32) {
    %c0_i32 = arith.constant 0 : i32
    %c0_i32_0 = arith.constant 0 : i32
    %c0_i32_1 = arith.constant 0 : i32
    return %c0_i32, %c0_i32_0 : i32, i32
  }
  func.func @transform_8(%arg0: i32) -> (i32, i32) {
    %c0_i32 = arith.constant 0 : i32
    %c0_i32_0 = arith.constant 0 : i32
    %c0_i32_1 = arith.constant 0 : i32
    return %c0_i32, %c0_i32_0 : i32, i32
  }
  func.func @transform_9(%arg0: i32) -> (i32, i32) {
    %c0_i32 = arith.constant 0 : i32
    %c0_i32_0 = arith.constant 0 : i32
    %c0_i32_1 = arith.constant 0 : i32
    return %c0_i32, %c0_i32_0 : i32, i32
  }
  func.func @transform_10(%arg0: i32) -> (i32, i32) {
    %c0_i32 = arith.constant 0 : i32
    %c0_i32_0 = arith.constant 0 : i32
    %c0_i32_1 = arith.constant 0 : i32
    return %c0_i32, %c0_i32_0 : i32, i32
  }
}

</mosaic_0001>

<llo_original>
// kernel: encoder_pallas.1
$region0: #{encoder_pallas.1}
  #allocation0 [shape = 'u32[]', space=smem, size = 0x4, offset = 0x4, fixed_abs, tag = 'smem constant byte address 0x4 - core index']
  #allocation1 [shape = 'u32[144,128]{1,0:T(1,128)}', space=vmem, size = 0x12000, scoped, tag = 'internal scratch']
  #allocation2 [shape = 'f32[8,1024]{1,0:T(8,128)}', space=vmem, size = 0x8000, scoped, tag = 'scratch operand']
  %s0 = inlined_call_operand.vmem [shape: f32[8,4096], index: 0, kind: input, shape index: {}]
  %s1 = inlined_call_operand.hbm [shape: bf16[4,4096,256], index: 1, kind: input, shape index: {}]
  %s2 = inlined_call_operand.hbm [shape: f32[1,1024], index: 2, kind: input, shape index: {}]
  %s3 = inlined_call_operand.hbm [shape: f32[1,1024], index: 3, kind: input, shape index: {}]
  %s4 = inlined_call_operand.hbm [shape: bf16[1024,512], index: 4, kind: input, shape index: {}]
  %s5 = inlined_call_operand.hbm [shape: f32[1,512], index: 5, kind: input, shape index: {}]
  %s6 = inlined_call_operand.hbm [shape: f32[1,512], index: 6, kind: input, shape index: {}]
  %s7 = inlined_call_operand.hbm [shape: bf16[512,256], index: 7, kind: input, shape index: {}]
  %s8 = inlined_call_operand.hbm [shape: f32[1,256], index: 8, kind: input, shape index: {}]
  %s9 = inlined_call_operand.hbm [shape: f32[1,256], index: 9, kind: input, shape index: {}]
  %s10 = inlined_call_operand.hbm [shape: f32[8,256], index: 10, kind: output, shape index: {}]
  %s11 = sld [smem:[#allocation0]]
  $region113: #{encoder_pallas.1} parent=0
    _
  %s13 = ssub.s32 1, %s11
  %s14 = scalar_select 0, %s13, %s11
  $region1: #{encoder_pallas.1} parent=0
    #allocation3 [shape = 'u8[4194304]{0}', space=vmem, size = 0x400000, scoped, tag = 'input window, operand 1']
    #allocation4 [shape = 's32[2]{0}', space=sflag, size = 0x8, scoped, tag = 'scoped memory for encoder_pallas.1']
    #allocation5 [shape = 's32[2]{0}', space=sflag, size = 0x8, scoped, tag = 'scoped memory for encoder_pallas.1']
    #allocation6 [shape = 'u8[2048]{0}', space=vmem, size = 0x800, scoped, tag = 'input window, operand 2']
    #allocation7 [shape = 's32[2]{0}', space=sflag, size = 0x8, scoped, tag = 'scoped memory for encoder_pallas.1']
    #allocation8 [shape = 'u8[2048]{0}', space=vmem, size = 0x800, scoped, tag = 'input window, operand 3']
    #allocation9 [shape = 'u8[1048576]{0}', space=vmem, size = 0x100000, scoped, tag = 'input window, operand 4, single buffered']
    #allocation10 [shape = 's32[1]{0}', space=sflag, size = 0x4, scoped, tag = 'scoped memory for encoder_pallas.1']
    #allocation11 [shape = 'u8[2048]{0}', space=vmem, size = 0x800, scoped, tag = 'input window, operand 5, single buffered']
    #allocation12 [shape = 'u8[2048]{0}', space=vmem, size = 0x800, scoped, tag = 'input window, operand 6, single buffered']
    #allocation13 [shape = 's32[1]{0}', space=sflag, size = 0x4, scoped, tag = 'scoped memory for encoder_pallas.1']
    #allocation14 [shape = 'u8[262144]{0}', space=vmem, size = 0x40000, scoped, tag = 'input window, operand 7, single buffered']
    #allocation15 [shape = 'u8[1024]{0}', space=vmem, size = 0x400, scoped, tag = 'input window, operand 8, single buffered']
    #allocation16 [shape = 's32[1]{0}', space=sflag, size = 0x4, scoped, tag = 'scoped memory for encoder_pallas.1']
    #allocation17 [shape = 'u8[1024]{0}', space=vmem, size = 0x400, scoped, tag = 'input window, operand 9, single buffered']
    #allocation18 [shape = 'u8[8192]{0}', space=vmem, size = 0x2000, scoped, tag = 'output window, operand 0, single buffered']
    %15 = vsyncpa [#allocation4], 0
    %s16 = scalar_lea.sflag [#allocation4], 1
    %17 = vsyncpa %s16, 0
    %18 = vsyncpa [#allocation7], 0
    %s19 = scalar_lea.sflag [#allocation7], 1
    %20 = vsyncpa %s19, 0
    %21 = vsyncpa [#allocation10], 0
    %22 = vsyncpa [#allocation13], 0
    %23 = vsyncpa [#allocation16], 0
    %24 = vsyncpa [#allocation5], 0
    loop: start=0, step=1, limit=6
    $region2: #{encoder_pallas.1} parent=1 // loop_pre_header
      _
    $region3: #{encoder_pallas.1} parent=1 // loop_header
      %s26 = sphi 0, %s30
      %p27 = scmp.ge.s32.totalorder %s26, 6
      %s34 = sphi 0, %s34
      %s36 = sphi 0, %s34
      %s37 = sphi 0, %s36
      %s51 = sphi 0, %s37
      %s57 = sphi 0, %s59
      %s60 = sphi 0, %s57
      %s61 = sphi 0, %s60
      %s77 = sphi 0, %s61
      %s83 = sphi 0, %s85
      %s86 = sphi 0, %s83
      %s87 = sphi 0, %s86
      %s103 = sphi 0, %s87
      %s109 = sphi 0, %s111
      %s112 = sphi 0, %s109
      %s113 = sphi 0, %s112
      %s129 = sphi 0, %s113
      %s133 = sphi 0, %s133
      %s135 = sphi 0, %s133
      %s136 = sphi 0, %s135
      %s150 = sphi 0, %s136
      %s154 = sphi 0, %s154
      %s156 = sphi 0, %s154
      %s157 = sphi 0, %s156
      %s171 = sphi 0, %s157
      %s175 = sphi 0, %s175
      %s177 = sphi 0, %s175
      %s178 = sphi 0, %s177
      %s192 = sphi 0, %s178
      %s196 = sphi 0, %s196
      %s198 = sphi 0, %s196
      %s199 = sphi 0, %s198
      %s213 = sphi 0, %s199
      %s217 = sphi 0, %s217
      %s219 = sphi 0, %s217
      %s220 = sphi 0, %s219
      %s234 = sphi 0, %s220
      %s238 = sphi 0, %s238
      %s240 = sphi 0, %s238
      %s241 = sphi 0, %s240
      %s255 = sphi 0, %s241
      %s259 = sphi 0, %s259
      %s261 = sphi 0, %s259
      %s262 = sphi 0, %s261
      %s276 = sphi 0, %s262
    $region4: #{encoder_pallas.1} parent=1 // loop_header_branch
      %29 = sbr.rel (%p27) target = $region8
    $region5: #{encoder_pallas.1} parent=1 // loop_body
      %s31 = ssub.s32 %s26, 1
      %s32 = ssub.s32 %s26, 2
      %s33 = sadd.s32 %s26, 1
      %s35 = sadd.s32 %s34, 1
      %p38 = scmp.eq.s32.totalorder %s26, 3
      %p39 = scmp.ne.s32.totalorder %s34, %s36
      %p40 = scmp.eq.s32.totalorder %s26, 0
      %p41 = por %p39, %p40
      %p42 = scmp.ne.s32.totalorder %s34, %s36
      %p43 = scmp.eq.s32.totalorder %s31, 3
      %p44 = por %p42, %p43
      %p45 = scmp.ne.s32.totalorder %s36, %s37
      %p46 = scmp.eq.s32.totalorder %s31, 0
      %p47 = por %p45, %p46
      %p48 = scmp.ne.s32.totalorder %s36, %s37
      %p49 = scmp.eq.s32.totalorder %s32, 3
      %p50 = por %p48, %p49
      %p52 = scmp.ne.s32.totalorder %s37, %s51
      %p53 = scmp.eq.s32.totalorder %s32, 0
      %p54 = por %p52, %p53
      %s55 = ssub.s32 %s26, %s33
      %p56 = scmp.eq.s32.totalorder %s55, 0
      %s58 = sadd.s32 %s57, 1
      %s59 = scalar_select %p56, %s57, %s58
      %p62 = pneg %p56
      %p63 = scmp.eq.s32.totalorder %s26, 3
      %p64 = por %p62, %p63
      %p65 = scmp.ne.s32.totalorder %s57, %s60
      %p66 = scmp.eq.s32.totalorder %s26, 0
      %p67 = por %p65, %p66
      %p68 = scmp.ne.s32.totalorder %s57, %s60
      %p69 = scmp.eq.s32.totalorder %s31, 3
      %p70 = por %p68, %p69
      %p71 = scmp.ne.s32.totalorder %s60, %s61
      %p72 = scmp.eq.s32.totalorder %s31, 0
      %p73 = por %p71, %p72
      %p74 = scmp.ne.s32.totalorder %s60, %s61
      %p75 = scmp.eq.s32.totalorder %s32, 3
      %p76 = por %p74, %p75
      %p78 = scmp.ne.s32.totalorder %s61, %s77
      %p79 = scmp.eq.s32.totalorder %s32, 0
      %p80 = por %p78, %p79
      %s81 = ssub.s32 %s26, %s33
      %p82 = scmp.eq.s32.totalorder %s81, 0
      %s84 = sadd.s32 %s83, 1
      %s85 = scalar_select %p82, %s83, %s84
      %p88 = pneg %p82
      %p89 = scmp.eq.s32.totalorder %s26, 3
      %p90 = por %p88, %p89
      %p91 = scmp.ne.s32.totalorder %s83, %s86
      %p92 = scmp.eq.s32.totalorder %s26, 0
      %p93 = por %p91, %p92
      %p94 = scmp.ne.s32.totalorder %s83, %s86
      %p95 = scmp.eq.s32.totalorder %s31, 3
      %p96 = por %p94, %p95
      %p97 = scmp.ne.s32.totalorder %s86, %s87
      %p98 = scmp.eq.s32.totalorder %s31, 0
      %p99 = por %p97, %p98
      %p100 = scmp.ne.s32.totalorder %s86, %s87
      %p101 = scmp.eq.s32.totalorder %s32, 3
      %p102 = por %p100, %p101
      %p104 = scmp.ne.s32.totalorder %s87, %s103
      %p105 = scmp.eq.s32.totalorder %s32, 0
      %p106 = por %p104, %p105
      %s107 = ssub.s32 %s26, %s33
      %p108 = scmp.eq.s32.totalorder %s107, 0
      %s110 = sadd.s32 %s109, 1
      %s111 = scalar_select %p108, %s109, %s110
      %p114 = pneg %p108
      %p115 = scmp.eq.s32.totalorder %s26, 3
      %p116 = por %p114, %p115
      %p117 = scmp.ne.s32.totalorder %s109, %s112
      %p118 = scmp.eq.s32.totalorder %s26, 0
      %p119 = por %p117, %p118
      %p120 = scmp.ne.s32.totalorder %s109, %s112
      %p121 = scmp.eq.s32.totalorder %s31, 3
      %p122 = por %p120, %p121
      %p123 = scmp.ne.s32.totalorder %s112, %s113
      %p124 = scmp.eq.s32.totalorder %s31, 0
      %p125 = por %p123, %p124
      %p126 = scmp.ne.s32.totalorder %s112, %s113
      %p127 = scmp.eq.s32.totalorder %s32, 3
      %p128 = por %p126, %p127
      %p130 = scmp.ne.s32.totalorder %s113, %s129
      %p131 = scmp.eq.s32.totalorder %s32, 0
      %p132 = por %p130, %p131
      %s134 = sadd.s32 %s133, 1
      %p137 = scmp.eq.s32.totalorder %s26, 3
      %p138 = scmp.ne.s32.totalorder %s133, %s135
      %p139 = scmp.eq.s32.totalorder %s26, 0
      %p140 = por %p138, %p139
      %p141 = scmp.ne.s32.totalorder %s133, %s135
      %p142 = scmp.eq.s32.totalorder %s31, 3
      %p143 = por %p141, %p142
      %p144 = scmp.ne.s32.totalorder %s135, %s136
      %p145 = scmp.eq.s32.totalorder %s31, 0
      %p146 = por %p144, %p145
      %p147 = scmp.ne.s32.totalorder %s135, %s136
      %p148 = scmp.eq.s32.totalorder %s32, 3
      %p149 = por %p147, %p148
      %p151 = scmp.ne.s32.totalorder %s136, %s150
      %p152 = scmp.eq.s32.totalorder %s32, 0
      %p153 = por %p151, %p152
      %s155 = sadd.s32 %s154, 1
      %p158 = scmp.eq.s32.totalorder %s26, 3
      %p159 = scmp.ne.s32.totalorder %s154, %s156
      %p160 = scmp.eq.s32.totalorder %s26, 0
      %p161 = por %p159, %p160
      %p162 = scmp.ne.s32.totalorder %s154, %s156
      %p163 = scmp.eq.s32.totalorder %s31, 3
      %p164 = por %p162, %p163
      %p165 = scmp.ne.s32.totalorder %s156, %s157
      %p166 = scmp.eq.s32.totalorder %s31, 0
      %p167 = por %p165, %p166
      %p168 = scmp.ne.s32.totalorder %s156, %s157
      %p169 = scmp.eq.s32.totalorder %s32, 3
      %p170 = por %p168, %p169
      %p172 = scmp.ne.s32.totalorder %s157, %s171
      %p173 = scmp.eq.s32.totalorder %s32, 0
      %p174 = por %p172, %p173
      %s176 = sadd.s32 %s175, 1
      %p179 = scmp.eq.s32.totalorder %s26, 3
      %p180 = scmp.ne.s32.totalorder %s175, %s177
      %p181 = scmp.eq.s32.totalorder %s26, 0
      %p182 = por %p180, %p181
      %p183 = scmp.ne.s32.totalorder %s175, %s177
      %p184 = scmp.eq.s32.totalorder %s31, 3
      %p185 = por %p183, %p184
      %p186 = scmp.ne.s32.totalorder %s177, %s178
      %p187 = scmp.eq.s32.totalorder %s31, 0
      %p188 = por %p186, %p187
      %p189 = scmp.ne.s32.totalorder %s177, %s178
      %p190 = scmp.eq.s32.totalorder %s32, 3
      %p191 = por %p189, %p190
      %p193 = scmp.ne.s32.totalorder %s178, %s192
      %p194 = scmp.eq.s32.totalorder %s32, 0
      %p195 = por %p193, %p194
      %s197 = sadd.s32 %s196, 1
      %p200 = scmp.eq.s32.totalorder %s26, 3
      %p201 = scmp.ne.s32.totalorder %s196, %s198
      %p202 = scmp.eq.s32.totalorder %s26, 0
      %p203 = por %p201, %p202
      %p204 = scmp.ne.s32.totalorder %s196, %s198
      %p205 = scmp.eq.s32.totalorder %s31, 3
      %p206 = por %p204, %p205
      %p207 = scmp.ne.s32.totalorder %s198, %s199
      %p208 = scmp.eq.s32.totalorder %s31, 0
      %p209 = por %p207, %p208
      %p210 = scmp.ne.s32.totalorder %s198, %s199
      %p211 = scmp.eq.s32.totalorder %s32, 3
      %p212 = por %p210, %p211
      %p214 = scmp.ne.s32.totalorder %s199, %s213
      %p215 = scmp.eq.s32.totalorder %s32, 0
      %p216 = por %p214, %p215
      %s218 = sadd.s32 %s217, 1
      %p221 = scmp.eq.s32.totalorder %s26, 3
      %p222 = scmp.ne.s32.totalorder %s217, %s219
      %p223 = scmp.eq.s32.totalorder %s26, 0
      %p224 = por %p222, %p223
      %p225 = scmp.ne.s32.totalorder %s217, %s219
      %p226 = scmp.eq.s32.totalorder %s31, 3
      %p227 = por %p225, %p226
      %p228 = scmp.ne.s32.totalorder %s219, %s220
      %p229 = scmp.eq.s32.totalorder %s31, 0
      %p230 = por %p228, %p229
      %p231 = scmp.ne.s32.totalorder %s219, %s220
      %p232 = scmp.eq.s32.totalorder %s32, 3
      %p233 = por %p231, %p232
      %p235 = scmp.ne.s32.totalorder %s220, %s234
      %p236 = scmp.eq.s32.totalorder %s32, 0
      %p237 = por %p235, %p236
      %s239 = sadd.s32 %s238, 1
      %p242 = scmp.eq.s32.totalorder %s26, 3
      %p243 = scmp.ne.s32.totalorder %s238, %s240
      %p244 = scmp.eq.s32.totalorder %s26, 0
      %p245 = por %p243, %p244
      %p246 = scmp.ne.s32.totalorder %s238, %s240
      %p247 = scmp.eq.s32.totalorder %s31, 3
      %p248 = por %p246, %p247
      %p249 = scmp.ne.s32.totalorder %s240, %s241
      %p250 = scmp.eq.s32.totalorder %s31, 0
      %p251 = por %p249, %p250
      %p252 = scmp.ne.s32.totalorder %s240, %s241
      %p253 = scmp.eq.s32.totalorder %s32, 3
      %p254 = por %p252, %p253
      %p256 = scmp.ne.s32.totalorder %s241, %s255
      %p257 = scmp.eq.s32.totalorder %s32, 0
      %p258 = por %p256, %p257
      %s260 = sadd.s32 %s259, 1
      %p263 = scmp.eq.s32.totalorder %s26, 3
      %p264 = scmp.ne.s32.totalorder %s259, %s261
      %p265 = scmp.eq.s32.totalorder %s26, 0
      %p266 = por %p264, %p265
      %p267 = scmp.ne.s32.totalorder %s259, %s261
      %p268 = scmp.eq.s32.totalorder %s31, 3
      %p269 = por %p267, %p268
      %p270 = scmp.ne.s32.totalorder %s261, %s262
      %p271 = scmp.eq.s32.totalorder %s31, 0
      %p272 = por %p270, %p271
      %p273 = scmp.ne.s32.totalorder %s261, %s262
      %p274 = scmp.eq.s32.totalorder %s32, 3
      %p275 = por %p273, %p274
      %p277 = scmp.ne.s32.totalorder %s262, %s276
      %p278 = scmp.eq.s32.totalorder %s32, 0
      %p279 = por %p277, %p278
      %p280 = scmp.le.s32.totalorder 1, %s26
      %p281 = scmp.lt.s32.totalorder %s26, 5
      %p282 = pnand %p280, %p281
      %p283 = pneg %p282
      // Predicated region
      $region9: #{encoder_pallas.1} parent=5 // pred_check
        _
      $region10: #{encoder_pallas.1} parent=5 // pred_check_branch
        %285 = sbr.rel (%p282) target = $region12
      $region11: #{encoder_pallas.1} parent=5 // pred_region
        %s286 = ssub.s32 %s26, 1
        // Predicated region
        $region13: #{encoder_pallas.1} parent=11 // pred_check
          %p287 = pneg %p47
        $region14: #{encoder_pallas.1} parent=11 // pred_check_branch
          %289 = sbr.rel (%p287) target = $region16
        $region15: #{encoder_pallas.1} parent=11 // pred_region
          _
        $region16: #{encoder_pallas.1} parent=11 // pred_fallthru
          _
        // Predicated region
        $region17: #{encoder_pallas.1} parent=11 // pred_check
          %p290 = pneg %p146
        $region18: #{encoder_pallas.1} parent=11 // pred_check_branch
          %292 = sbr.rel (%p290) target = $region20
        $region19: #{encoder_pallas.1} parent=11 // pred_region
          %s294 = ssub.s32 32768, 32768
          %295 = vsyncadd [#allocation10], %s294
          %s296 = sshll.u32 [#allocation9], 4
          %s297 = int_to_ptr.vmem [resolvable:$true] %s296
          %302 = dma.hbm_to_vmem [thread:$0]  %s4, 32768, %s297, [#allocation10], 256, 256, 16
        $region20: #{encoder_pallas.1} parent=11 // pred_fallthru
          _
        // Predicated region
        $region21: #{encoder_pallas.1} parent=11 // pred_check
          %p303 = pneg %p167
        $region22: #{encoder_pallas.1} parent=11 // pred_check_branch
          %305 = sbr.rel (%p303) target = $region24
        $region23: #{encoder_pallas.1} parent=11 // pred_region
          %s307 = ssub.s32 64, 64
          %308 = vsyncadd [#allocation10], %s307
          %s310 = sshll.u32 [#allocation11], 4
          %s311 = int_to_ptr.vmem [resolvable:$true] %s310
          %313 = dma.hbm_to_vmem [thread:$0]  %s5, 64, %s311, [#allocation10]
        $region24: #{encoder_pallas.1} parent=11 // pred_fallthru
          _
        // Predicated region
        $region25: #{encoder_pallas.1} parent=11 // pred_check
          %p314 = pneg %p188
        $region26: #{encoder_pallas.1} parent=11 // pred_check_branch
          %316 = sbr.rel (%p314) target = $region28
        $region27: #{encoder_pallas.1} parent=11 // pred_region
          %s318 = ssub.s32 64, 64
          %319 = vsyncadd [#allocation13], %s318
          %s321 = sshll.u32 [#allocation12], 4
          %s322 = int_to_ptr.vmem [resolvable:$true] %s321
          %324 = dma.hbm_to_vmem [thread:$0]  %s6, 64, %s322, [#allocation13]
        $region28: #{encoder_pallas.1} parent=11 // pred_fallthru
          _
        // Predicated region
        $region29: #{encoder_pallas.1} parent=11 // pred_check
          %p325 = pneg %p209
        $region30: #{encoder_pallas.1} parent=11 // pred_check_branch
          %327 = sbr.rel (%p325) target = $region32
        $region31: #{encoder_pallas.1} parent=11 // pred_region
          %s329 = ssub.s32 8192, 8192
          %330 = vsyncadd [#allocation13], %s329
          %s331 = sshll.u32 [#allocation14], 4
          %s332 = int_to_ptr.vmem [resolvable:$true] %s331
          %337 = dma.hbm_to_vmem [thread:$0]  %s7, 8192, %s332, [#allocation13], 128, 128, 8
        $region32: #{encoder_pallas.1} parent=11 // pred_fallthru
          _
        // Predicated region
        $region33: #{encoder_pallas.1} parent=11 // pred_check
          %p338 = pneg %p230
        $region34: #{encoder_pallas.1} parent=11 // pred_check_branch
          %340 = sbr.rel (%p338) target = $region36
        $region35: #{encoder_pallas.1} parent=11 // pred_region
          %s342 = ssub.s32 32, 32
          %343 = vsyncadd [#allocation16], %s342
          %s345 = sshll.u32 [#allocation15], 4
          %s346 = int_to_ptr.vmem [resolvable:$true] %s345
          %348 = dma.hbm_to_vmem [thread:$0]  %s8, 32, %s346, [#allocation16]
        $region36: #{encoder_pallas.1} parent=11 // pred_fallthru
          _
        // Predicated region
        $region37: #{encoder_pallas.1} parent=11 // pred_check
          %p349 = pneg %p251
        $region38: #{encoder_pallas.1} parent=11 // pred_check_branch
          %351 = sbr.rel (%p349) target = $region40
        $region39: #{encoder_pallas.1} parent=11 // pred_region
          %s353 = ssub.s32 32, 32
          %354 = vsyncadd [#allocation16], %s353
          %s356 = sshll.u32 [#allocation17], 4
          %s357 = int_to_ptr.vmem [resolvable:$true] %s356
          %359 = dma.hbm_to_vmem [thread:$0]  %s9, 32, %s357, [#allocation16]
        $region40: #{encoder_pallas.1} parent=11 // pred_fallthru
          _
      $region12: #{encoder_pallas.1} parent=5 // pred_fallthru
        _
      %p360 = scmp.lt.s32.totalorder %s26, 4
      // Predicated region
      $region41: #{encoder_pallas.1} parent=5 // pred_check
        %p361 = pneg %p360
      $region42: #{encoder_pallas.1} parent=5 // pred_check_branch
        %363 = sbr.rel (%p361) target = $region44
      $region43: #{encoder_pallas.1} parent=5 // pred_region
        // Predicated region
        $region45: #{encoder_pallas.1} parent=43 // pred_check
          %p364 = pneg %p67
        $region46: #{encoder_pallas.1} parent=43 // pred_check_branch
          %366 = sbr.rel (%p364) target = $region48
        $region47: #{encoder_pallas.1} parent=43 // pred_region
          %s367 = sand.u32 %s57, 1
          %s368 = scalar_lea.sflag [#allocation4], %s367
          %s369 = sand.u32 %s57, 1
          %s370 = smul.addr %s369, 4096
          %s371 = scalar_lea.vmem [#allocation3], %s370
          %s373 = ssub.s32 65536, 65536
          %374 = vsyncadd %s368, %s373
          %s375 = smul.addr %s26, 1024
          %s376 = smul.addr %s375, 64
          %s377 = scalar_lea.hbm %s1, %s376
          %s378 = sshll.u32 %s371, 4
          %s379 = int_to_ptr.vmem [resolvable:$true] %s378
          %384 = dma.hbm_to_vmem [thread:$0]  %s377, 65536, %s379, %s368, 128, 128, 8
        $region48: #{encoder_pallas.1} parent=43 // pred_fallthru
          _
        // Predicated region
        $region49: #{encoder_pallas.1} parent=43 // pred_check
          %p385 = pneg %p93
        $region50: #{encoder_pallas.1} parent=43 // pred_check_branch
          %387 = sbr.rel (%p385) target = $region52
        $region51: #{encoder_pallas.1} parent=43 // pred_region
          %s388 = sand.u32 %s26, 1
          %s389 = scalar_lea.sflag [#allocation7], %s388
          %s390 = sand.u32 %s83, 1
          %s391 = smul.addr %s390, 2
          %s392 = scalar_lea.vmem [#allocation6], %s391
          %s393 = smul.u32 2, %s26
          %s395 = ssub.s32 32, 32
          %396 = vsyncadd %s389, %s395
          %s397 = smul.addr %s393, 16
          %s398 = scalar_lea.hbm %s2, %s397
          %s400 = sshll.u32 %s392, 4
          %s401 = int_to_ptr.vmem [resolvable:$true] %s400
          %403 = dma.hbm_to_vmem [thread:$0]  %s398, 32, %s401, %s389
        $region52: #{encoder_pallas.1} parent=43 // pred_fallthru
          _
        // Predicated region
        $region53: #{encoder_pallas.1} parent=43 // pred_check
          %p404 = pneg %p119
        $region54: #{encoder_pallas.1} parent=43 // pred_check_branch
          %406 = sbr.rel (%p404) target = $region56
        $region55: #{encoder_pallas.1} parent=43 // pred_region
          %s407 = sand.u32 %s26, 1
          %s408 = scalar_lea.sflag [#allocation7], %s407
          %s409 = sand.u32 %s109, 1
          %s410 = smul.addr %s409, 2
          %s411 = scalar_lea.vmem [#allocation8], %s410
          %s412 = smul.u32 2, %s26
          %s414 = ssub.s32 32, 32
          %415 = vsyncadd %s408, %s414
          %s416 = smul.addr %s412, 16
          %s417 = scalar_lea.hbm %s3, %s416
          %s419 = sshll.u32 %s411, 4
          %s420 = int_to_ptr.vmem [resolvable:$true] %s419
          %422 = dma.hbm_to_vmem [thread:$0]  %s417, 32, %s420, %s408
        $region56: #{encoder_pallas.1} parent=43 // pred_fallthru
          _
      $region44: #{encoder_pallas.1} parent=5 // pred_fallthru
        _
      %p423 = scmp.le.s32.totalorder 1, %s26
      %p424 = scmp.lt.s32.totalorder %s26, 5
      %p425 = pnand %p423, %p424
      %p426 = pneg %p425
      // Predicated region
      $region57: #{encoder_pallas.1} parent=5 // pred_check
        _
      $region58: #{encoder_pallas.1} parent=5 // pred_check_branch
        %428 = sbr.rel (%p425) target = $region60
      $region59: #{encoder_pallas.1} parent=5 // pred_region
        %s429 = ssub.s32 %s26, 1
        %s430 = sand.u32 %s60, 1
        %s431 = scalar_lea.sflag [#allocation4], %s430
        %s432 = sand.u32 %s60, 1
        %s433 = smul.addr %s432, 4096
        %s434 = scalar_lea.vmem [#allocation3], %s433
        // Predicated region
        $region61: #{encoder_pallas.1} parent=59 // pred_check
          %p435 = pneg %p73
        $region62: #{encoder_pallas.1} parent=59 // pred_check_branch
          %437 = sbr.rel (%p435) target = $region64
        $region63: #{encoder_pallas.1} parent=59 // pred_region
          %438 = dma.done %s431, 65536
        $region64: #{encoder_pallas.1} parent=59 // pred_fallthru
          _
        %s439 = sand.u32 %s31, 1
        %s440 = scalar_lea.sflag [#allocation7], %s439
        %s441 = sand.u32 %s86, 1
        %s442 = smul.addr %s441, 2
        %s443 = scalar_lea.vmem [#allocation6], %s442
        // Predicated region
        $region65: #{encoder_pallas.1} parent=59 // pred_check
          %p444 = pneg %p99
        $region66: #{encoder_pallas.1} parent=59 // pred_check_branch
          %446 = sbr.rel (%p444) target = $region68
        $region67: #{encoder_pallas.1} parent=59 // pred_region
          %447 = dma.done %s440, 32
        $region68: #{encoder_pallas.1} parent=59 // pred_fallthru
          _
        %s448 = sand.u32 %s31, 1
        %s449 = scalar_lea.sflag [#allocation7], %s448
        %s450 = sand.u32 %s112, 1
        %s451 = smul.addr %s450, 2
        %s452 = scalar_lea.vmem [#allocation8], %s451
        // Predicated region
        $region69: #{encoder_pallas.1} parent=59 // pred_check
          %p453 = pneg %p125
        $region70: #{encoder_pallas.1} parent=59 // pred_check_branch
          %455 = sbr.rel (%p453) target = $region72
        $region71: #{encoder_pallas.1} parent=59 // pred_region
          %456 = dma.done %s449, 32
        $region72: #{encoder_pallas.1} parent=59 // pred_fallthru
          _
        // Predicated region
        $region73: #{encoder_pallas.1} parent=59 // pred_check
          %p457 = pneg %p146
        $region74: #{encoder_pallas.1} parent=59 // pred_check_branch
          %459 = sbr.rel (%p457) target = $region76
        $region75: #{encoder_pallas.1} parent=59 // pred_region
          %460 = dma.done [#allocation10], 32768
        $region76: #{encoder_pallas.1} parent=59 // pred_fallthru
          _
        // Predicated region
        $region77: #{encoder_pallas.1} parent=59 // pred_check
          %p461 = pneg %p167
        $region78: #{encoder_pallas.1} parent=59 // pred_check_branch
          %463 = sbr.rel (%p461) target = $region80
        $region79: #{encoder_pallas.1} parent=59 // pred_region
          %464 = dma.done [#allocation10], 64
        $region80: #{encoder_pallas.1} parent=59 // pred_fallthru
          _
        // Predicated region
        $region81: #{encoder_pallas.1} parent=59 // pred_check
          %p465 = pneg %p188
        $region82: #{encoder_pallas.1} parent=59 // pred_check_branch
          %467 = sbr.rel (%p465) target = $region84
        $region83: #{encoder_pallas.1} parent=59 // pred_region
          %468 = dma.done [#allocation13], 64
        $region84: #{encoder_pallas.1} parent=59 // pred_fallthru
          _
        // Predicated region
        $region85: #{encoder_pallas.1} parent=59 // pred_check
          %p469 = pneg %p209
        $region86: #{encoder_pallas.1} parent=59 // pred_check_branch
          %471 = sbr.rel (%p469) target = $region88
        $region87: #{encoder_pallas.1} parent=59 // pred_region
          %472 = dma.done [#allocation13], 8192
        $region88: #{encoder_pallas.1} parent=59 // pred_fallthru
          _
        // Predicated region
        $region89: #{encoder_pallas.1} parent=59 // pred_check
          %p473 = pneg %p230
        $region90: #{encoder_pallas.1} parent=59 // pred_check_branch
          %475 = sbr.rel (%p473) target = $region92
        $region91: #{encoder_pallas.1} parent=59 // pred_region
          %476 = dma.done [#allocation16], 32
        $region92: #{encoder_pallas.1} parent=59 // pred_fallthru
          _
        // Predicated region
        $region93: #{encoder_pallas.1} parent=59 // pred_check
          %p477 = pneg %p251
        $region94: #{encoder_pallas.1} parent=59 // pred_check_branch
          %479 = sbr.rel (%p477) target = $region96
        $region95: #{encoder_pallas.1} parent=59 // pred_region
          %480 = dma.done [#allocation16], 32
        $region96: #{encoder_pallas.1} parent=59 // pred_fallthru
          _
        %p481 = pneg %p47
        %p482 = pneg %p44
        %s483 = sand.u32 %s60, 1
        %s484 = scalar_lea.sflag [#allocation4], %s483
        %s485 = sand.u32 %s60, 1
        %s486 = smul.addr %s485, 4096
        %s487 = scalar_lea.vmem [#allocation3], %s486
        %p488 = pneg %p73
        %p489 = pneg %p70
        %s490 = sand.u32 %s31, 1
        %s491 = scalar_lea.sflag [#allocation7], %s490
        %s492 = sand.u32 %s86, 1
        %s493 = smul.addr %s492, 2
        %s494 = scalar_lea.vmem [#allocation6], %s493
        %p495 = pneg %p99
        %p496 = pneg %p96
        %s497 = sand.u32 %s31, 1
        %s498 = scalar_lea.sflag [#allocation7], %s497
        %s499 = sand.u32 %s112, 1
        %s500 = smul.addr %s499, 2
        %s501 = scalar_lea.vmem [#allocation8], %s500
        %p502 = pneg %p125
        %p503 = pneg %p122
        %p504 = pneg %p146
        %p505 = pneg %p143
        %p506 = pneg %p167
        %p507 = pneg %p164
        %p508 = pneg %p188
        %p509 = pneg %p185
        %p510 = pneg %p209
        %p511 = pneg %p206
        %p512 = pneg %p230
        %p513 = pneg %p227
        %p514 = pneg %p251
        %p515 = pneg %p248
        %p516 = pneg %p272
        %p517 = pneg %p269
        %s518 = smul.u32 2, %s31
        %s519 = smul.u32 2, %s31
        %v520 = vld [vmem:[%s434] sm:$0xff]
        %v521 = vld [vmem:[%s434 + $0x8] sm:$0xff]
        %v522 = vld [vmem:[%s434 + $0x10] sm:$0xff]
        %v523 = vld [vmem:[%s434 + $0x18] sm:$0xff]
        %v524 = vld [vmem:[%s434 + $0x20] sm:$0xff]
        %v525 = vld [vmem:[%s434 + $0x28] sm:$0xff]
        %v526 = vld [vmem:[%s434 + $0x30] sm:$0xff]
        %v527 = vld [vmem:[%s434 + $0x38] sm:$0xff]
        %v528 = vld [vmem:[%s434 + $0x40] sm:$0xff]
        %v529 = vld [vmem:[%s434 + $0x48] sm:$0xff]
        %v530 = vld [vmem:[%s434 + $0x50] sm:$0xff]
        %v531 = vld [vmem:[%s434 + $0x58] sm:$0xff]
        %v532 = vld [vmem:[%s434 + $0x60] sm:$0xff]
        %v533 = vld [vmem:[%s434 + $0x68] sm:$0xff]
        %v534 = vld [vmem:[%s434 + $0x70] sm:$0xff]
        %v535 = vld [vmem:[%s434 + $0x78] sm:$0xff]
        %v536 = vld [vmem:[%s434 + $0x80] sm:$0xff]
        %v537 = vld [vmem:[%s434 + $0x88] sm:$0xff]
        %v538 = vld [vmem:[%s434 + $0x90] sm:$0xff]
        %v539 = vld [vmem:[%s434 + $0x98] sm:$0xff]
        %v540 = vld [vmem:[%s434 + $0xa0] sm:$0xff]
        %v541 = vld [vmem:[%s434 + $0xa8] sm:$0xff]
        %v542 = vld [vmem:[%s434 + $0xb0] sm:$0xff]
        %v543 = vld [vmem:[%s434 + $0xb8] sm:$0xff]
        %v544 = vld [vmem:[%s434 + $0xc0] sm:$0xff]
        %v545 = vld [vmem:[%s434 + $0xc8] sm:$0xff]
        %v546 = vld [vmem:[%s434 + $0xd0] sm:$0xff]
        %v547 = vld [vmem:[%s434 + $0xd8] sm:$0xff]
        %v548 = vld [vmem:[%s434 + $0xe0] sm:$0xff]
        %v549 = vld [vmem:[%s434 + $0xe8] sm:$0xff]
        %v550 = vld [vmem:[%s434 + $0xf0] sm:$0xff]
        %v551 = vld [vmem:[%s434 + $0xf8] sm:$0xff]
        %v552 = vld [vmem:[%s434 + $0x100] sm:$0xff]
        %v553 = vld [vmem:[%s434 + $0x108] sm:$0xff]
        %v554 = vld [vmem:[%s434 + $0x110] sm:$0xff]
        %v555 = vld [vmem:[%s434 + $0x118] sm:$0xff]
        %v556 = vld [vmem:[%s434 + $0x120] sm:$0xff]
        %v557 = vld [vmem:[%s434 + $0x128] sm:$0xff]
        %v558 = vld [vmem:[%s434 + $0x130] sm:$0xff]
        %v559 = vld [vmem:[%s434 + $0x138] sm:$0xff]
        %v560 = vld [vmem:[%s434 + $0x140] sm:$0xff]
        %v561 = vld [vmem:[%s434 + $0x148] sm:$0xff]
        %v562 = vld [vmem:[%s434 + $0x150] sm:$0xff]
        %v563 = vld [vmem:[%s434 + $0x158] sm:$0xff]
        %v564 = vld [vmem:[%s434 + $0x160] sm:$0xff]
        %v565 = vld [vmem:[%s434 + $0x168] sm:$0xff]
        %v566 = vld [vmem:[%s434 + $0x170] sm:$0xff]
        %v567 = vld [vmem:[%s434 + $0x178] sm:$0xff]
        %v568 = vld [vmem:[%s434 + $0x180] sm:$0xff]
        %v569 = vld [vmem:[%s434 + $0x188] sm:$0xff]
        %v570 = vld [vmem:[%s434 + $0x190] sm:$0xff]
        %v571 = vld [vmem:[%s434 + $0x198] sm:$0xff]
        %v572 = vld [vmem:[%s434 + $0x1a0] sm:$0xff]
        %v573 = vld [vmem:[%s434 + $0x1a8] sm:$0xff]
        %v574 = vld [vmem:[%s434 + $0x1b0] sm:$0xff]
        %v575 = vld [vmem:[%s434 + $0x1b8] sm:$0xff]
        %v576 = vld [vmem:[%s434 + $0x1c0] sm:$0xff]
        %v577 = vld [vmem:[%s434 + $0x1c8] sm:$0xff]
        %v578 = vld [vmem:[%s434 + $0x1d0] sm:$0xff]
        %v579 = vld [vmem:[%s434 + $0x1d8] sm:$0xff]
        %v580 = vld [vmem:[%s434 + $0x1e0] sm:$0xff]
        %v581 = vld [vmem:[%s434 + $0x1e8] sm:$0xff]
        %v582 = vld [vmem:[%s434 + $0x1f0] sm:$0xff]
        %v583 = vld [vmem:[%s434 + $0x1f8] sm:$0xff]
        %v584 = vld [vmem:[%s434 + $0x200] sm:$0xff]
        %v585 = vld [vmem:[%s434 + $0x208] sm:$0xff]
        %v586 = vld [vmem:[%s434 + $0x210] sm:$0xff]
        %v587 = vld [vmem:[%s434 + $0x218] sm:$0xff]
        %v588 = vld [vmem:[%s434 + $0x220] sm:$0xff]
        %v589 = vld [vmem:[%s434 + $0x228] sm:$0xff]
        %v590 = vld [vmem:[%s434 + $0x230] sm:$0xff]
        %v591 = vld [vmem:[%s434 + $0x238] sm:$0xff]
        %v592 = vld [vmem:[%s434 + $0x240] sm:$0xff]
        %v593 = vld [vmem:[%s434 + $0x248] sm:$0xff]
        %v594 = vld [vmem:[%s434 + $0x250] sm:$0xff]
        %v595 = vld [vmem:[%s434 + $0x258] sm:$0xff]
        %v596 = vld [vmem:[%s434 + $0x260] sm:$0xff]
        %v597 = vld [vmem:[%s434 + $0x268] sm:$0xff]
        %v598 = vld [vmem:[%s434 + $0x270] sm:$0xff]
        %v599 = vld [vmem:[%s434 + $0x278] sm:$0xff]
        %v600 = vld [vmem:[%s434 + $0x280] sm:$0xff]
        %v601 = vld [vmem:[%s434 + $0x288] sm:$0xff]
        %v602 = vld [vmem:[%s434 + $0x290] sm:$0xff]
        %v603 = vld [vmem:[%s434 + $0x298] sm:$0xff]
        %v604 = vld [vmem:[%s434 + $0x2a0] sm:$0xff]
        %v605 = vld [vmem:[%s434 + $0x2a8] sm:$0xff]
        %v606 = vld [vmem:[%s434 + $0x2b0] sm:$0xff]
        %v607 = vld [vmem:[%s434 + $0x2b8] sm:$0xff]
        %v608 = vld [vmem:[%s434 + $0x2c0] sm:$0xff]
        %v609 = vld [vmem:[%s434 + $0x2c8] sm:$0xff]
        %v610 = vld [vmem:[%s434 + $0x2d0] sm:$0xff]
        %v611 = vld [vmem:[%s434 + $0x2d8] sm:$0xff]
        %v612 = vld [vmem:[%s434 + $0x2e0] sm:$0xff]
        %v613 = vld [vmem:[%s434 + $0x2e8] sm:$0xff]
        %v614 = vld [vmem:[%s434 + $0x2f0] sm:$0xff]
        %v615 = vld [vmem:[%s434 + $0x2f8] sm:$0xff]
        %v616 = vld [vmem:[%s434 + $0x300] sm:$0xff]
        %v617 = vld [vmem:[%s434 + $0x308] sm:$0xff]
        %v618 = vld [vmem:[%s434 + $0x310] sm:$0xff]
        %v619 = vld [vmem:[%s434 + $0x318] sm:$0xff]
        %v620 = vld [vmem:[%s434 + $0x320] sm:$0xff]
        %v621 = vld [vmem:[%s434 + $0x328] sm:$0xff]
        %v622 = vld [vmem:[%s434 + $0x330] sm:$0xff]
        %v623 = vld [vmem:[%s434 + $0x338] sm:$0xff]
        %v624 = vld [vmem:[%s434 + $0x340] sm:$0xff]
        %v625 = vld [vmem:[%s434 + $0x348] sm:$0xff]
        %v626 = vld [vmem:[%s434 + $0x350] sm:$0xff]
        %v627 = vld [vmem:[%s434 + $0x358] sm:$0xff]
        %v628 = vld [vmem:[%s434 + $0x360] sm:$0xff]
        %v629 = vld [vmem:[%s434 + $0x368] sm:$0xff]
        %v630 = vld [vmem:[%s434 + $0x370] sm:$0xff]
        %v631 = vld [vmem:[%s434 + $0x378] sm:$0xff]
        %v632 = vld [vmem:[%s434 + $0x380] sm:$0xff]
        %v633 = vld [vmem:[%s434 + $0x388] sm:$0xff]
        %v634 = vld [vmem:[%s434 + $0x390] sm:$0xff]
        %v635 = vld [vmem:[%s434 + $0x398] sm:$0xff]
        %v636 = vld [vmem:[%s434 + $0x3a0] sm:$0xff]
        %v637 = vld [vmem:[%s434 + $0x3a8] sm:$0xff]
        %v638 = vld [vmem:[%s434 + $0x3b0] sm:$0xff]
        %v639 = vld [vmem:[%s434 + $0x3b8] sm:$0xff]
        %v640 = vld [vmem:[%s434 + $0x3c0] sm:$0xff]
        %v641 = vld [vmem:[%s434 + $0x3c8] sm:$0xff]
        %v642 = vld [vmem:[%s434 + $0x3d0] sm:$0xff]
        %v643 = vld [vmem:[%s434 + $0x3d8] sm:$0xff]
        %v644 = vld [vmem:[%s434 + $0x3e0] sm:$0xff]
        %v645 = vld [vmem:[%s434 + $0x3e8] sm:$0xff]
        %v646 = vld [vmem:[%s434 + $0x3f0] sm:$0xff]
        %v647 = vld [vmem:[%s434 + $0x3f8] sm:$0xff]
        %v648 = vld [vmem:[%s434 + $0x400] sm:$0xff]
        %v649 = vld [vmem:[%s434 + $0x408] sm:$0xff]
        %v650 = vld [vmem:[%s434 + $0x410] sm:$0xff]
        %v651 = vld [vmem:[%s434 + $0x418] sm:$0xff]
        %v652 = vld [vmem:[%s434 + $0x420] sm:$0xff]
        %v653 = vld [vmem:[%s434 + $0x428] sm:$0xff]
        %v654 = vld [vmem:[%s434 + $0x430] sm:$0xff]
        %v655 = vld [vmem:[%s434 + $0x438] sm:$0xff]
        %v656 = vld [vmem:[%s434 + $0x440] sm:$0xff]
        %v657 = vld [vmem:[%s434 + $0x448] sm:$0xff]
        %v658 = vld [vmem:[%s434 + $0x450] sm:$0xff]
        %v659 = vld [vmem:[%s434 + $0x458] sm:$0xff]
        %v660 = vld [vmem:[%s434 + $0x460] sm:$0xff]
        %v661 = vld [vmem:[%s434 + $0x468] sm:$0xff]
        %v662 = vld [vmem:[%s434 + $0x470] sm:$0xff]
        %v663 = vld [vmem:[%s434 + $0x478] sm:$0xff]
        %v664 = vld [vmem:[%s434 + $0x480] sm:$0xff]
        %v665 = vld [vmem:[%s434 + $0x488] sm:$0xff]
        %v666 = vld [vmem:[%s434 + $0x490] sm:$0xff]
        %v667 = vld [vmem:[%s434 + $0x498] sm:$0xff]
        %v668 = vld [vmem:[%s434 + $0x4a0] sm:$0xff]
        %v669 = vld [vmem:[%s434 + $0x4a8] sm:$0xff]
        %v670 = vld [vmem:[%s434 + $0x4b0] sm:$0xff]
        %v671 = vld [vmem:[%s434 + $0x4b8] sm:$0xff]
        %v672 = vld [vmem:[%s434 + $0x4c0] sm:$0xff]
        %v673 = vld [vmem:[%s434 + $0x4c8] sm:$0xff]
        %v674 = vld [vmem:[%s434 + $0x4d0] sm:$0xff]
        %v675 = vld [vmem:[%s434 + $0x4d8] sm:$0xff]
        %v676 = vld [vmem:[%s434 + $0x4e0] sm:$0xff]
        %v677 = vld [vmem:[%s434 + $0x4e8] sm:$0xff]
        %v678 = vld [vmem:[%s434 + $0x4f0] sm:$0xff]
        %v679 = vld [vmem:[%s434 + $0x4f8] sm:$0xff]
        %v680 = vld [vmem:[%s434 + $0x500] sm:$0xff]
        %v681 = vld [vmem:[%s434 + $0x508] sm:$0xff]
        %v682 = vld [vmem:[%s434 + $0x510] sm:$0xff]
        %v683 = vld [vmem:[%s434 + $0x518] sm:$0xff]
        %v684 = vld [vmem:[%s434 + $0x520] sm:$0xff]
        %v685 = vld [vmem:[%s434 + $0x528] sm:$0xff]
        %v686 = vld [vmem:[%s434 + $0x530] sm:$0xff]
        %v687 = vld [vmem:[%s434 + $0x538] sm:$0xff]
        %v688 = vld [vmem:[%s434 + $0x540] sm:$0xff]
        %v689 = vld [vmem:[%s434 + $0x548] sm:$0xff]
        %v690 = vld [vmem:[%s434 + $0x550] sm:$0xff]
        %v691 = vld [vmem:[%s434 + $0x558] sm:$0xff]
        %v692 = vld [vmem:[%s434 + $0x560] sm:$0xff]
        %v693 = vld [vmem:[%s434 + $0x568] sm:$0xff]
        %v694 = vld [vmem:[%s434 + $0x570] sm:$0xff]
        %v695 = vld [vmem:[%s434 + $0x578] sm:$0xff]
        %v696 = vld [vmem:[%s434 + $0x580] sm:$0xff]
        %v697 = vld [vmem:[%s434 + $0x588] sm:$0xff]
        %v698 = vld [vmem:[%s434 + $0x590] sm:$0xff]
        %v699 = vld [vmem:[%s434 + $0x598] sm:$0xff]
        %v700 = vld [vmem:[%s434 + $0x5a0] sm:$0xff]
        %v701 = vld [vmem:[%s434 + $0x5a8] sm:$0xff]
        %v702 = vld [vmem:[%s434 + $0x5b0] sm:$0xff]
        %v703 = vld [vmem:[%s434 + $0x5b8] sm:$0xff]
        %v704 = vld [vmem:[%s434 + $0x5c0] sm:$0xff]
        %v705 = vld [vmem:[%s434 + $0x5c8] sm:$0xff]
        %v706 = vld [vmem:[%s434 + $0x5d0] sm:$0xff]
        %v707 = vld [vmem:[%s434 + $0x5d8] sm:$0xff]
        %v708 = vld [vmem:[%s434 + $0x5e0] sm:$0xff]
        %v709 = vld [vmem:[%s434 + $0x5e8] sm:$0xff]
        %v710 = vld [vmem:[%s434 + $0x5f0] sm:$0xff]
        %v711 = vld [vmem:[%s434 + $0x5f8] sm:$0xff]
        %v712 = vld [vmem:[%s434 + $0x600] sm:$0xff]
        %v713 = vld [vmem:[%s434 + $0x608] sm:$0xff]
        %v714 = vld [vmem:[%s434 + $0x610] sm:$0xff]
        %v715 = vld [vmem:[%s434 + $0x618] sm:$0xff]
        %v716 = vld [vmem:[%s434 + $0x620] sm:$0xff]
        %v717 = vld [vmem:[%s434 + $0x628] sm:$0xff]
        %v718 = vld [vmem:[%s434 + $0x630] sm:$0xff]
        %v719 = vld [vmem:[%s434 + $0x638] sm:$0xff]
        %v720 = vld [vmem:[%s434 + $0x640] sm:$0xff]
        %v721 = vld [vmem:[%s434 + $0x648] sm:$0xff]
        %v722 = vld [vmem:[%s434 + $0x650] sm:$0xff]
        %v723 = vld [vmem:[%s434 + $0x658] sm:$0xff]
        %v724 = vld [vmem:[%s434 + $0x660] sm:$0xff]
        %v725 = vld [vmem:[%s434 + $0x668] sm:$0xff]
        %v726 = vld [vmem:[%s434 + $0x670] sm:$0xff]
        %v727 = vld [vmem:[%s434 + $0x678] sm:$0xff]
        %v728 = vld [vmem:[%s434 + $0x680] sm:$0xff]
        %v729 = vld [vmem:[%s434 + $0x688] sm:$0xff]
        %v730 = vld [vmem:[%s434 + $0x690] sm:$0xff]
        %v731 = vld [vmem:[%s434 + $0x698] sm:$0xff]
        %v732 = vld [vmem:[%s434 + $0x6a0] sm:$0xff]
        %v733 = vld [vmem:[%s434 + $0x6a8] sm:$0xff]
        %v734 = vld [vmem:[%s434 + $0x6b0] sm:$0xff]
        %v735 = vld [vmem:[%s434 + $0x6b8] sm:$0xff]
        %v736 = vld [vmem:[%s434 + $0x6c0] sm:$0xff]
        %v737 = vld [vmem:[%s434 + $0x6c8] sm:$0xff]
        %v738 = vld [vmem:[%s434 + $0x6d0] sm:$0xff]
        %v739 = vld [vmem:[%s434 + $0x6d8] sm:$0xff]
        %v740 = vld [vmem:[%s434 + $0x6e0] sm:$0xff]
        %v741 = vld [vmem:[%s434 + $0x6e8] sm:$0xff]
        %v742 = vld [vmem:[%s434 + $0x6f0] sm:$0xff]
        %v743 = vld [vmem:[%s434 + $0x6f8] sm:$0xff]
        %v744 = vld [vmem:[%s434 + $0x700] sm:$0xff]
        %v745 = vld [vmem:[%s434 + $0x708] sm:$0xff]
        %v746 = vld [vmem:[%s434 + $0x710] sm:$0xff]
        %v747 = vld [vmem:[%s434 + $0x718] sm:$0xff]
        %v748 = vld [vmem:[%s434 + $0x720] sm:$0xff]
        %v749 = vld [vmem:[%s434 + $0x728] sm:$0xff]
        %v750 = vld [vmem:[%s434 + $0x730] sm:$0xff]
        %v751 = vld [vmem:[%s434 + $0x738] sm:$0xff]
        %v752 = vld [vmem:[%s434 + $0x740] sm:$0xff]
        %v753 = vld [vmem:[%s434 + $0x748] sm:$0xff]
        %v754 = vld [vmem:[%s434 + $0x750] sm:$0xff]
        %v755 = vld [vmem:[%s434 + $0x758] sm:$0xff]
        %v756 = vld [vmem:[%s434 + $0x760] sm:$0xff]
        %v757 = vld [vmem:[%s434 + $0x768] sm:$0xff]
        %v758 = vld [vmem:[%s434 + $0x770] sm:$0xff]
        %v759 = vld [vmem:[%s434 + $0x778] sm:$0xff]
        %v760 = vld [vmem:[%s434 + $0x780] sm:$0xff]
        %v761 = vld [vmem:[%s434 + $0x788] sm:$0xff]
        %v762 = vld [vmem:[%s434 + $0x790] sm:$0xff]
        %v763 = vld [vmem:[%s434 + $0x798] sm:$0xff]
        %v764 = vld [vmem:[%s434 + $0x7a0] sm:$0xff]
        %v765 = vld [vmem:[%s434 + $0x7a8] sm:$0xff]
        %v766 = vld [vmem:[%s434 + $0x7b0] sm:$0xff]
        %v767 = vld [vmem:[%s434 + $0x7b8] sm:$0xff]
        %v768 = vld [vmem:[%s434 + $0x7c0] sm:$0xff]
        %v769 = vld [vmem:[%s434 + $0x7c8] sm:$0xff]
        %v770 = vld [vmem:[%s434 + $0x7d0] sm:$0xff]
        %v771 = vld [vmem:[%s434 + $0x7d8] sm:$0xff]
        %v772 = vld [vmem:[%s434 + $0x7e0] sm:$0xff]
        %v773 = vld [vmem:[%s434 + $0x7e8] sm:$0xff]
        %v774 = vld [vmem:[%s434 + $0x7f0] sm:$0xff]
        %v775 = vld [vmem:[%s434 + $0x7f8] sm:$0xff]
        %v776 = vld [vmem:[%s434 + $0x800] sm:$0xff]
        %v777 = vld [vmem:[%s434 + $0x808] sm:$0xff]
        %v778 = vld [vmem:[%s434 + $0x810] sm:$0xff]
        %v779 = vld [vmem:[%s434 + $0x818] sm:$0xff]
        %v780 = vld [vmem:[%s434 + $0x820] sm:$0xff]
        %v781 = vld [vmem:[%s434 + $0x828] sm:$0xff]
        %v782 = vld [vmem:[%s434 + $0x830] sm:$0xff]
        %v783 = vld [vmem:[%s434 + $0x838] sm:$0xff]
        %v784 = vld [vmem:[%s434 + $0x840] sm:$0xff]
        %v785 = vld [vmem:[%s434 + $0x848] sm:$0xff]
        %v786 = vld [vmem:[%s434 + $0x850] sm:$0xff]
        %v787 = vld [vmem:[%s434 + $0x858] sm:$0xff]
        %v788 = vld [vmem:[%s434 + $0x860] sm:$0xff]
        %v789 = vld [vmem:[%s434 + $0x868] sm:$0xff]
        %v790 = vld [vmem:[%s434 + $0x870] sm:$0xff]
        %v791 = vld [vmem:[%s434 + $0x878] sm:$0xff]
        %v792 = vld [vmem:[%s434 + $0x880] sm:$0xff]
        %v793 = vld [vmem:[%s434 + $0x888] sm:$0xff]
        %v794 = vld [vmem:[%s434 + $0x890] sm:$0xff]
        %v795 = vld [vmem:[%s434 + $0x898] sm:$0xff]
        %v796 = vld [vmem:[%s434 + $0x8a0] sm:$0xff]
        %v797 = vld [vmem:[%s434 + $0x8a8] sm:$0xff]
        %v798 = vld [vmem:[%s434 + $0x8b0] sm:$0xff]
        %v799 = vld [vmem:[%s434 + $0x8b8] sm:$0xff]
        %v800 = vld [vmem:[%s434 + $0x8c0] sm:$0xff]
        %v801 = vld [vmem:[%s434 + $0x8c8] sm:$0xff]
        %v802 = vld [vmem:[%s434 + $0x8d0] sm:$0xff]
        %v803 = vld [vmem:[%s434 + $0x8d8] sm:$0xff]
        %v804 = vld [vmem:[%s434 + $0x8e0] sm:$0xff]
        %v805 = vld [vmem:[%s434 + $0x8e8] sm:$0xff]
        %v806 = vld [vmem:[%s434 + $0x8f0] sm:$0xff]
        %v807 = vld [vmem:[%s434 + $0x8f8] sm:$0xff]
        %v808 = vld [vmem:[%s434 + $0x900] sm:$0xff]
        %v809 = vld [vmem:[%s434 + $0x908] sm:$0xff]
        %v810 = vld [vmem:[%s434 + $0x910] sm:$0xff]
        %v811 = vld [vmem:[%s434 + $0x918] sm:$0xff]
        %v812 = vld [vmem:[%s434 + $0x920] sm:$0xff]
        %v813 = vld [vmem:[%s434 + $0x928] sm:$0xff]
        %v814 = vld [vmem:[%s434 + $0x930] sm:$0xff]
        %v815 = vld [vmem:[%s434 + $0x938] sm:$0xff]
        %v816 = vld [vmem:[%s434 + $0x940] sm:$0xff]
        %v817 = vld [vmem:[%s434 + $0x948] sm:$0xff]
        %v818 = vld [vmem:[%s434 + $0x950] sm:$0xff]
        %v819 = vld [vmem:[%s434 + $0x958] sm:$0xff]
        %v820 = vld [vmem:[%s434 + $0x960] sm:$0xff]
        %v821 = vld [vmem:[%s434 + $0x968] sm:$0xff]
        %v822 = vld [vmem:[%s434 + $0x970] sm:$0xff]
        %v823 = vld [vmem:[%s434 + $0x978] sm:$0xff]
        %v824 = vld [vmem:[%s434 + $0x980] sm:$0xff]
        %v825 = vld [vmem:[%s434 + $0x988] sm:$0xff]
        %v826 = vld [vmem:[%s434 + $0x990] sm:$0xff]
        %v827 = vld [vmem:[%s434 + $0x998] sm:$0xff]
        %v828 = vld [vmem:[%s434 + $0x9a0] sm:$0xff]
        %v829 = vld [vmem:[%s434 + $0x9a8] sm:$0xff]
        %v830 = vld [vmem:[%s434 + $0x9b0] sm:$0xff]
        %v831 = vld [vmem:[%s434 + $0x9b8] sm:$0xff]
        %v832 = vld [vmem:[%s434 + $0x9c0] sm:$0xff]
        %v833 = vld [vmem:[%s434 + $0x9c8] sm:$0xff]
        %v834 = vld [vmem:[%s434 + $0x9d0] sm:$0xff]
        %v835 = vld [vmem:[%s434 + $0x9d8] sm:$0xff]
        %v836 = vld [vmem:[%s434 + $0x9e0] sm:$0xff]
        %v837 = vld [vmem:[%s434 + $0x9e8] sm:$0xff]
        %v838 = vld [vmem:[%s434 + $0x9f0] sm:$0xff]
        %v839 = vld [vmem:[%s434 + $0x9f8] sm:$0xff]
        %v840 = vld [vmem:[%s434 + $0xa00] sm:$0xff]
        %v841 = vld [vmem:[%s434 + $0xa08] sm:$0xff]
        %v842 = vld [vmem:[%s434 + $0xa10] sm:$0xff]
        %v843 = vld [vmem:[%s434 + $0xa18] sm:$0xff]
        %v844 = vld [vmem:[%s434 + $0xa20] sm:$0xff]
        %v845 = vld [vmem:[%s434 + $0xa28] sm:$0xff]
        %v846 = vld [vmem:[%s434 + $0xa30] sm:$0xff]
        %v847 = vld [vmem:[%s434 + $0xa38] sm:$0xff]
        %v848 = vld [vmem:[%s434 + $0xa40] sm:$0xff]
        %v849 = vld [vmem:[%s434 + $0xa48] sm:$0xff]
        %v850 = vld [vmem:[%s434 + $0xa50] sm:$0xff]
        %v851 = vld [vmem:[%s434 + $0xa58] sm:$0xff]
        %v852 = vld [vmem:[%s434 + $0xa60] sm:$0xff]
        %v853 = vld [vmem:[%s434 + $0xa68] sm:$0xff]
        %v854 = vld [vmem:[%s434 + $0xa70] sm:$0xff]
        %v855 = vld [vmem:[%s434 + $0xa78] sm:$0xff]
        %v856 = vld [vmem:[%s434 + $0xa80] sm:$0xff]
        %v857 = vld [vmem:[%s434 + $0xa88] sm:$0xff]
        %v858 = vld [vmem:[%s434 + $0xa90] sm:$0xff]
        %v859 = vld [vmem:[%s434 + $0xa98] sm:$0xff]
        %v860 = vld [vmem:[%s434 + $0xaa0] sm:$0xff]
        %v861 = vld [vmem:[%s434 + $0xaa8] sm:$0xff]
        %v862 = vld [vmem:[%s434 + $0xab0] sm:$0xff]
        %v863 = vld [vmem:[%s434 + $0xab8] sm:$0xff]
        %v864 = vld [vmem:[%s434 + $0xac0] sm:$0xff]
        %v865 = vld [vmem:[%s434 + $0xac8] sm:$0xff]
        %v866 = vld [vmem:[%s434 + $0xad0] sm:$0xff]
        %v867 = vld [vmem:[%s434 + $0xad8] sm:$0xff]
        %v868 = vld [vmem:[%s434 + $0xae0] sm:$0xff]
        %v869 = vld [vmem:[%s434 + $0xae8] sm:$0xff]
        %v870 = vld [vmem:[%s434 + $0xaf0] sm:$0xff]
        %v871 = vld [vmem:[%s434 + $0xaf8] sm:$0xff]
        %v872 = vld [vmem:[%s434 + $0xb00] sm:$0xff]
        %v873 = vld [vmem:[%s434 + $0xb08] sm:$0xff]
        %v874 = vld [vmem:[%s434 + $0xb10] sm:$0xff]
        %v875 = vld [vmem:[%s434 + $0xb18] sm:$0xff]
        %v876 = vld [vmem:[%s434 + $0xb20] sm:$0xff]
        %v877 = vld [vmem:[%s434 + $0xb28] sm:$0xff]
        %v878 = vld [vmem:[%s434 + $0xb30] sm:$0xff]
        %v879 = vld [vmem:[%s434 + $0xb38] sm:$0xff]
        %v880 = vld [vmem:[%s434 + $0xb40] sm:$0xff]
        %v881 = vld [vmem:[%s434 + $0xb48] sm:$0xff]
        %v882 = vld [vmem:[%s434 + $0xb50] sm:$0xff]
        %v883 = vld [vmem:[%s434 + $0xb58] sm:$0xff]
        %v884 = vld [vmem:[%s434 + $0xb60] sm:$0xff]
        %v885 = vld [vmem:[%s434 + $0xb68] sm:$0xff]
        %v886 = vld [vmem:[%s434 + $0xb70] sm:$0xff]
        %v887 = vld [vmem:[%s434 + $0xb78] sm:$0xff]
        %v888 = vld [vmem:[%s434 + $0xb80] sm:$0xff]
        %v889 = vld [vmem:[%s434 + $0xb88] sm:$0xff]
        %v890 = vld [vmem:[%s434 + $0xb90] sm:$0xff]
        %v891 = vld [vmem:[%s434 + $0xb98] sm:$0xff]
        %v892 = vld [vmem:[%s434 + $0xba0] sm:$0xff]
        %v893 = vld [vmem:[%s434 + $0xba8] sm:$0xff]
        %v894 = vld [vmem:[%s434 + $0xbb0] sm:$0xff]
        %v895 = vld [vmem:[%s434 + $0xbb8] sm:$0xff]
        %v896 = vld [vmem:[%s434 + $0xbc0] sm:$0xff]
        %v897 = vld [vmem:[%s434 + $0xbc8] sm:$0xff]
        %v898 = vld [vmem:[%s434 + $0xbd0] sm:$0xff]
        %v899 = vld [vmem:[%s434 + $0xbd8] sm:$0xff]
        %v900 = vld [vmem:[%s434 + $0xbe0] sm:$0xff]
        %v901 = vld [vmem:[%s434 + $0xbe8] sm:$0xff]
        %v902 = vld [vmem:[%s434 + $0xbf0] sm:$0xff]
        %v903 = vld [vmem:[%s434 + $0xbf8] sm:$0xff]
        %v904 = vld [vmem:[%s434 + $0xc00] sm:$0xff]
        %v905 = vld [vmem:[%s434 + $0xc08] sm:$0xff]
        %v906 = vld [vmem:[%s434 + $0xc10] sm:$0xff]
        %v907 = vld [vmem:[%s434 + $0xc18] sm:$0xff]
        %v908 = vld [vmem:[%s434 + $0xc20] sm:$0xff]
        %v909 = vld [vmem:[%s434 + $0xc28] sm:$0xff]
        %v910 = vld [vmem:[%s434 + $0xc30] sm:$0xff]
        %v911 = vld [vmem:[%s434 + $0xc38] sm:$0xff]
        %v912 = vld [vmem:[%s434 + $0xc40] sm:$0xff]
        %v913 = vld [vmem:[%s434 + $0xc48] sm:$0xff]
        %v914 = vld [vmem:[%s434 + $0xc50] sm:$0xff]
        %v915 = vld [vmem:[%s434 + $0xc58] sm:$0xff]
        %v916 = vld [vmem:[%s434 + $0xc60] sm:$0xff]
        %v917 = vld [vmem:[%s434 + $0xc68] sm:$0xff]
        %v918 = vld [vmem:[%s434 + $0xc70] sm:$0xff]
        %v919 = vld [vmem:[%s434 + $0xc78] sm:$0xff]
        %v920 = vld [vmem:[%s434 + $0xc80] sm:$0xff]
        %v921 = vld [vmem:[%s434 + $0xc88] sm:$0xff]
        %v922 = vld [vmem:[%s434 + $0xc90] sm:$0xff]
        %v923 = vld [vmem:[%s434 + $0xc98] sm:$0xff]
        %v924 = vld [vmem:[%s434 + $0xca0] sm:$0xff]
        %v925 = vld [vmem:[%s434 + $0xca8] sm:$0xff]
        %v926 = vld [vmem:[%s434 + $0xcb0] sm:$0xff]
        %v927 = vld [vmem:[%s434 + $0xcb8] sm:$0xff]
        %v928 = vld [vmem:[%s434 + $0xcc0] sm:$0xff]
        %v929 = vld [vmem:[%s434 + $0xcc8] sm:$0xff]
        %v930 = vld [vmem:[%s434 + $0xcd0] sm:$0xff]
        %v931 = vld [vmem:[%s434 + $0xcd8] sm:$0xff]
        %v932 = vld [vmem:[%s434 + $0xce0] sm:$0xff]
        %v933 = vld [vmem:[%s434 + $0xce8] sm:$0xff]
        %v934 = vld [vmem:[%s434 + $0xcf0] sm:$0xff]
        %v935 = vld [vmem:[%s434 + $0xcf8] sm:$0xff]
        %v936 = vld [vmem:[%s434 + $0xd00] sm:$0xff]
        %v937 = vld [vmem:[%s434 + $0xd08] sm:$0xff]
        %v938 = vld [vmem:[%s434 + $0xd10] sm:$0xff]
        %v939 = vld [vmem:[%s434 + $0xd18] sm:$0xff]
        %v940 = vld [vmem:[%s434 + $0xd20] sm:$0xff]
        %v941 = vld [vmem:[%s434 + $0xd28] sm:$0xff]
        %v942 = vld [vmem:[%s434 + $0xd30] sm:$0xff]
        %v943 = vld [vmem:[%s434 + $0xd38] sm:$0xff]
        %v944 = vld [vmem:[%s434 + $0xd40] sm:$0xff]
        %v945 = vld [vmem:[%s434 + $0xd48] sm:$0xff]
        %v946 = vld [vmem:[%s434 + $0xd50] sm:$0xff]
        %v947 = vld [vmem:[%s434 + $0xd58] sm:$0xff]
        %v948 = vld [vmem:[%s434 + $0xd60] sm:$0xff]
        %v949 = vld [vmem:[%s434 + $0xd68] sm:$0xff]
        %v950 = vld [vmem:[%s434 + $0xd70] sm:$0xff]
        %v951 = vld [vmem:[%s434 + $0xd78] sm:$0xff]
        %v952 = vld [vmem:[%s434 + $0xd80] sm:$0xff]
        %v953 = vld [vmem:[%s434 + $0xd88] sm:$0xff]
        %v954 = vld [vmem:[%s434 + $0xd90] sm:$0xff]
        %v955 = vld [vmem:[%s434 + $0xd98] sm:$0xff]
        %v956 = vld [vmem:[%s434 + $0xda0] sm:$0xff]
        %v957 = vld [vmem:[%s434 + $0xda8] sm:$0xff]
        %v958 = vld [vmem:[%s434 + $0xdb0] sm:$0xff]
        %v959 = vld [vmem:[%s434 + $0xdb8] sm:$0xff]
        %v960 = vld [vmem:[%s434 + $0xdc0] sm:$0xff]
        %v961 = vld [vmem:[%s434 + $0xdc8] sm:$0xff]
        %v962 = vld [vmem:[%s434 + $0xdd0] sm:$0xff]
        %v963 = vld [vmem:[%s434 + $0xdd8] sm:$0xff]
        %v964 = vld [vmem:[%s434 + $0xde0] sm:$0xff]
        %v965 = vld [vmem:[%s434 + $0xde8] sm:$0xff]
        %v966 = vld [vmem:[%s434 + $0xdf0] sm:$0xff]
        %v967 = vld [vmem:[%s434 + $0xdf8] sm:$0xff]
        %v968 = vld [vmem:[%s434 + $0xe00] sm:$0xff]
        %v969 = vld [vmem:[%s434 + $0xe08] sm:$0xff]
        %v970 = vld [vmem:[%s434 + $0xe10] sm:$0xff]
        %v971 = vld [vmem:[%s434 + $0xe18] sm:$0xff]
        %v972 = vld [vmem:[%s434 + $0xe20] sm:$0xff]
        %v973 = vld [vmem:[%s434 + $0xe28] sm:$0xff]
        %v974 = vld [vmem:[%s434 + $0xe30] sm:$0xff]
        %v975 = vld [vmem:[%s434 + $0xe38] sm:$0xff]
        %v976 = vld [vmem:[%s434 + $0xe40] sm:$0xff]
        %v977 = vld [vmem:[%s434 + $0xe48] sm:$0xff]
        %v978 = vld [vmem:[%s434 + $0xe50] sm:$0xff]
        %v979 = vld [vmem:[%s434 + $0xe58] sm:$0xff]
        %v980 = vld [vmem:[%s434 + $0xe60] sm:$0xff]
        %v981 = vld [vmem:[%s434 + $0xe68] sm:$0xff]
        %v982 = vld [vmem:[%s434 + $0xe70] sm:$0xff]
        %v983 = vld [vmem:[%s434 + $0xe78] sm:$0xff]
        %v984 = vld [vmem:[%s434 + $0xe80] sm:$0xff]
        %v985 = vld [vmem:[%s434 + $0xe88] sm:$0xff]
        %v986 = vld [vmem:[%s434 + $0xe90] sm:$0xff]
        %v987 = vld [vmem:[%s434 + $0xe98] sm:$0xff]
        %v988 = vld [vmem:[%s434 + $0xea0] sm:$0xff]
        %v989 = vld [vmem:[%s434 + $0xea8] sm:$0xff]
        %v990 = vld [vmem:[%s434 + $0xeb0] sm:$0xff]
        %v991 = vld [vmem:[%s434 + $0xeb8] sm:$0xff]
        %v992 = vld [vmem:[%s434 + $0xec0] sm:$0xff]
        %v993 = vld [vmem:[%s434 + $0xec8] sm:$0xff]
        %v994 = vld [vmem:[%s434 + $0xed0] sm:$0xff]
        %v995 = vld [vmem:[%s434 + $0xed8] sm:$0xff]
        %v996 = vld [vmem:[%s434 + $0xee0] sm:$0xff]
        %v997 = vld [vmem:[%s434 + $0xee8] sm:$0xff]
        %v998 = vld [vmem:[%s434 + $0xef0] sm:$0xff]
        %v999 = vld [vmem:[%s434 + $0xef8] sm:$0xff]
        %v1000 = vld [vmem:[%s434 + $0xf00] sm:$0xff]
        %v1001 = vld [vmem:[%s434 + $0xf08] sm:$0xff]
        %v1002 = vld [vmem:[%s434 + $0xf10] sm:$0xff]
        %v1003 = vld [vmem:[%s434 + $0xf18] sm:$0xff]
        %v1004 = vld [vmem:[%s434 + $0xf20] sm:$0xff]
        %v1005 = vld [vmem:[%s434 + $0xf28] sm:$0xff]
        %v1006 = vld [vmem:[%s434 + $0xf30] sm:$0xff]
        %v1007 = vld [vmem:[%s434 + $0xf38] sm:$0xff]
        %v1008 = vld [vmem:[%s434 + $0xf40] sm:$0xff]
        %v1009 = vld [vmem:[%s434 + $0xf48] sm:$0xff]
        %v1010 = vld [vmem:[%s434 + $0xf50] sm:$0xff]
        %v1011 = vld [vmem:[%s434 + $0xf58] sm:$0xff]
        %v1012 = vld [vmem:[%s434 + $0xf60] sm:$0xff]
        %v1013 = vld [vmem:[%s434 + $0xf68] sm:$0xff]
        %v1014 = vld [vmem:[%s434 + $0xf70] sm:$0xff]
        %v1015 = vld [vmem:[%s434 + $0xf78] sm:$0xff]
        %v1016 = vld [vmem:[%s434 + $0xf80] sm:$0xff]
        %v1017 = vld [vmem:[%s434 + $0xf88] sm:$0xff]
        %v1018 = vld [vmem:[%s434 + $0xf90] sm:$0xff]
        %v1019 = vld [vmem:[%s434 + $0xf98] sm:$0xff]
        %v1020 = vld [vmem:[%s434 + $0xfa0] sm:$0xff]
        %v1021 = vld [vmem:[%s434 + $0xfa8] sm:$0xff]
        %v1022 = vld [vmem:[%s434 + $0xfb0] sm:$0xff]
        %v1023 = vld [vmem:[%s434 + $0xfb8] sm:$0xff]
        %v1024 = vld [vmem:[%s434 + $0xfc0] sm:$0xff]
        %v1025 = vld [vmem:[%s434 + $0xfc8] sm:$0xff]
        %v1026 = vld [vmem:[%s434 + $0xfd0] sm:$0xff]
        %v1027 = vld [vmem:[%s434 + $0xfd8] sm:$0xff]
        %v1028 = vld [vmem:[%s434 + $0xfe0] sm:$0xff]
        %v1029 = vld [vmem:[%s434 + $0xfe8] sm:$0xff]
        %v1030 = vld [vmem:[%s434 + $0xff0] sm:$0xff]
        %v1031 = vld [vmem:[%s434 + $0xff8] sm:$0xff]
        %v1032 = vunpack.c.l.bf16 %v520
        %v1033 = vunpack.c.h.bf16 %v520
        %v1034 = vunpack.c.l.bf16 %v521
        %v1035 = vunpack.c.h.bf16 %v521
        %v1036 = vunpack.c.l.bf16 %v522
        %v1037 = vunpack.c.h.bf16 %v522
        %v1038 = vunpack.c.l.bf16 %v523
        %v1039 = vunpack.c.h.bf16 %v523
        %v1040 = vunpack.c.l.bf16 %v524
        %v1041 = vunpack.c.h.bf16 %v524
        %v1042 = vunpack.c.l.bf16 %v525
        %v1043 = vunpack.c.h.bf16 %v525
        %v1044 = vunpack.c.l.bf16 %v526
        %v1045 = vunpack.c.h.bf16 %v526
        %v1046 = vunpack.c.l.bf16 %v527
        %v1047 = vunpack.c.h.bf16 %v527
        %v1048 = vunpack.c.l.bf16 %v528
        %v1049 = vunpack.c.h.bf16 %v528
        %v1050 = vunpack.c.l.bf16 %v529
        %v1051 = vunpack.c.h.bf16 %v529
        %v1052 = vunpack.c.l.bf16 %v530
        %v1053 = vunpack.c.h.bf16 %v530
        %v1054 = vunpack.c.l.bf16 %v531
        %v1055 = vunpack.c.h.bf16 %v531
        %v1056 = vunpack.c.l.bf16 %v532
        %v1057 = vunpack.c.h.bf16 %v532
        %v1058 = vunpack.c.l.bf16 %v533
        %v1059 = vunpack.c.h.bf16 %v533
        %v1060 = vunpack.c.l.bf16 %v534
        %v1061 = vunpack.c.h.bf16 %v534
        %v1062 = vunpack.c.l.bf16 %v535
        %v1063 = vunpack.c.h.bf16 %v535
        %v1064 = vunpack.c.l.bf16 %v536
        %v1065 = vunpack.c.h.bf16 %v536
        %v1066 = vunpack.c.l.bf16 %v537
        %v1067 = vunpack.c.h.bf16 %v537
        %v1068 = vunpack.c.l.bf16 %v538
        %v1069 = vunpack.c.h.bf16 %v538
        %v1070 = vunpack.c.l.bf16 %v539
        %v1071 = vunpack.c.h.bf16 %v539
        %v1072 = vunpack.c.l.bf16 %v540
        %v1073 = vunpack.c.h.bf16 %v540
        %v1074 = vunpack.c.l.bf16 %v541
        %v1075 = vunpack.c.h.bf16 %v541
        %v1076 = vunpack.c.l.bf16 %v542
        %v1077 = vunpack.c.h.bf16 %v542
        %v1078 = vunpack.c.l.bf16 %v543
        %v1079 = vunpack.c.h.bf16 %v543
        %v1080 = vunpack.c.l.bf16 %v544
        %v1081 = vunpack.c.h.bf16 %v544
        %v1082 = vunpack.c.l.bf16 %v545
        %v1083 = vunpack.c.h.bf16 %v545
        %v1084 = vunpack.c.l.bf16 %v546
        %v1085 = vunpack.c.h.bf16 %v546
        %v1086 = vunpack.c.l.bf16 %v547
        %v1087 = vunpack.c.h.bf16 %v547
        %v1088 = vunpack.c.l.bf16 %v548
        %v1089 = vunpack.c.h.bf16 %v548
        %v1090 = vunpack.c.l.bf16 %v549
        %v1091 = vunpack.c.h.bf16 %v549
        %v1092 = vunpack.c.l.bf16 %v550
        %v1093 = vunpack.c.h.bf16 %v550
        %v1094 = vunpack.c.l.bf16 %v551
        %v1095 = vunpack.c.h.bf16 %v551
        %v1096 = vunpack.c.l.bf16 %v552
        %v1097 = vunpack.c.h.bf16 %v552
        %v1098 = vunpack.c.l.bf16 %v553
        %v1099 = vunpack.c.h.bf16 %v553
        %v1100 = vunpack.c.l.bf16 %v554
        %v1101 = vunpack.c.h.bf16 %v554
        %v1102 = vunpack.c.l.bf16 %v555
        %v1103 = vunpack.c.h.bf16 %v555
        %v1104 = vunpack.c.l.bf16 %v556
        %v1105 = vunpack.c.h.bf16 %v556
        %v1106 = vunpack.c.l.bf16 %v557
        %v1107 = vunpack.c.h.bf16 %v557
        %v1108 = vunpack.c.l.bf16 %v558
        %v1109 = vunpack.c.h.bf16 %v558
        %v1110 = vunpack.c.l.bf16 %v559
        %v1111 = vunpack.c.h.bf16 %v559
        %v1112 = vunpack.c.l.bf16 %v560
        %v1113 = vunpack.c.h.bf16 %v560
        %v1114 = vunpack.c.l.bf16 %v561
        %v1115 = vunpack.c.h.bf16 %v561
        %v1116 = vunpack.c.l.bf16 %v562
        %v1117 = vunpack.c.h.bf16 %v562
        %v1118 = vunpack.c.l.bf16 %v563
        %v1119 = vunpack.c.h.bf16 %v563
        %v1120 = vunpack.c.l.bf16 %v564
        %v1121 = vunpack.c.h.bf16 %v564
        %v1122 = vunpack.c.l.bf16 %v565
        %v1123 = vunpack.c.h.bf16 %v565
        %v1124 = vunpack.c.l.bf16 %v566
        %v1125 = vunpack.c.h.bf16 %v566
        %v1126 = vunpack.c.l.bf16 %v567
        %v1127 = vunpack.c.h.bf16 %v567
        %v1128 = vunpack.c.l.bf16 %v568
        %v1129 = vunpack.c.h.bf16 %v568
        %v1130 = vunpack.c.l.bf16 %v569
        %v1131 = vunpack.c.h.bf16 %v569
        %v1132 = vunpack.c.l.bf16 %v570
        %v1133 = vunpack.c.h.bf16 %v570
        %v1134 = vunpack.c.l.bf16 %v571
        %v1135 = vunpack.c.h.bf16 %v571
        %v1136 = vunpack.c.l.bf16 %v572
        %v1137 = vunpack.c.h.bf16 %v572
        %v1138 = vunpack.c.l.bf16 %v573
        %v1139 = vunpack.c.h.bf16 %v573
        %v1140 = vunpack.c.l.bf16 %v574
        %v1141 = vunpack.c.h.bf16 %v574
        %v1142 = vunpack.c.l.bf16 %v575
        %v1143 = vunpack.c.h.bf16 %v575
        %v1144 = vunpack.c.l.bf16 %v576
        %v1145 = vunpack.c.h.bf16 %v576
        %v1146 = vunpack.c.l.bf16 %v577
        %v1147 = vunpack.c.h.bf16 %v577
        %v1148 = vunpack.c.l.bf16 %v578
        %v1149 = vunpack.c.h.bf16 %v578
        %v1150 = vunpack.c.l.bf16 %v579
        %v1151 = vunpack.c.h.bf16 %v579
        %v1152 = vunpack.c.l.bf16 %v580
        %v1153 = vunpack.c.h.bf16 %v580
        %v1154 = vunpack.c.l.bf16 %v581
        %v1155 = vunpack.c.h.bf16 %v581
        %v1156 = vunpack.c.l.bf16 %v582
        %v1157 = vunpack.c.h.bf16 %v582
        %v1158 = vunpack.c.l.bf16 %v583
        %v1159 = vunpack.c.h.bf16 %v583
        %v1160 = vunpack.c.l.bf16 %v584
        %v1161 = vunpack.c.h.bf16 %v584
        %v1162 = vunpack.c.l.bf16 %v585
        %v1163 = vunpack.c.h.bf16 %v585
        %v1164 = vunpack.c.l.bf16 %v586
        %v1165 = vunpack.c.h.bf16 %v586
        %v1166 = vunpack.c.l.bf16 %v587
        %v1167 = vunpack.c.h.bf16 %v587
        %v1168 = vunpack.c.l.bf16 %v588
        %v1169 = vunpack.c.h.bf16 %v588
        %v1170 = vunpack.c.l.bf16 %v589
        %v1171 = vunpack.c.h.bf16 %v589
        %v1172 = vunpack.c.l.bf16 %v590
        %v1173 = vunpack.c.h.bf16 %v590
        %v1174 = vunpack.c.l.bf16 %v591
        %v1175 = vunpack.c.h.bf16 %v591
        %v1176 = vunpack.c.l.bf16 %v592
        %v1177 = vunpack.c.h.bf16 %v592
        %v1178 = vunpack.c.l.bf16 %v593
        %v1179 = vunpack.c.h.bf16 %v593
        %v1180 = vunpack.c.l.bf16 %v594
        %v1181 = vunpack.c.h.bf16 %v594
        %v1182 = vunpack.c.l.bf16 %v595
        %v1183 = vunpack.c.h.bf16 %v595
        %v1184 = vunpack.c.l.bf16 %v596
        %v1185 = vunpack.c.h.bf16 %v596
        %v1186 = vunpack.c.l.bf16 %v597
        %v1187 = vunpack.c.h.bf16 %v597
        %v1188 = vunpack.c.l.bf16 %v598
        %v1189 = vunpack.c.h.bf16 %v598
        %v1190 = vunpack.c.l.bf16 %v599
        %v1191 = vunpack.c.h.bf16 %v599
        %v1192 = vunpack.c.l.bf16 %v600
        %v1193 = vunpack.c.h.bf16 %v600
        %v1194 = vunpack.c.l.bf16 %v601
        %v1195 = vunpack.c.h.bf16 %v601
        %v1196 = vunpack.c.l.bf16 %v602
        %v1197 = vunpack.c.h.bf16 %v602
        %v1198 = vunpack.c.l.bf16 %v603
        %v1199 = vunpack.c.h.bf16 %v603
        %v1200 = vunpack.c.l.bf16 %v604
        %v1201 = vunpack.c.h.bf16 %v604
        %v1202 = vunpack.c.l.bf16 %v605
        %v1203 = vunpack.c.h.bf16 %v605
        %v1204 = vunpack.c.l.bf16 %v606
        %v1205 = vunpack.c.h.bf16 %v606
        %v1206 = vunpack.c.l.bf16 %v607
        %v1207 = vunpack.c.h.bf16 %v607
        %v1208 = vunpack.c.l.bf16 %v608
        %v1209 = vunpack.c.h.bf16 %v608
        %v1210 = vunpack.c.l.bf16 %v609
        %v1211 = vunpack.c.h.bf16 %v609
        %v1212 = vunpack.c.l.bf16 %v610
        %v1213 = vunpack.c.h.bf16 %v610
        %v1214 = vunpack.c.l.bf16 %v611
        %v1215 = vunpack.c.h.bf16 %v611
        %v1216 = vunpack.c.l.bf16 %v612
        %v1217 = vunpack.c.h.bf16 %v612
        %v1218 = vunpack.c.l.bf16 %v613
        %v1219 = vunpack.c.h.bf16 %v613
        %v1220 = vunpack.c.l.bf16 %v614
        %v1221 = vunpack.c.h.bf16 %v614
        %v1222 = vunpack.c.l.bf16 %v615
        %v1223 = vunpack.c.h.bf16 %v615
        %v1224 = vunpack.c.l.bf16 %v616
        %v1225 = vunpack.c.h.bf16 %v616
        %v1226 = vunpack.c.l.bf16 %v617
        %v1227 = vunpack.c.h.bf16 %v617
        %v1228 = vunpack.c.l.bf16 %v618
        %v1229 = vunpack.c.h.bf16 %v618
        %v1230 = vunpack.c.l.bf16 %v619
        %v1231 = vunpack.c.h.bf16 %v619
        %v1232 = vunpack.c.l.bf16 %v620
        %v1233 = vunpack.c.h.bf16 %v620
        %v1234 = vunpack.c.l.bf16 %v621
        %v1235 = vunpack.c.h.bf16 %v621
        %v1236 = vunpack.c.l.bf16 %v622
        %v1237 = vunpack.c.h.bf16 %v622
        %v1238 = vunpack.c.l.bf16 %v623
        %v1239 = vunpack.c.h.bf16 %v623
        %v1240 = vunpack.c.l.bf16 %v624
        %v1241 = vunpack.c.h.bf16 %v624
        %v1242 = vunpack.c.l.bf16 %v625
        %v1243 = vunpack.c.h.bf16 %v625
        %v1244 = vunpack.c.l.bf16 %v626
        %v1245 = vunpack.c.h.bf16 %v626
        %v1246 = vunpack.c.l.bf16 %v627
        %v1247 = vunpack.c.h.bf16 %v627
        %v1248 = vunpack.c.l.bf16 %v628
        %v1249 = vunpack.c.h.bf16 %v628
        %v1250 = vunpack.c.l.bf16 %v629
        %v1251 = vunpack.c.h.bf16 %v629
        %v1252 = vunpack.c.l.bf16 %v630
        %v1253 = vunpack.c.h.bf16 %v630
        %v1254 = vunpack.c.l.bf16 %v631
        %v1255 = vunpack.c.h.bf16 %v631
        %v1256 = vunpack.c.l.bf16 %v632
        %v1257 = vunpack.c.h.bf16 %v632
        %v1258 = vunpack.c.l.bf16 %v633
        %v1259 = vunpack.c.h.bf16 %v633
        %v1260 = vunpack.c.l.bf16 %v634
        %v1261 = vunpack.c.h.bf16 %v634
        %v1262 = vunpack.c.l.bf16 %v635
        %v1263 = vunpack.c.h.bf16 %v635
        %v1264 = vunpack.c.l.bf16 %v636
        %v1265 = vunpack.c.h.bf16 %v636
        %v1266 = vunpack.c.l.bf16 %v637
        %v1267 = vunpack.c.h.bf16 %v637
        %v1268 = vunpack.c.l.bf16 %v638
        %v1269 = vunpack.c.h.bf16 %v638
        %v1270 = vunpack.c.l.bf16 %v639
        %v1271 = vunpack.c.h.bf16 %v639
        %v1272 = vunpack.c.l.bf16 %v640
        %v1273 = vunpack.c.h.bf16 %v640
        %v1274 = vunpack.c.l.bf16 %v641
        %v1275 = vunpack.c.h.bf16 %v641
        %v1276 = vunpack.c.l.bf16 %v642
        %v1277 = vunpack.c.h.bf16 %v642
        %v1278 = vunpack.c.l.bf16 %v643
        %v1279 = vunpack.c.h.bf16 %v643
        %v1280 = vunpack.c.l.bf16 %v644
        %v1281 = vunpack.c.h.bf16 %v644
        %v1282 = vunpack.c.l.bf16 %v645
        %v1283 = vunpack.c.h.bf16 %v645
        %v1284 = vunpack.c.l.bf16 %v646
        %v1285 = vunpack.c.h.bf16 %v646
        %v1286 = vunpack.c.l.bf16 %v647
        %v1287 = vunpack.c.h.bf16 %v647
        %v1288 = vunpack.c.l.bf16 %v648
        %v1289 = vunpack.c.h.bf16 %v648
        %v1290 = vunpack.c.l.bf16 %v649
        %v1291 = vunpack.c.h.bf16 %v649
        %v1292 = vunpack.c.l.bf16 %v650
        %v1293 = vunpack.c.h.bf16 %v650
        %v1294 = vunpack.c.l.bf16 %v651
        %v1295 = vunpack.c.h.bf16 %v651
        %v1296 = vunpack.c.l.bf16 %v652
        %v1297 = vunpack.c.h.bf16 %v652
        %v1298 = vunpack.c.l.bf16 %v653
        %v1299 = vunpack.c.h.bf16 %v653
        %v1300 = vunpack.c.l.bf16 %v654
        %v1301 = vunpack.c.h.bf16 %v654
        %v1302 = vunpack.c.l.bf16 %v655
        %v1303 = vunpack.c.h.bf16 %v655
        %v1304 = vunpack.c.l.bf16 %v656
        %v1305 = vunpack.c.h.bf16 %v656
        %v1306 = vunpack.c.l.bf16 %v657
        %v1307 = vunpack.c.h.bf16 %v657
        %v1308 = vunpack.c.l.bf16 %v658
        %v1309 = vunpack.c.h.bf16 %v658
        %v1310 = vunpack.c.l.bf16 %v659
        %v1311 = vunpack.c.h.bf16 %v659
        %v1312 = vunpack.c.l.bf16 %v660
        %v1313 = vunpack.c.h.bf16 %v660
        %v1314 = vunpack.c.l.bf16 %v661
        %v1315 = vunpack.c.h.bf16 %v661
        %v1316 = vunpack.c.l.bf16 %v662
        %v1317 = vunpack.c.h.bf16 %v662
        %v1318 = vunpack.c.l.bf16 %v663
        %v1319 = vunpack.c.h.bf16 %v663
        %v1320 = vunpack.c.l.bf16 %v664
        %v1321 = vunpack.c.h.bf16 %v664
        %v1322 = vunpack.c.l.bf16 %v665
        %v1323 = vunpack.c.h.bf16 %v665
        %v1324 = vunpack.c.l.bf16 %v666
        %v1325 = vunpack.c.h.bf16 %v666
        %v1326 = vunpack.c.l.bf16 %v667
        %v1327 = vunpack.c.h.bf16 %v667
        %v1328 = vunpack.c.l.bf16 %v668
        %v1329 = vunpack.c.h.bf16 %v668
        %v1330 = vunpack.c.l.bf16 %v669
        %v1331 = vunpack.c.h.bf16 %v669
        %v1332 = vunpack.c.l.bf16 %v670
        %v1333 = vunpack.c.h.bf16 %v670
        %v1334 = vunpack.c.l.bf16 %v671
        %v1335 = vunpack.c.h.bf16 %v671
        %v1336 = vunpack.c.l.bf16 %v672
        %v1337 = vunpack.c.h.bf16 %v672
        %v1338 = vunpack.c.l.bf16 %v673
        %v1339 = vunpack.c.h.bf16 %v673
        %v1340 = vunpack.c.l.bf16 %v674
        %v1341 = vunpack.c.h.bf16 %v674
        %v1342 = vunpack.c.l.bf16 %v675
        %v1343 = vunpack.c.h.bf16 %v675
        %v1344 = vunpack.c.l.bf16 %v676
        %v1345 = vunpack.c.h.bf16 %v676
        %v1346 = vunpack.c.l.bf16 %v677
        %v1347 = vunpack.c.h.bf16 %v677
        %v1348 = vunpack.c.l.bf16 %v678
        %v1349 = vunpack.c.h.bf16 %v678
        %v1350 = vunpack.c.l.bf16 %v679
        %v1351 = vunpack.c.h.bf16 %v679
        %v1352 = vunpack.c.l.bf16 %v680
        %v1353 = vunpack.c.h.bf16 %v680
        %v1354 = vunpack.c.l.bf16 %v681
        %v1355 = vunpack.c.h.bf16 %v681
        %v1356 = vunpack.c.l.bf16 %v682
        %v1357 = vunpack.c.h.bf16 %v682
        %v1358 = vunpack.c.l.bf16 %v683
        %v1359 = vunpack.c.h.bf16 %v683
        %v1360 = vunpack.c.l.bf16 %v684
        %v1361 = vunpack.c.h.bf16 %v684
        %v1362 = vunpack.c.l.bf16 %v685
        %v1363 = vunpack.c.h.bf16 %v685
        %v1364 = vunpack.c.l.bf16 %v686
        %v1365 = vunpack.c.h.bf16 %v686
        %v1366 = vunpack.c.l.bf16 %v687
        %v1367 = vunpack.c.h.bf16 %v687
        %v1368 = vunpack.c.l.bf16 %v688
        %v1369 = vunpack.c.h.bf16 %v688
        %v1370 = vunpack.c.l.bf16 %v689
        %v1371 = vunpack.c.h.bf16 %v689
        %v1372 = vunpack.c.l.bf16 %v690
        %v1373 = vunpack.c.h.bf16 %v690
        %v1374 = vunpack.c.l.bf16 %v691
        %v1375 = vunpack.c.h.bf16 %v691
        %v1376 = vunpack.c.l.bf16 %v692
        %v1377 = vunpack.c.h.bf16 %v692
        %v1378 = vunpack.c.l.bf16 %v693
        %v1379 = vunpack.c.h.bf16 %v693
        %v1380 = vunpack.c.l.bf16 %v694
        %v1381 = vunpack.c.h.bf16 %v694
        %v1382 = vunpack.c.l.bf16 %v695
        %v1383 = vunpack.c.h.bf16 %v695
        %v1384 = vunpack.c.l.bf16 %v696
        %v1385 = vunpack.c.h.bf16 %v696
        %v1386 = vunpack.c.l.bf16 %v697
        %v1387 = vunpack.c.h.bf16 %v697
        %v1388 = vunpack.c.l.bf16 %v698
        %v1389 = vunpack.c.h.bf16 %v698
        %v1390 = vunpack.c.l.bf16 %v699
        %v1391 = vunpack.c.h.bf16 %v699
        %v1392 = vunpack.c.l.bf16 %v700
        %v1393 = vunpack.c.h.bf16 %v700
        %v1394 = vunpack.c.l.bf16 %v701
        %v1395 = vunpack.c.h.bf16 %v701
        %v1396 = vunpack.c.l.bf16 %v702
        %v1397 = vunpack.c.h.bf16 %v702
        %v1398 = vunpack.c.l.bf16 %v703
        %v1399 = vunpack.c.h.bf16 %v703
        %v1400 = vunpack.c.l.bf16 %v704
        %v1401 = vunpack.c.h.bf16 %v704
        %v1402 = vunpack.c.l.bf16 %v705
        %v1403 = vunpack.c.h.bf16 %v705
        %v1404 = vunpack.c.l.bf16 %v706
        %v1405 = vunpack.c.h.bf16 %v706
        %v1406 = vunpack.c.l.bf16 %v707
        %v1407 = vunpack.c.h.bf16 %v707
        %v1408 = vunpack.c.l.bf16 %v708
        %v1409 = vunpack.c.h.bf16 %v708
        %v1410 = vunpack.c.l.bf16 %v709
        %v1411 = vunpack.c.h.bf16 %v709
        %v1412 = vunpack.c.l.bf16 %v710
        %v1413 = vunpack.c.h.bf16 %v710
        %v1414 = vunpack.c.l.bf16 %v711
        %v1415 = vunpack.c.h.bf16 %v711
        %v1416 = vunpack.c.l.bf16 %v712
        %v1417 = vunpack.c.h.bf16 %v712
        %v1418 = vunpack.c.l.bf16 %v713
        %v1419 = vunpack.c.h.bf16 %v713
        %v1420 = vunpack.c.l.bf16 %v714
        %v1421 = vunpack.c.h.bf16 %v714
        %v1422 = vunpack.c.l.bf16 %v715
        %v1423 = vunpack.c.h.bf16 %v715
        %v1424 = vunpack.c.l.bf16 %v716
        %v1425 = vunpack.c.h.bf16 %v716
        %v1426 = vunpack.c.l.bf16 %v717
        %v1427 = vunpack.c.h.bf16 %v717
        %v1428 = vunpack.c.l.bf16 %v718
        %v1429 = vunpack.c.h.bf16 %v718
        %v1430 = vunpack.c.l.bf16 %v719
        %v1431 = vunpack.c.h.bf16 %v719
        %v1432 = vunpack.c.l.bf16 %v720
        %v1433 = vunpack.c.h.bf16 %v720
        %v1434 = vunpack.c.l.bf16 %v721
        %v1435 = vunpack.c.h.bf16 %v721
        %v1436 = vunpack.c.l.bf16 %v722
        %v1437 = vunpack.c.h.bf16 %v722
        %v1438 = vunpack.c.l.bf16 %v723
        %v1439 = vunpack.c.h.bf16 %v723
        %v1440 = vunpack.c.l.bf16 %v724
        %v1441 = vunpack.c.h.bf16 %v724
        %v1442 = vunpack.c.l.bf16 %v725
        %v1443 = vunpack.c.h.bf16 %v725
        %v1444 = vunpack.c.l.bf16 %v726
        %v1445 = vunpack.c.h.bf16 %v726
        %v1446 = vunpack.c.l.bf16 %v727
        %v1447 = vunpack.c.h.bf16 %v727
        %v1448 = vunpack.c.l.bf16 %v728
        %v1449 = vunpack.c.h.bf16 %v728
        %v1450 = vunpack.c.l.bf16 %v729
        %v1451 = vunpack.c.h.bf16 %v729
        %v1452 = vunpack.c.l.bf16 %v730
        %v1453 = vunpack.c.h.bf16 %v730
        %v1454 = vunpack.c.l.bf16 %v731
        %v1455 = vunpack.c.h.bf16 %v731
        %v1456 = vunpack.c.l.bf16 %v732
        %v1457 = vunpack.c.h.bf16 %v732
        %v1458 = vunpack.c.l.bf16 %v733
        %v1459 = vunpack.c.h.bf16 %v733
        %v1460 = vunpack.c.l.bf16 %v734
        %v1461 = vunpack.c.h.bf16 %v734
        %v1462 = vunpack.c.l.bf16 %v735
        %v1463 = vunpack.c.h.bf16 %v735
        %v1464 = vunpack.c.l.bf16 %v736
        %v1465 = vunpack.c.h.bf16 %v736
        %v1466 = vunpack.c.l.bf16 %v737
        %v1467 = vunpack.c.h.bf16 %v737
        %v1468 = vunpack.c.l.bf16 %v738
        %v1469 = vunpack.c.h.bf16 %v738
        %v1470 = vunpack.c.l.bf16 %v739
        %v1471 = vunpack.c.h.bf16 %v739
        %v1472 = vunpack.c.l.bf16 %v740
        %v1473 = vunpack.c.h.bf16 %v740
        %v1474 = vunpack.c.l.bf16 %v741
        %v1475 = vunpack.c.h.bf16 %v741
        %v1476 = vunpack.c.l.bf16 %v742
        %v1477 = vunpack.c.h.bf16 %v742
        %v1478 = vunpack.c.l.bf16 %v743
        %v1479 = vunpack.c.h.bf16 %v743
        %v1480 = vunpack.c.l.bf16 %v744
        %v1481 = vunpack.c.h.bf16 %v744
        %v1482 = vunpack.c.l.bf16 %v745
        %v1483 = vunpack.c.h.bf16 %v745
        %v1484 = vunpack.c.l.bf16 %v746
        %v1485 = vunpack.c.h.bf16 %v746
        %v1486 = vunpack.c.l.bf16 %v747
        %v1487 = vunpack.c.h.bf16 %v747
        %v1488 = vunpack.c.l.bf16 %v748
        %v1489 = vunpack.c.h.bf16 %v748
        %v1490 = vunpack.c.l.bf16 %v749
        %v1491 = vunpack.c.h.bf16 %v749
        %v1492 = vunpack.c.l.bf16 %v750
        %v1493 = vunpack.c.h.bf16 %v750
        %v1494 = vunpack.c.l.bf16 %v751
        %v1495 = vunpack.c.h.bf16 %v751
        %v1496 = vunpack.c.l.bf16 %v752
        %v1497 = vunpack.c.h.bf16 %v752
        %v1498 = vunpack.c.l.bf16 %v753
        %v1499 = vunpack.c.h.bf16 %v753
        %v1500 = vunpack.c.l.bf16 %v754
        %v1501 = vunpack.c.h.bf16 %v754
        %v1502 = vunpack.c.l.bf16 %v755
        %v1503 = vunpack.c.h.bf16 %v755
        %v1504 = vunpack.c.l.bf16 %v756
        %v1505 = vunpack.c.h.bf16 %v756
        %v1506 = vunpack.c.l.bf16 %v757
        %v1507 = vunpack.c.h.bf16 %v757
        %v1508 = vunpack.c.l.bf16 %v758
        %v1509 = vunpack.c.h.bf16 %v758
        %v1510 = vunpack.c.l.bf16 %v759
        %v1511 = vunpack.c.h.bf16 %v759
        %v1512 = vunpack.c.l.bf16 %v760
        %v1513 = vunpack.c.h.bf16 %v760
        %v1514 = vunpack.c.l.bf16 %v761
        %v1515 = vunpack.c.h.bf16 %v761
        %v1516 = vunpack.c.l.bf16 %v762
        %v1517 = vunpack.c.h.bf16 %v762
        %v1518 = vunpack.c.l.bf16 %v763
        %v1519 = vunpack.c.h.bf16 %v763
        %v1520 = vunpack.c.l.bf16 %v764
        %v1521 = vunpack.c.h.bf16 %v764
        %v1522 = vunpack.c.l.bf16 %v765
        %v1523 = vunpack.c.h.bf16 %v765
        %v1524 = vunpack.c.l.bf16 %v766
        %v1525 = vunpack.c.h.bf16 %v766
        %v1526 = vunpack.c.l.bf16 %v767
        %v1527 = vunpack.c.h.bf16 %v767
        %v1528 = vunpack.c.l.bf16 %v768
        %v1529 = vunpack.c.h.bf16 %v768
        %v1530 = vunpack.c.l.bf16 %v769
        %v1531 = vunpack.c.h.bf16 %v769
        %v1532 = vunpack.c.l.bf16 %v770
        %v1533 = vunpack.c.h.bf16 %v770
        %v1534 = vunpack.c.l.bf16 %v771
        %v1535 = vunpack.c.h.bf16 %v771
        %v1536 = vunpack.c.l.bf16 %v772
        %v1537 = vunpack.c.h.bf16 %v772
        %v1538 = vunpack.c.l.bf16 %v773
        %v1539 = vunpack.c.h.bf16 %v773
        %v1540 = vunpack.c.l.bf16 %v774
        %v1541 = vunpack.c.h.bf16 %v774
        %v1542 = vunpack.c.l.bf16 %v775
        %v1543 = vunpack.c.h.bf16 %v775
        %v1544 = vunpack.c.l.bf16 %v776
        %v1545 = vunpack.c.h.bf16 %v776
        %v1546 = vunpack.c.l.bf16 %v777
        %v1547 = vunpack.c.h.bf16 %v777
        %v1548 = vunpack.c.l.bf16 %v778
        %v1549 = vunpack.c.h.bf16 %v778
        %v1550 = vunpack.c.l.bf16 %v779
        %v1551 = vunpack.c.h.bf16 %v779
        %v1552 = vunpack.c.l.bf16 %v780
        %v1553 = vunpack.c.h.bf16 %v780
        %v1554 = vunpack.c.l.bf16 %v781
        %v1555 = vunpack.c.h.bf16 %v781
        %v1556 = vunpack.c.l.bf16 %v782
        %v1557 = vunpack.c.h.bf16 %v782
        %v1558 = vunpack.c.l.bf16 %v783
        %v1559 = vunpack.c.h.bf16 %v783
        %v1560 = vunpack.c.l.bf16 %v784
        %v1561 = vunpack.c.h.bf16 %v784
        %v1562 = vunpack.c.l.bf16 %v785
        %v1563 = vunpack.c.h.bf16 %v785
        %v1564 = vunpack.c.l.bf16 %v786
        %v1565 = vunpack.c.h.bf16 %v786
        %v1566 = vunpack.c.l.bf16 %v787
        %v1567 = vunpack.c.h.bf16 %v787
        %v1568 = vunpack.c.l.bf16 %v788
        %v1569 = vunpack.c.h.bf16 %v788
        %v1570 = vunpack.c.l.bf16 %v789
        %v1571 = vunpack.c.h.bf16 %v789
        %v1572 = vunpack.c.l.bf16 %v790
        %v1573 = vunpack.c.h.bf16 %v790
        %v1574 = vunpack.c.l.bf16 %v791
        %v1575 = vunpack.c.h.bf16 %v791
        %v1576 = vunpack.c.l.bf16 %v792
        %v1577 = vunpack.c.h.bf16 %v792
        %v1578 = vunpack.c.l.bf16 %v793
        %v1579 = vunpack.c.h.bf16 %v793
        %v1580 = vunpack.c.l.bf16 %v794
        %v1581 = vunpack.c.h.bf16 %v794
        %v1582 = vunpack.c.l.bf16 %v795
        %v1583 = vunpack.c.h.bf16 %v795
        %v1584 = vunpack.c.l.bf16 %v796
        %v1585 = vunpack.c.h.bf16 %v796
        %v1586 = vunpack.c.l.bf16 %v797
        %v1587 = vunpack.c.h.bf16 %v797
        %v1588 = vunpack.c.l.bf16 %v798
        %v1589 = vunpack.c.h.bf16 %v798
        %v1590 = vunpack.c.l.bf16 %v799
        %v1591 = vunpack.c.h.bf16 %v799
        %v1592 = vunpack.c.l.bf16 %v800
        %v1593 = vunpack.c.h.bf16 %v800
        %v1594 = vunpack.c.l.bf16 %v801
        %v1595 = vunpack.c.h.bf16 %v801
        %v1596 = vunpack.c.l.bf16 %v802
        %v1597 = vunpack.c.h.bf16 %v802
        %v1598 = vunpack.c.l.bf16 %v803
        %v1599 = vunpack.c.h.bf16 %v803
        %v1600 = vunpack.c.l.bf16 %v804
        %v1601 = vunpack.c.h.bf16 %v804
        %v1602 = vunpack.c.l.bf16 %v805
        %v1603 = vunpack.c.h.bf16 %v805
        %v1604 = vunpack.c.l.bf16 %v806
        %v1605 = vunpack.c.h.bf16 %v806
        %v1606 = vunpack.c.l.bf16 %v807
        %v1607 = vunpack.c.h.bf16 %v807
        %v1608 = vunpack.c.l.bf16 %v808
        %v1609 = vunpack.c.h.bf16 %v808
        %v1610 = vunpack.c.l.bf16 %v809
        %v1611 = vunpack.c.h.bf16 %v809
        %v1612 = vunpack.c.l.bf16 %v810
        %v1613 = vunpack.c.h.bf16 %v810
        %v1614 = vunpack.c.l.bf16 %v811
        %v1615 = vunpack.c.h.bf16 %v811
        %v1616 = vunpack.c.l.bf16 %v812
        %v1617 = vunpack.c.h.bf16 %v812
        %v1618 = vunpack.c.l.bf16 %v813
        %v1619 = vunpack.c.h.bf16 %v813
        %v1620 = vunpack.c.l.bf16 %v814
        %v1621 = vunpack.c.h.bf16 %v814
        %v1622 = vunpack.c.l.bf16 %v815
        %v1623 = vunpack.c.h.bf16 %v815
        %v1624 = vunpack.c.l.bf16 %v816
        %v1625 = vunpack.c.h.bf16 %v816
        %v1626 = vunpack.c.l.bf16 %v817
        %v1627 = vunpack.c.h.bf16 %v817
        %v1628 = vunpack.c.l.bf16 %v818
        %v1629 = vunpack.c.h.bf16 %v818
        %v1630 = vunpack.c.l.bf16 %v819
        %v1631 = vunpack.c.h.bf16 %v819
        %v1632 = vunpack.c.l.bf16 %v820
        %v1633 = vunpack.c.h.bf16 %v820
        %v1634 = vunpack.c.l.bf16 %v821
        %v1635 = vunpack.c.h.bf16 %v821
        %v1636 = vunpack.c.l.bf16 %v822
        %v1637 = vunpack.c.h.bf16 %v822
        %v1638 = vunpack.c.l.bf16 %v823
        %v1639 = vunpack.c.h.bf16 %v823
        %v1640 = vunpack.c.l.bf16 %v824
        %v1641 = vunpack.c.h.bf16 %v824
        %v1642 = vunpack.c.l.bf16 %v825
        %v1643 = vunpack.c.h.bf16 %v825
        %v1644 = vunpack.c.l.bf16 %v826
        %v1645 = vunpack.c.h.bf16 %v826
        %v1646 = vunpack.c.l.bf16 %v827
        %v1647 = vunpack.c.h.bf16 %v827
        %v1648 = vunpack.c.l.bf16 %v828
        %v1649 = vunpack.c.h.bf16 %v828
        %v1650 = vunpack.c.l.bf16 %v829
        %v1651 = vunpack.c.h.bf16 %v829
        %v1652 = vunpack.c.l.bf16 %v830
        %v1653 = vunpack.c.h.bf16 %v830
        %v1654 = vunpack.c.l.bf16 %v831
        %v1655 = vunpack.c.h.bf16 %v831
        %v1656 = vunpack.c.l.bf16 %v832
        %v1657 = vunpack.c.h.bf16 %v832
        %v1658 = vunpack.c.l.bf16 %v833
        %v1659 = vunpack.c.h.bf16 %v833
        %v1660 = vunpack.c.l.bf16 %v834
        %v1661 = vunpack.c.h.bf16 %v834
        %v1662 = vunpack.c.l.bf16 %v835
        %v1663 = vunpack.c.h.bf16 %v835
        %v1664 = vunpack.c.l.bf16 %v836
        %v1665 = vunpack.c.h.bf16 %v836
        %v1666 = vunpack.c.l.bf16 %v837
        %v1667 = vunpack.c.h.bf16 %v837
        %v1668 = vunpack.c.l.bf16 %v838
        %v1669 = vunpack.c.h.bf16 %v838
        %v1670 = vunpack.c.l.bf16 %v839
        %v1671 = vunpack.c.h.bf16 %v839
        %v1672 = vunpack.c.l.bf16 %v840
        %v1673 = vunpack.c.h.bf16 %v840
        %v1674 = vunpack.c.l.bf16 %v841
        %v1675 = vunpack.c.h.bf16 %v841
        %v1676 = vunpack.c.l.bf16 %v842
        %v1677 = vunpack.c.h.bf16 %v842
        %v1678 = vunpack.c.l.bf16 %v843
        %v1679 = vunpack.c.h.bf16 %v843
        %v1680 = vunpack.c.l.bf16 %v844
        %v1681 = vunpack.c.h.bf16 %v844
        %v1682 = vunpack.c.l.bf16 %v845
        %v1683 = vunpack.c.h.bf16 %v845
        %v1684 = vunpack.c.l.bf16 %v846
        %v1685 = vunpack.c.h.bf16 %v846
        %v1686 = vunpack.c.l.bf16 %v847
        %v1687 = vunpack.c.h.bf16 %v847
        %v1688 = vunpack.c.l.bf16 %v848
        %v1689 = vunpack.c.h.bf16 %v848
        %v1690 = vunpack.c.l.bf16 %v849
        %v1691 = vunpack.c.h.bf16 %v849
        %v1692 = vunpack.c.l.bf16 %v850
        %v1693 = vunpack.c.h.bf16 %v850
        %v1694 = vunpack.c.l.bf16 %v851
        %v1695 = vunpack.c.h.bf16 %v851
        %v1696 = vunpack.c.l.bf16 %v852
        %v1697 = vunpack.c.h.bf16 %v852
        %v1698 = vunpack.c.l.bf16 %v853
        %v1699 = vunpack.c.h.bf16 %v853
        %v1700 = vunpack.c.l.bf16 %v854
        %v1701 = vunpack.c.h.bf16 %v854
        %v1702 = vunpack.c.l.bf16 %v855
        %v1703 = vunpack.c.h.bf16 %v855
        %v1704 = vunpack.c.l.bf16 %v856
        %v1705 = vunpack.c.h.bf16 %v856
        %v1706 = vunpack.c.l.bf16 %v857
        %v1707 = vunpack.c.h.bf16 %v857
        %v1708 = vunpack.c.l.bf16 %v858
        %v1709 = vunpack.c.h.bf16 %v858
        %v1710 = vunpack.c.l.bf16 %v859
        %v1711 = vunpack.c.h.bf16 %v859
        %v1712 = vunpack.c.l.bf16 %v860
        %v1713 = vunpack.c.h.bf16 %v860
        %v1714 = vunpack.c.l.bf16 %v861
        %v1715 = vunpack.c.h.bf16 %v861
        %v1716 = vunpack.c.l.bf16 %v862
        %v1717 = vunpack.c.h.bf16 %v862
        %v1718 = vunpack.c.l.bf16 %v863
        %v1719 = vunpack.c.h.bf16 %v863
        %v1720 = vunpack.c.l.bf16 %v864
        %v1721 = vunpack.c.h.bf16 %v864
        %v1722 = vunpack.c.l.bf16 %v865
        %v1723 = vunpack.c.h.bf16 %v865
        %v1724 = vunpack.c.l.bf16 %v866
        %v1725 = vunpack.c.h.bf16 %v866
        %v1726 = vunpack.c.l.bf16 %v867
        %v1727 = vunpack.c.h.bf16 %v867
        %v1728 = vunpack.c.l.bf16 %v868
        %v1729 = vunpack.c.h.bf16 %v868
        %v1730 = vunpack.c.l.bf16 %v869
        %v1731 = vunpack.c.h.bf16 %v869
        %v1732 = vunpack.c.l.bf16 %v870
        %v1733 = vunpack.c.h.bf16 %v870
        %v1734 = vunpack.c.l.bf16 %v871
        %v1735 = vunpack.c.h.bf16 %v871
        %v1736 = vunpack.c.l.bf16 %v872
        %v1737 = vunpack.c.h.bf16 %v872
        %v1738 = vunpack.c.l.bf16 %v873
        %v1739 = vunpack.c.h.bf16 %v873
        %v1740 = vunpack.c.l.bf16 %v874
        %v1741 = vunpack.c.h.bf16 %v874
        %v1742 = vunpack.c.l.bf16 %v875
        %v1743 = vunpack.c.h.bf16 %v875
        %v1744 = vunpack.c.l.bf16 %v876
        %v1745 = vunpack.c.h.bf16 %v876
        %v1746 = vunpack.c.l.bf16 %v877
        %v1747 = vunpack.c.h.bf16 %v877
        %v1748 = vunpack.c.l.bf16 %v878
        %v1749 = vunpack.c.h.bf16 %v878
        %v1750 = vunpack.c.l.bf16 %v879
        %v1751 = vunpack.c.h.bf16 %v879
        %v1752 = vunpack.c.l.bf16 %v880
        %v1753 = vunpack.c.h.bf16 %v880
        %v1754 = vunpack.c.l.bf16 %v881
        %v1755 = vunpack.c.h.bf16 %v881
        %v1756 = vunpack.c.l.bf16 %v882
        %v1757 = vunpack.c.h.bf16 %v882
        %v1758 = vunpack.c.l.bf16 %v883
        %v1759 = vunpack.c.h.bf16 %v883
        %v1760 = vunpack.c.l.bf16 %v884
        %v1761 = vunpack.c.h.bf16 %v884
        %v1762 = vunpack.c.l.bf16 %v885
        %v1763 = vunpack.c.h.bf16 %v885
        %v1764 = vunpack.c.l.bf16 %v886
        %v1765 = vunpack.c.h.bf16 %v886
        %v1766 = vunpack.c.l.bf16 %v887
        %v1767 = vunpack.c.h.bf16 %v887
        %v1768 = vunpack.c.l.bf16 %v888
        %v1769 = vunpack.c.h.bf16 %v888
        %v1770 = vunpack.c.l.bf16 %v889
        %v1771 = vunpack.c.h.bf16 %v889
        %v1772 = vunpack.c.l.bf16 %v890
        %v1773 = vunpack.c.h.bf16 %v890
        %v1774 = vunpack.c.l.bf16 %v891
        %v1775 = vunpack.c.h.bf16 %v891
        %v1776 = vunpack.c.l.bf16 %v892
        %v1777 = vunpack.c.h.bf16 %v892
        %v1778 = vunpack.c.l.bf16 %v893
        %v1779 = vunpack.c.h.bf16 %v893
        %v1780 = vunpack.c.l.bf16 %v894
        %v1781 = vunpack.c.h.bf16 %v894
        %v1782 = vunpack.c.l.bf16 %v895
        %v1783 = vunpack.c.h.bf16 %v895
        %v1784 = vunpack.c.l.bf16 %v896
        %v1785 = vunpack.c.h.bf16 %v896
        %v1786 = vunpack.c.l.bf16 %v897
        %v1787 = vunpack.c.h.bf16 %v897
        %v1788 = vunpack.c.l.bf16 %v898
        %v1789 = vunpack.c.h.bf16 %v898
        %v1790 = vunpack.c.l.bf16 %v899
        %v1791 = vunpack.c.h.bf16 %v899
        %v1792 = vunpack.c.l.bf16 %v900
        %v1793 = vunpack.c.h.bf16 %v900
        %v1794 = vunpack.c.l.bf16 %v901
        %v1795 = vunpack.c.h.bf16 %v901
        %v1796 = vunpack.c.l.bf16 %v902
        %v1797 = vunpack.c.h.bf16 %v902
        %v1798 = vunpack.c.l.bf16 %v903
        %v1799 = vunpack.c.h.bf16 %v903
        %v1800 = vunpack.c.l.bf16 %v904
        %v1801 = vunpack.c.h.bf16 %v904
        %v1802 = vunpack.c.l.bf16 %v905
        %v1803 = vunpack.c.h.bf16 %v905
        %v1804 = vunpack.c.l.bf16 %v906
        %v1805 = vunpack.c.h.bf16 %v906
        %v1806 = vunpack.c.l.bf16 %v907
        %v1807 = vunpack.c.h.bf16 %v907
        %v1808 = vunpack.c.l.bf16 %v908
        %v1809 = vunpack.c.h.bf16 %v908
        %v1810 = vunpack.c.l.bf16 %v909
        %v1811 = vunpack.c.h.bf16 %v909
        %v1812 = vunpack.c.l.bf16 %v910
        %v1813 = vunpack.c.h.bf16 %v910
        %v1814 = vunpack.c.l.bf16 %v911
        %v1815 = vunpack.c.h.bf16 %v911
        %v1816 = vunpack.c.l.bf16 %v912
        %v1817 = vunpack.c.h.bf16 %v912
        %v1818 = vunpack.c.l.bf16 %v913
        %v1819 = vunpack.c.h.bf16 %v913
        %v1820 = vunpack.c.l.bf16 %v914
        %v1821 = vunpack.c.h.bf16 %v914
        %v1822 = vunpack.c.l.bf16 %v915
        %v1823 = vunpack.c.h.bf16 %v915
        %v1824 = vunpack.c.l.bf16 %v916
        %v1825 = vunpack.c.h.bf16 %v916
        %v1826 = vunpack.c.l.bf16 %v917
        %v1827 = vunpack.c.h.bf16 %v917
        %v1828 = vunpack.c.l.bf16 %v918
        %v1829 = vunpack.c.h.bf16 %v918
        %v1830 = vunpack.c.l.bf16 %v919
        %v1831 = vunpack.c.h.bf16 %v919
        %v1832 = vunpack.c.l.bf16 %v920
        %v1833 = vunpack.c.h.bf16 %v920
        %v1834 = vunpack.c.l.bf16 %v921
        %v1835 = vunpack.c.h.bf16 %v921
        %v1836 = vunpack.c.l.bf16 %v922
        %v1837 = vunpack.c.h.bf16 %v922
        %v1838 = vunpack.c.l.bf16 %v923
        %v1839 = vunpack.c.h.bf16 %v923
        %v1840 = vunpack.c.l.bf16 %v924
        %v1841 = vunpack.c.h.bf16 %v924
        %v1842 = vunpack.c.l.bf16 %v925
        %v1843 = vunpack.c.h.bf16 %v925
        %v1844 = vunpack.c.l.bf16 %v926
        %v1845 = vunpack.c.h.bf16 %v926
        %v1846 = vunpack.c.l.bf16 %v927
        %v1847 = vunpack.c.h.bf16 %v927
        %v1848 = vunpack.c.l.bf16 %v928
        %v1849 = vunpack.c.h.bf16 %v928
        %v1850 = vunpack.c.l.bf16 %v929
        %v1851 = vunpack.c.h.bf16 %v929
        %v1852 = vunpack.c.l.bf16 %v930
        %v1853 = vunpack.c.h.bf16 %v930
        %v1854 = vunpack.c.l.bf16 %v931
        %v1855 = vunpack.c.h.bf16 %v931
        %v1856 = vunpack.c.l.bf16 %v932
        %v1857 = vunpack.c.h.bf16 %v932
        %v1858 = vunpack.c.l.bf16 %v933
        %v1859 = vunpack.c.h.bf16 %v933
        %v1860 = vunpack.c.l.bf16 %v934
        %v1861 = vunpack.c.h.bf16 %v934
        %v1862 = vunpack.c.l.bf16 %v935
        %v1863 = vunpack.c.h.bf16 %v935
        %v1864 = vunpack.c.l.bf16 %v936
        %v1865 = vunpack.c.h.bf16 %v936
        %v1866 = vunpack.c.l.bf16 %v937
        %v1867 = vunpack.c.h.bf16 %v937
        %v1868 = vunpack.c.l.bf16 %v938
        %v1869 = vunpack.c.h.bf16 %v938
        %v1870 = vunpack.c.l.bf16 %v939
        %v1871 = vunpack.c.h.bf16 %v939
        %v1872 = vunpack.c.l.bf16 %v940
        %v1873 = vunpack.c.h.bf16 %v940
        %v1874 = vunpack.c.l.bf16 %v941
        %v1875 = vunpack.c.h.bf16 %v941
        %v1876 = vunpack.c.l.bf16 %v942
        %v1877 = vunpack.c.h.bf16 %v942
        %v1878 = vunpack.c.l.bf16 %v943
        %v1879 = vunpack.c.h.bf16 %v943
        %v1880 = vunpack.c.l.bf16 %v944
        %v1881 = vunpack.c.h.bf16 %v944
        %v1882 = vunpack.c.l.bf16 %v945
        %v1883 = vunpack.c.h.bf16 %v945
        %v1884 = vunpack.c.l.bf16 %v946
        %v1885 = vunpack.c.h.bf16 %v946
        %v1886 = vunpack.c.l.bf16 %v947
        %v1887 = vunpack.c.h.bf16 %v947
        %v1888 = vunpack.c.l.bf16 %v948
        %v1889 = vunpack.c.h.bf16 %v948
        %v1890 = vunpack.c.l.bf16 %v949
        %v1891 = vunpack.c.h.bf16 %v949
        %v1892 = vunpack.c.l.bf16 %v950
        %v1893 = vunpack.c.h.bf16 %v950
        %v1894 = vunpack.c.l.bf16 %v951
        %v1895 = vunpack.c.h.bf16 %v951
        %v1896 = vunpack.c.l.bf16 %v952
        %v1897 = vunpack.c.h.bf16 %v952
        %v1898 = vunpack.c.l.bf16 %v953
        %v1899 = vunpack.c.h.bf16 %v953
        %v1900 = vunpack.c.l.bf16 %v954
        %v1901 = vunpack.c.h.bf16 %v954
        %v1902 = vunpack.c.l.bf16 %v955
        %v1903 = vunpack.c.h.bf16 %v955
        %v1904 = vunpack.c.l.bf16 %v956
        %v1905 = vunpack.c.h.bf16 %v956
        %v1906 = vunpack.c.l.bf16 %v957
        %v1907 = vunpack.c.h.bf16 %v957
        %v1908 = vunpack.c.l.bf16 %v958
        %v1909 = vunpack.c.h.bf16 %v958
        %v1910 = vunpack.c.l.bf16 %v959
        %v1911 = vunpack.c.h.bf16 %v959
        %v1912 = vunpack.c.l.bf16 %v960
        %v1913 = vunpack.c.h.bf16 %v960
        %v1914 = vunpack.c.l.bf16 %v961
        %v1915 = vunpack.c.h.bf16 %v961
        %v1916 = vunpack.c.l.bf16 %v962
        %v1917 = vunpack.c.h.bf16 %v962
        %v1918 = vunpack.c.l.bf16 %v963
        %v1919 = vunpack.c.h.bf16 %v963
        %v1920 = vunpack.c.l.bf16 %v964
        %v1921 = vunpack.c.h.bf16 %v964
        %v1922 = vunpack.c.l.bf16 %v965
        %v1923 = vunpack.c.h.bf16 %v965
        %v1924 = vunpack.c.l.bf16 %v966
        %v1925 = vunpack.c.h.bf16 %v966
        %v1926 = vunpack.c.l.bf16 %v967
        %v1927 = vunpack.c.h.bf16 %v967
        %v1928 = vunpack.c.l.bf16 %v968
        %v1929 = vunpack.c.h.bf16 %v968
        %v1930 = vunpack.c.l.bf16 %v969
        %v1931 = vunpack.c.h.bf16 %v969
        %v1932 = vunpack.c.l.bf16 %v970
        %v1933 = vunpack.c.h.bf16 %v970
        %v1934 = vunpack.c.l.bf16 %v971
        %v1935 = vunpack.c.h.bf16 %v971
        %v1936 = vunpack.c.l.bf16 %v972
        %v1937 = vunpack.c.h.bf16 %v972
        %v1938 = vunpack.c.l.bf16 %v973
        %v1939 = vunpack.c.h.bf16 %v973
        %v1940 = vunpack.c.l.bf16 %v974
        %v1941 = vunpack.c.h.bf16 %v974
        %v1942 = vunpack.c.l.bf16 %v975
        %v1943 = vunpack.c.h.bf16 %v975
        %v1944 = vunpack.c.l.bf16 %v976
        %v1945 = vunpack.c.h.bf16 %v976
        %v1946 = vunpack.c.l.bf16 %v977
        %v1947 = vunpack.c.h.bf16 %v977
        %v1948 = vunpack.c.l.bf16 %v978
        %v1949 = vunpack.c.h.bf16 %v978
        %v1950 = vunpack.c.l.bf16 %v979
        %v1951 = vunpack.c.h.bf16 %v979
        %v1952 = vunpack.c.l.bf16 %v980
        %v1953 = vunpack.c.h.bf16 %v980
        %v1954 = vunpack.c.l.bf16 %v981
        %v1955 = vunpack.c.h.bf16 %v981
        %v1956 = vunpack.c.l.bf16 %v982
        %v1957 = vunpack.c.h.bf16 %v982
        %v1958 = vunpack.c.l.bf16 %v983
        %v1959 = vunpack.c.h.bf16 %v983
        %v1960 = vunpack.c.l.bf16 %v984
        %v1961 = vunpack.c.h.bf16 %v984
        %v1962 = vunpack.c.l.bf16 %v985
        %v1963 = vunpack.c.h.bf16 %v985
        %v1964 = vunpack.c.l.bf16 %v986
        %v1965 = vunpack.c.h.bf16 %v986
        %v1966 = vunpack.c.l.bf16 %v987
        %v1967 = vunpack.c.h.bf16 %v987
        %v1968 = vunpack.c.l.bf16 %v988
        %v1969 = vunpack.c.h.bf16 %v988
        %v1970 = vunpack.c.l.bf16 %v989
        %v1971 = vunpack.c.h.bf16 %v989
        %v1972 = vunpack.c.l.bf16 %v990
        %v1973 = vunpack.c.h.bf16 %v990
        %v1974 = vunpack.c.l.bf16 %v991
        %v1975 = vunpack.c.h.bf16 %v991
        %v1976 = vunpack.c.l.bf16 %v992
        %v1977 = vunpack.c.h.bf16 %v992
        %v1978 = vunpack.c.l.bf16 %v993
        %v1979 = vunpack.c.h.bf16 %v993
        %v1980 = vunpack.c.l.bf16 %v994
        %v1981 = vunpack.c.h.bf16 %v994
        %v1982 = vunpack.c.l.bf16 %v995
        %v1983 = vunpack.c.h.bf16 %v995
        %v1984 = vunpack.c.l.bf16 %v996
        %v1985 = vunpack.c.h.bf16 %v996
        %v1986 = vunpack.c.l.bf16 %v997
        %v1987 = vunpack.c.h.bf16 %v997
        %v1988 = vunpack.c.l.bf16 %v998
        %v1989 = vunpack.c.h.bf16 %v998
        %v1990 = vunpack.c.l.bf16 %v999
        %v1991 = vunpack.c.h.bf16 %v999
        %v1992 = vunpack.c.l.bf16 %v1000
        %v1993 = vunpack.c.h.bf16 %v1000
        %v1994 = vunpack.c.l.bf16 %v1001
        %v1995 = vunpack.c.h.bf16 %v1001
        %v1996 = vunpack.c.l.bf16 %v1002
        %v1997 = vunpack.c.h.bf16 %v1002
        %v1998 = vunpack.c.l.bf16 %v1003
        %v1999 = vunpack.c.h.bf16 %v1003
        %v2000 = vunpack.c.l.bf16 %v1004
        %v2001 = vunpack.c.h.bf16 %v1004
        %v2002 = vunpack.c.l.bf16 %v1005
        %v2003 = vunpack.c.h.bf16 %v1005
        %v2004 = vunpack.c.l.bf16 %v1006
        %v2005 = vunpack.c.h.bf16 %v1006
        %v2006 = vunpack.c.l.bf16 %v1007
        %v2007 = vunpack.c.h.bf16 %v1007
        %v2008 = vunpack.c.l.bf16 %v1008
        %v2009 = vunpack.c.h.bf16 %v1008
        %v2010 = vunpack.c.l.bf16 %v1009
        %v2011 = vunpack.c.h.bf16 %v1009
        %v2012 = vunpack.c.l.bf16 %v1010
        %v2013 = vunpack.c.h.bf16 %v1010
        %v2014 = vunpack.c.l.bf16 %v1011
        %v2015 = vunpack.c.h.bf16 %v1011
        %v2016 = vunpack.c.l.bf16 %v1012
        %v2017 = vunpack.c.h.bf16 %v1012
        %v2018 = vunpack.c.l.bf16 %v1013
        %v2019 = vunpack.c.h.bf16 %v1013
        %v2020 = vunpack.c.l.bf16 %v1014
        %v2021 = vunpack.c.h.bf16 %v1014
        %v2022 = vunpack.c.l.bf16 %v1015
        %v2023 = vunpack.c.h.bf16 %v1015
        %v2024 = vunpack.c.l.bf16 %v1016
        %v2025 = vunpack.c.h.bf16 %v1016
        %v2026 = vunpack.c.l.bf16 %v1017
        %v2027 = vunpack.c.h.bf16 %v1017
        %v2028 = vunpack.c.l.bf16 %v1018
        %v2029 = vunpack.c.h.bf16 %v1018
        %v2030 = vunpack.c.l.bf16 %v1019
        %v2031 = vunpack.c.h.bf16 %v1019
        %v2032 = vunpack.c.l.bf16 %v1020
        %v2033 = vunpack.c.h.bf16 %v1020
        %v2034 = vunpack.c.l.bf16 %v1021
        %v2035 = vunpack.c.h.bf16 %v1021
        %v2036 = vunpack.c.l.bf16 %v1022
        %v2037 = vunpack.c.h.bf16 %v1022
        %v2038 = vunpack.c.l.bf16 %v1023
        %v2039 = vunpack.c.h.bf16 %v1023
        %v2040 = vunpack.c.l.bf16 %v1024
        %v2041 = vunpack.c.h.bf16 %v1024
        %v2042 = vunpack.c.l.bf16 %v1025
        %v2043 = vunpack.c.h.bf16 %v1025
        %v2044 = vunpack.c.l.bf16 %v1026
        %v2045 = vunpack.c.h.bf16 %v1026
        %v2046 = vunpack.c.l.bf16 %v1027
        %v2047 = vunpack.c.h.bf16 %v1027
        %v2048 = vunpack.c.l.bf16 %v1028
        %v2049 = vunpack.c.h.bf16 %v1028
        %v2050 = vunpack.c.l.bf16 %v1029
        %v2051 = vunpack.c.h.bf16 %v1029
        %v2052 = vunpack.c.l.bf16 %v1030
        %v2053 = vunpack.c.h.bf16 %v1030
        %v2054 = vunpack.c.l.bf16 %v1031
        %v2055 = vunpack.c.h.bf16 %v1031
        %v2056 = vld [vmem:[%s0] sm:$0xff]
        %v2057 = vld [vmem:[%s0 + $0x8] sm:$0xff]
        %v2058 = vld [vmem:[%s0 + $0x10] sm:$0xff]
        %v2059 = vld [vmem:[%s0 + $0x18] sm:$0xff]
        %v2060 = vld [vmem:[%s0 + $0x20] sm:$0xff]
        %v2061 = vld [vmem:[%s0 + $0x28] sm:$0xff]
        %v2062 = vld [vmem:[%s0 + $0x30] sm:$0xff]
        %v2063 = vld [vmem:[%s0 + $0x38] sm:$0xff]
        %v2064 = vld [vmem:[%s0 + $0x40] sm:$0xff]
        %v2065 = vld [vmem:[%s0 + $0x48] sm:$0xff]
        %v2066 = vld [vmem:[%s0 + $0x50] sm:$0xff]
        %v2067 = vld [vmem:[%s0 + $0x58] sm:$0xff]
        %v2068 = vld [vmem:[%s0 + $0x60] sm:$0xff]
        %v2069 = vld [vmem:[%s0 + $0x68] sm:$0xff]
        %v2070 = vld [vmem:[%s0 + $0x70] sm:$0xff]
        %v2071 = vld [vmem:[%s0 + $0x78] sm:$0xff]
        %v2072 = vld [vmem:[%s0 + $0x80] sm:$0xff]
        %v2073 = vld [vmem:[%s0 + $0x88] sm:$0xff]
        %v2074 = vld [vmem:[%s0 + $0x90] sm:$0xff]
        %v2075 = vld [vmem:[%s0 + $0x98] sm:$0xff]
        %v2076 = vld [vmem:[%s0 + $0xa0] sm:$0xff]
        %v2077 = vld [vmem:[%s0 + $0xa8] sm:$0xff]
        %v2078 = vld [vmem:[%s0 + $0xb0] sm:$0xff]
        %v2079 = vld [vmem:[%s0 + $0xb8] sm:$0xff]
        %v2080 = vld [vmem:[%s0 + $0xc0] sm:$0xff]
        %v2081 = vld [vmem:[%s0 + $0xc8] sm:$0xff]
        %v2082 = vld [vmem:[%s0 + $0xd0] sm:$0xff]
        %v2083 = vld [vmem:[%s0 + $0xd8] sm:$0xff]
        %v2084 = vld [vmem:[%s0 + $0xe0] sm:$0xff]
        %v2085 = vld [vmem:[%s0 + $0xe8] sm:$0xff]
        %v2086 = vld [vmem:[%s0 + $0xf0] sm:$0xff]
        %v2087 = vld [vmem:[%s0 + $0xf8] sm:$0xff]
        %2088 = vmatprep.subr.mxu0 %v1033
        %2089 = vmatpush1.msra.mxu0 %v1032
        %2090 = vmatprep.subr.mxu0 %v1035
        %2091 = vmatpush1.msra.mxu0 %v1034
        %2092 = vmatprep.subr.mxu0 %v1037
        %2093 = vmatpush1.msra.mxu0 %v1036
        %2094 = vmatprep.subr.mxu0 %v1039
        %2095 = vmatpush1.msra.mxu0 %v1038
        %2096 = vmatprep.subr.mxu0 %v1041
        %2097 = vmatpush1.msra.mxu0 %v1040
        %2098 = vmatprep.subr.mxu0 %v1043
        %2099 = vmatpush1.msra.mxu0 %v1042
        %2100 = vmatprep.subr.mxu0 %v1045
        %2101 = vmatpush1.msra.mxu0 %v1044
        %2102 = vmatprep.subr.mxu0 %v1047
        %2103 = vmatpush1.msra.mxu0 %v1046
        %2104 = vmatprep.subr.mxu0 %v1049
        %2105 = vmatpush1.msra.mxu0 %v1048
        %2106 = vmatprep.subr.mxu0 %v1051
        %2107 = vmatpush1.msra.mxu0 %v1050
        %2108 = vmatprep.subr.mxu0 %v1053
        %2109 = vmatpush1.msra.mxu0 %v1052
        %2110 = vmatprep.subr.mxu0 %v1055
        %2111 = vmatpush1.msra.mxu0 %v1054
        %2112 = vmatprep.subr.mxu0 %v1057
        %2113 = vmatpush1.msra.mxu0 %v1056
        %2114 = vmatprep.subr.mxu0 %v1059
        %2115 = vmatpush1.msra.mxu0 %v1058
        %2116 = vmatprep.subr.mxu0 %v1061
        %2117 = vmatpush1.msra.mxu0 %v1060
        %2118 = vmatprep.subr.mxu0 %v1063
        %2119 = vmatpush1.msra.mxu0 %v1062
        %2120 = vmatprep.subr.mxu0 %v1065
        %2121 = vmatpush1.msra.mxu0 %v1064
        %2122 = vmatprep.subr.mxu0 %v1067
        %2123 = vmatpush1.msra.mxu0 %v1066
        %2124 = vmatprep.subr.mxu0 %v1069
        %2125 = vmatpush1.msra.mxu0 %v1068
        %2126 = vmatprep.subr.mxu0 %v1071
        %2127 = vmatpush1.msra.mxu0 %v1070
        %2128 = vmatprep.subr.mxu0 %v1073
        %2129 = vmatpush1.msra.mxu0 %v1072
        %2130 = vmatprep.subr.mxu0 %v1075
        %2131 = vmatpush1.msra.mxu0 %v1074
        %2132 = vmatprep.subr.mxu0 %v1077
        %2133 = vmatpush1.msra.mxu0 %v1076
        %2134 = vmatprep.subr.mxu0 %v1079
        %2135 = vmatpush1.msra.mxu0 %v1078
        %2136 = vmatprep.subr.mxu0 %v1081
        %2137 = vmatpush1.msra.mxu0 %v1080
        %2138 = vmatprep.subr.mxu0 %v1083
        %2139 = vmatpush1.msra.mxu0 %v1082
        %2140 = vmatprep.subr.mxu0 %v1085
        %2141 = vmatpush1.msra.mxu0 %v1084
        %2142 = vmatprep.subr.mxu0 %v1087
        %2143 = vmatpush1.msra.mxu0 %v1086
        %2144 = vmatprep.subr.mxu0 %v1089
        %2145 = vmatpush1.msra.mxu0 %v1088
        %2146 = vmatprep.subr.mxu0 %v1091
        %2147 = vmatpush1.msra.mxu0 %v1090
        %2148 = vmatprep.subr.mxu0 %v1093
        %2149 = vmatpush1.msra.mxu0 %v1092
        %2150 = vmatprep.subr.mxu0 %v1095
        %2151 = vmatpush1.msra.mxu0 %v1094
        %2152 = vmatprep.mubr.f32.mxu0 %v2057
        %2153 = vmatmul.mubr.f32.gmra.mrb[0].mxu0 %v2056
        %v2154 = vpop.f32.mrb[0].mxu0
        %v2155 = vadd.f32 0.0, %v2154
        %v2156 = vpop.f32.mrb[0].mxu0
        %v2157 = vadd.f32 0.0, %v2156
        %2158 = vdwg.mxu0
        %2159 = vmatprep.subr.mxu0 %v1097
        %2160 = vmatpush1.msra.mxu0 %v1096
        %2161 = vmatprep.subr.mxu0 %v1099
        %2162 = vmatpush1.msra.mxu0 %v1098
        %2163 = vmatprep.subr.mxu0 %v1101
        %2164 = vmatpush1.msra.mxu0 %v1100
        %2165 = vmatprep.subr.mxu0 %v1103
        %2166 = vmatpush1.msra.mxu0 %v1102
        %2167 = vmatprep.subr.mxu0 %v1105
        %2168 = vmatpush1.msra.mxu0 %v1104
        %2169 = vmatprep.subr.mxu0 %v1107
        %2170 = vmatpush1.msra.mxu0 %v1106
        %2171 = vmatprep.subr.mxu0 %v1109
        %2172 = vmatpush1.msra.mxu0 %v1108
        %2173 = vmatprep.subr.mxu0 %v1111
        %2174 = vmatpush1.msra.mxu0 %v1110
        %2175 = vmatprep.subr.mxu0 %v1113
        %2176 = vmatpush1.msra.mxu0 %v1112
        %2177 = vmatprep.subr.mxu0 %v1115
        %2178 = vmatpush1.msra.mxu0 %v1114
        %2179 = vmatprep.subr.mxu0 %v1117
        %2180 = vmatpush1.msra.mxu0 %v1116
        %2181 = vmatprep.subr.mxu0 %v1119
        %2182 = vmatpush1.msra.mxu0 %v1118
        %2183 = vmatprep.subr.mxu0 %v1121
        %2184 = vmatpush1.msra.mxu0 %v1120
        %2185 = vmatprep.subr.mxu0 %v1123
        %2186 = vmatpush1.msra.mxu0 %v1122
        %2187 = vmatprep.subr.mxu0 %v1125
        %2188 = vmatpush1.msra.mxu0 %v1124
        %2189 = vmatprep.subr.mxu0 %v1127
        %2190 = vmatpush1.msra.mxu0 %v1126
        %2191 = vmatprep.subr.mxu0 %v1129
        %2192 = vmatpush1.msra.mxu0 %v1128
        %2193 = vmatprep.subr.mxu0 %v1131
        %2194 = vmatpush1.msra.mxu0 %v1130
        %2195 = vmatprep.subr.mxu0 %v1133
        %2196 = vmatpush1.msra.mxu0 %v1132
        %2197 = vmatprep.subr.mxu0 %v1135
        %2198 = vmatpush1.msra.mxu0 %v1134
        %2199 = vmatprep.subr.mxu0 %v1137
        %2200 = vmatpush1.msra.mxu0 %v1136
        %2201 = vmatprep.subr.mxu0 %v1139
        %2202 = vmatpush1.msra.mxu0 %v1138
        %2203 = vmatprep.subr.mxu0 %v1141
        %2204 = vmatpush1.msra.mxu0 %v1140
        %2205 = vmatprep.subr.mxu0 %v1143
        %2206 = vmatpush1.msra.mxu0 %v1142
        %2207 = vmatprep.subr.mxu0 %v1145
        %2208 = vmatpush1.msra.mxu0 %v1144
        %2209 = vmatprep.subr.mxu0 %v1147
        %2210 = vmatpush1.msra.mxu0 %v1146
        %2211 = vmatprep.subr.mxu0 %v1149
        %2212 = vmatpush1.msra.mxu0 %v1148
        %2213 = vmatprep.subr.mxu0 %v1151
        %2214 = vmatpush1.msra.mxu0 %v1150
        %2215 = vmatprep.subr.mxu0 %v1153
        %2216 = vmatpush1.msra.mxu0 %v1152
        %2217 = vmatprep.subr.mxu0 %v1155
        %2218 = vmatpush1.msra.mxu0 %v1154
        %2219 = vmatprep.subr.mxu0 %v1157
        %2220 = vmatpush1.msra.mxu0 %v1156
        %2221 = vmatprep.subr.mxu0 %v1159
        %2222 = vmatpush1.msra.mxu0 %v1158
        %2223 = vmatprep.mubr.f32.mxu0 %v2059
        %2224 = vmatmul.mubr.f32.gmra.mrb[0].mxu0 %v2058
        %v2225 = vpop.f32.mrb[0].mxu0
        %v2226 = vadd.f32 %v2155, %v2225
        %v2227 = vpop.f32.mrb[0].mxu0
        %v2228 = vadd.f32 %v2157, %v2227
        %2229 = vdwg.mxu0
        %2230 = vmatprep.subr.mxu0 %v1161
        %2231 = vmatpush1.msra.mxu0 %v1160
        %2232 = vmatprep.subr.mxu0 %v1163
        %2233 = vmatpush1.msra.mxu0 %v1162
        %2234 = vmatprep.subr.mxu0 %v1165
        %2235 = vmatpush1.msra.mxu0 %v1164
        %2236 = vmatprep.subr.mxu0 %v1167
        %2237 = vmatpush1.msra.mxu0 %v1166
        %2238 = vmatprep.subr.mxu0 %v1169
        %2239 = vmatpush1.msra.mxu0 %v1168
        %2240 = vmatprep.subr.mxu0 %v1171
        %2241 = vmatpush1.msra.mxu0 %v1170
        %2242 = vmatprep.subr.mxu0 %v1173
        %2243 = vmatpush1.msra.mxu0 %v1172
        %2244 = vmatprep.subr.mxu0 %v1175
        %2245 = vmatpush1.msra.mxu0 %v1174
        %2246 = vmatprep.subr.mxu0 %v1177
        %2247 = vmatpush1.msra.mxu0 %v1176
        %2248 = vmatprep.subr.mxu0 %v1179
        %2249 = vmatpush1.msra.mxu0 %v1178
        %2250 = vmatprep.subr.mxu0 %v1181
        %2251 = vmatpush1.msra.mxu0 %v1180
        %2252 = vmatprep.subr.mxu0 %v1183
        %2253 = vmatpush1.msra.mxu0 %v1182
        %2254 = vmatprep.subr.mxu0 %v1185
        %2255 = vmatpush1.msra.mxu0 %v1184
        %2256 = vmatprep.subr.mxu0 %v1187
        %2257 = vmatpush1.msra.mxu0 %v1186
        %2258 = vmatprep.subr.mxu0 %v1189
        %2259 = vmatpush1.msra.mxu0 %v1188
        %2260 = vmatprep.subr.mxu0 %v1191
        %2261 = vmatpush1.msra.mxu0 %v1190
        %2262 = vmatprep.subr.mxu0 %v1193
        %2263 = vmatpush1.msra.mxu0 %v1192
        %2264 = vmatprep.subr.mxu0 %v1195
        %2265 = vmatpush1.msra.mxu0 %v1194
        %2266 = vmatprep.subr.mxu0 %v1197
        %2267 = vmatpush1.msra.mxu0 %v1196
        %2268 = vmatprep.subr.mxu0 %v1199
        %2269 = vmatpush1.msra.mxu0 %v1198
        %2270 = vmatprep.subr.mxu0 %v1201
        %2271 = vmatpush1.msra.mxu0 %v1200
        %2272 = vmatprep.subr.mxu0 %v1203
        %2273 = vmatpush1.msra.mxu0 %v1202
        %2274 = vmatprep.subr.mxu0 %v1205
        %2275 = vmatpush1.msra.mxu0 %v1204
        %2276 = vmatprep.subr.mxu0 %v1207
        %2277 = vmatpush1.msra.mxu0 %v1206
        %2278 = vmatprep.subr.mxu0 %v1209
        %2279 = vmatpush1.msra.mxu0 %v1208
        %2280 = vmatprep.subr.mxu0 %v1211
        %2281 = vmatpush1.msra.mxu0 %v1210
        %2282 = vmatprep.subr.mxu0 %v1213
        %2283 = vmatpush1.msra.mxu0 %v1212
        %2284 = vmatprep.subr.mxu0 %v1215
        %2285 = vmatpush1.msra.mxu0 %v1214
        %2286 = vmatprep.subr.mxu0 %v1217
        %2287 = vmatpush1.msra.mxu0 %v1216
        %2288 = vmatprep.subr.mxu0 %v1219
        %2289 = vmatpush1.msra.mxu0 %v1218
        %2290 = vmatprep.subr.mxu0 %v1221
        %2291 = vmatpush1.msra.mxu0 %v1220
        %2292 = vmatprep.subr.mxu0 %v1223
        %2293 = vmatpush1.msra.mxu0 %v1222
        %2294 = vmatprep.mubr.f32.mxu0 %v2061
        %2295 = vmatmul.mubr.f32.gmra.mrb[0].mxu0 %v2060
        %v2296 = vpop.f32.mrb[0].mxu0
        %v2297 = vadd.f32 %v2226, %v2296
        %v2298 = vpop.f32.mrb[0].mxu0
        %v2299 = vadd.f32 %v2228, %v2298
        %2300 = vdwg.mxu0
        %2301 = vmatprep.subr.mxu0 %v1225
        %2302 = vmatpush1.msra.mxu0 %v1224
        %2303 = vmatprep.subr.mxu0 %v1227
        %2304 = vmatpush1.msra.mxu0 %v1226
        %2305 = vmatprep.subr.mxu0 %v1229
        %2306 = vmatpush1.msra.mxu0 %v1228
        %2307 = vmatprep.subr.mxu0 %v1231
        %2308 = vmatpush1.msra.mxu0 %v1230
        %2309 = vmatprep.subr.mxu0 %v1233
        %2310 = vmatpush1.msra.mxu0 %v1232
        %2311 = vmatprep.subr.mxu0 %v1235
        %2312 = vmatpush1.msra.mxu0 %v1234
        %2313 = vmatprep.subr.mxu0 %v1237
        %2314 = vmatpush1.msra.mxu0 %v1236
        %2315 = vmatprep.subr.mxu0 %v1239
        %2316 = vmatpush1.msra.mxu0 %v1238
        %2317 = vmatprep.subr.mxu0 %v1241
        %2318 = vmatpush1.msra.mxu0 %v1240
        %2319 = vmatprep.subr.mxu0 %v1243
        %2320 = vmatpush1.msra.mxu0 %v1242
        %2321 = vmatprep.subr.mxu0 %v1245
        %2322 = vmatpush1.msra.mxu0 %v1244
        %2323 = vmatprep.subr.mxu0 %v1247
        %2324 = vmatpush1.msra.mxu0 %v1246
        %2325 = vmatprep.subr.mxu0 %v1249
        %2326 = vmatpush1.msra.mxu0 %v1248
        %2327 = vmatprep.subr.mxu0 %v1251
        %2328 = vmatpush1.msra.mxu0 %v1250
        %2329 = vmatprep.subr.mxu0 %v1253
        %2330 = vmatpush1.msra.mxu0 %v1252
        %2331 = vmatprep.subr.mxu0 %v1255
        %2332 = vmatpush1.msra.mxu0 %v1254
        %2333 = vmatprep.subr.mxu0 %v1257
        %2334 = vmatpush1.msra.mxu0 %v1256
        %2335 = vmatprep.subr.mxu0 %v1259
        %2336 = vmatpush1.msra.mxu0 %v1258
        %2337 = vmatprep.subr.mxu0 %v1261
        %2338 = vmatpush1.msra.mxu0 %v1260
        %2339 = vmatprep.subr.mxu0 %v1263
        %2340 = vmatpush1.msra.mxu0 %v1262
        %2341 = vmatprep.subr.mxu0 %v1265
        %2342 = vmatpush1.msra.mxu0 %v1264
        %2343 = vmatprep.subr.mxu0 %v1267
        %2344 = vmatpush1.msra.mxu0 %v1266
        %2345 = vmatprep.subr.mxu0 %v1269
        %2346 = vmatpush1.msra.mxu0 %v1268
        %2347 = vmatprep.subr.mxu0 %v1271
        %2348 = vmatpush1.msra.mxu0 %v1270
        %2349 = vmatprep.subr.mxu0 %v1273
        %2350 = vmatpush1.msra.mxu0 %v1272
        %2351 = vmatprep.subr.mxu0 %v1275
        %2352 = vmatpush1.msra.mxu0 %v1274
        %2353 = vmatprep.subr.mxu0 %v1277
        %2354 = vmatpush1.msra.mxu0 %v1276
        %2355 = vmatprep.subr.mxu0 %v1279
        %2356 = vmatpush1.msra.mxu0 %v1278
        %2357 = vmatprep.subr.mxu0 %v1281
        %2358 = vmatpush1.msra.mxu0 %v1280
        %2359 = vmatprep.subr.mxu0 %v1283
        %2360 = vmatpush1.msra.mxu0 %v1282
        %2361 = vmatprep.subr.mxu0 %v1285
        %2362 = vmatpush1.msra.mxu0 %v1284
        %2363 = vmatprep.subr.mxu0 %v1287
        %2364 = vmatpush1.msra.mxu0 %v1286
        %2365 = vmatprep.mubr.f32.mxu0 %v2063
        %2366 = vmatmul.mubr.f32.gmra.mrb[0].mxu0 %v2062
        %v2367 = vpop.f32.mrb[0].mxu0
        %v2368 = vadd.f32 %v2297, %v2367
        %v2369 = vpop.f32.mrb[0].mxu0
        %v2370 = vadd.f32 %v2299, %v2369
        %2371 = vdwg.mxu0
        %2372 = vmatprep.subr.mxu0 %v1289
        %2373 = vmatpush1.msra.mxu0 %v1288
        %2374 = vmatprep.subr.mxu0 %v1291
        %2375 = vmatpush1.msra.mxu0 %v1290
        %2376 = vmatprep.subr.mxu0 %v1293
        %2377 = vmatpush1.msra.mxu0 %v1292
        %2378 = vmatprep.subr.mxu0 %v1295
        %2379 = vmatpush1.msra.mxu0 %v1294
        %2380 = vmatprep.subr.mxu0 %v1297
        %2381 = vmatpush1.msra.mxu0 %v1296
        %2382 = vmatprep.subr.mxu0 %v1299
        %2383 = vmatpush1.msra.mxu0 %v1298
        %2384 = vmatprep.subr.mxu0 %v1301
        %2385 = vmatpush1.msra.mxu0 %v1300
        %2386 = vmatprep.subr.mxu0 %v1303
        %2387 = vmatpush1.msra.mxu0 %v1302
        %2388 = vmatprep.subr.mxu0 %v1305
        %2389 = vmatpush1.msra.mxu0 %v1304
        %2390 = vmatprep.subr.mxu0 %v1307
        %2391 = vmatpush1.msra.mxu0 %v1306
        %2392 = vmatprep.subr.mxu0 %v1309
        %2393 = vmatpush1.msra.mxu0 %v1308
        %2394 = vmatprep.subr.mxu0 %v1311
        %2395 = vmatpush1.msra.mxu0 %v1310
        %2396 = vmatprep.subr.mxu0 %v1313
        %2397 = vmatpush1.msra.mxu0 %v1312
        %2398 = vmatprep.subr.mxu0 %v1315
        %2399 = vmatpush1.msra.mxu0 %v1314
        %2400 = vmatprep.subr.mxu0 %v1317
        %2401 = vmatpush1.msra.mxu0 %v1316
        %2402 = vmatprep.subr.mxu0 %v1319
        %2403 = vmatpush1.msra.mxu0 %v1318
        %2404 = vmatprep.subr.mxu0 %v1321
        %2405 = vmatpush1.msra.mxu0 %v1320
        %2406 = vmatprep.subr.mxu0 %v1323
        %2407 = vmatpush1.msra.mxu0 %v1322
        %2408 = vmatprep.subr.mxu0 %v1325
        %2409 = vmatpush1.msra.mxu0 %v1324
        %2410 = vmatprep.subr.mxu0 %v1327
        %2411 = vmatpush1.msra.mxu0 %v1326
        %2412 = vmatprep.subr.mxu0 %v1329
        %2413 = vmatpush1.msra.mxu0 %v1328
        %2414 = vmatprep.subr.mxu0 %v1331
        %2415 = vmatpush1.msra.mxu0 %v1330
        %2416 = vmatprep.subr.mxu0 %v1333
        %2417 = vmatpush1.msra.mxu0 %v1332
        %2418 = vmatprep.subr.mxu0 %v1335
        %2419 = vmatpush1.msra.mxu0 %v1334
        %2420 = vmatprep.subr.mxu0 %v1337
        %2421 = vmatpush1.msra.mxu0 %v1336
        %2422 = vmatprep.subr.mxu0 %v1339
        %2423 = vmatpush1.msra.mxu0 %v1338
        %2424 = vmatprep.subr.mxu0 %v1341
        %2425 = vmatpush1.msra.mxu0 %v1340
        %2426 = vmatprep.subr.mxu0 %v1343
        %2427 = vmatpush1.msra.mxu0 %v1342
        %2428 = vmatprep.subr.mxu0 %v1345
        %2429 = vmatpush1.msra.mxu0 %v1344
        %2430 = vmatprep.subr.mxu0 %v1347
        %2431 = vmatpush1.msra.mxu0 %v1346
        %2432 = vmatprep.subr.mxu0 %v1349
        %2433 = vmatpush1.msra.mxu0 %v1348
        %2434 = vmatprep.subr.mxu0 %v1351
        %2435 = vmatpush1.msra.mxu0 %v1350
        %2436 = vmatprep.mubr.f32.mxu0 %v2065
        %2437 = vmatmul.mubr.f32.gmra.mrb[0].mxu0 %v2064
        %v2438 = vpop.f32.mrb[0].mxu0
        %v2439 = vadd.f32 %v2368, %v2438
        %v2440 = vpop.f32.mrb[0].mxu0
        %v2441 = vadd.f32 %v2370, %v2440
        %2442 = vdwg.mxu0
        %2443 = vmatprep.subr.mxu0 %v1353
        %2444 = vmatpush1.msra.mxu0 %v1352
        %2445 = vmatprep.subr.mxu0 %v1355
        %2446 = vmatpush1.msra.mxu0 %v1354
        %2447 = vmatprep.subr.mxu0 %v1357
        %2448 = vmatpush1.msra.mxu0 %v1356
        %2449 = vmatprep.subr.mxu0 %v1359
        %2450 = vmatpush1.msra.mxu0 %v1358
        %2451 = vmatprep.subr.mxu0 %v1361
        %2452 = vmatpush1.msra.mxu0 %v1360
        %2453 = vmatprep.subr.mxu0 %v1363
        %2454 = vmatpush1.msra.mxu0 %v1362
        %2455 = vmatprep.subr.mxu0 %v1365
        %2456 = vmatpush1.msra.mxu0 %v1364
        %2457 = vmatprep.subr.mxu0 %v1367
        %2458 = vmatpush1.msra.mxu0 %v1366
        %2459 = vmatprep.subr.mxu0 %v1369
        %2460 = vmatpush1.msra.mxu0 %v1368
        %2461 = vmatprep.subr.mxu0 %v1371
        %2462 = vmatpush1.msra.mxu0 %v1370
        %2463 = vmatprep.subr.mxu0 %v1373
        %2464 = vmatpush1.msra.mxu0 %v1372
        %2465 = vmatprep.subr.mxu0 %v1375
        %2466 = vmatpush1.msra.mxu0 %v1374
        %2467 = vmatprep.subr.mxu0 %v1377
        %2468 = vmatpush1.msra.mxu0 %v1376
        %2469 = vmatprep.subr.mxu0 %v1379
        %2470 = vmatpush1.msra.mxu0 %v1378
        %2471 = vmatprep.subr.mxu0 %v1381
        %2472 = vmatpush1.msra.mxu0 %v1380
        %2473 = vmatprep.subr.mxu0 %v1383
        %2474 = vmatpush1.msra.mxu0 %v1382
        %2475 = vmatprep.subr.mxu0 %v1385
        %2476 = vmatpush1.msra.mxu0 %v1384
        %2477 = vmatprep.subr.mxu0 %v1387
        %2478 = vmatpush1.msra.mxu0 %v1386
        %2479 = vmatprep.subr.mxu0 %v1389
        %2480 = vmatpush1.msra.mxu0 %v1388
        %2481 = vmatprep.subr.mxu0 %v1391
        %2482 = vmatpush1.msra.mxu0 %v1390
        %2483 = vmatprep.subr.mxu0 %v1393
        %2484 = vmatpush1.msra.mxu0 %v1392
        %2485 = vmatprep.subr.mxu0 %v1395
        %2486 = vmatpush1.msra.mxu0 %v1394
        %2487 = vmatprep.subr.mxu0 %v1397
        %2488 = vmatpush1.msra.mxu0 %v1396
        %2489 = vmatprep.subr.mxu0 %v1399
        %2490 = vmatpush1.msra.mxu0 %v1398
        %2491 = vmatprep.subr.mxu0 %v1401
        %2492 = vmatpush1.msra.mxu0 %v1400
        %2493 = vmatprep.subr.mxu0 %v1403
        %2494 = vmatpush1.msra.mxu0 %v1402
        %2495 = vmatprep.subr.mxu0 %v1405
        %2496 = vmatpush1.msra.mxu0 %v1404
        %2497 = vmatprep.subr.mxu0 %v1407
        %2498 = vmatpush1.msra.mxu0 %v1406
        %2499 = vmatprep.subr.mxu0 %v1409
        %2500 = vmatpush1.msra.mxu0 %v1408
        %2501 = vmatprep.subr.mxu0 %v1411
        %2502 = vmatpush1.msra.mxu0 %v1410
        %2503 = vmatprep.subr.mxu0 %v1413
        %2504 = vmatpush1.msra.mxu0 %v1412
        %2505 = vmatprep.subr.mxu0 %v1415
        %2506 = vmatpush1.msra.mxu0 %v1414
        %2507 = vmatprep.mubr.f32.mxu0 %v2067
        %2508 = vmatmul.mubr.f32.gmra.mrb[0].mxu0 %v2066
        %v2509 = vpop.f32.mrb[0].mxu0
        %v2510 = vadd.f32 %v2439, %v2509
        %v2511 = vpop.f32.mrb[0].mxu0
        %v2512 = vadd.f32 %v2441, %v2511
        %2513 = vdwg.mxu0
        %2514 = vmatprep.subr.mxu0 %v1417
        %2515 = vmatpush1.msra.mxu0 %v1416
        %2516 = vmatprep.subr.mxu0 %v1419
        %2517 = vmatpush1.msra.mxu0 %v1418
        %2518 = vmatprep.subr.mxu0 %v1421
        %2519 = vmatpush1.msra.mxu0 %v1420
        %2520 = vmatprep.subr.mxu0 %v1423
        %2521 = vmatpush1.msra.mxu0 %v1422
        %2522 = vmatprep.subr.mxu0 %v1425
        %2523 = vmatpush1.msra.mxu0 %v1424
        %2524 = vmatprep.subr.mxu0 %v1427
        %2525 = vmatpush1.msra.mxu0 %v1426
        %2526 = vmatprep.subr.mxu0 %v1429
        %2527 = vmatpush1.msra.mxu0 %v1428
        %2528 = vmatprep.subr.mxu0 %v1431
        %2529 = vmatpush1.msra.mxu0 %v1430
        %2530 = vmatprep.subr.mxu0 %v1433
        %2531 = vmatpush1.msra.mxu0 %v1432
        %2532 = vmatprep.subr.mxu0 %v1435
        %2533 = vmatpush1.msra.mxu0 %v1434
        %2534 = vmatprep.subr.mxu0 %v1437
        %2535 = vmatpush1.msra.mxu0 %v1436
        %2536 = vmatprep.subr.mxu0 %v1439
        %2537 = vmatpush1.msra.mxu0 %v1438
        %2538 = vmatprep.subr.mxu0 %v1441
        %2539 = vmatpush1.msra.mxu0 %v1440
        %2540 = vmatprep.subr.mxu0 %v1443
        %2541 = vmatpush1.msra.mxu0 %v1442
        %2542 = vmatprep.subr.mxu0 %v1445
        %2543 = vmatpush1.msra.mxu0 %v1444
        %2544 = vmatprep.subr.mxu0 %v1447
        %2545 = vmatpush1.msra.mxu0 %v1446
        %2546 = vmatprep.subr.mxu0 %v1449
        %2547 = vmatpush1.msra.mxu0 %v1448
        %2548 = vmatprep.subr.mxu0 %v1451
        %2549 = vmatpush1.msra.mxu0 %v1450
        %2550 = vmatprep.subr.mxu0 %v1453
        %2551 = vmatpush1.msra.mxu0 %v1452
        %2552 = vmatprep.subr.mxu0 %v1455
        %2553 = vmatpush1.msra.mxu0 %v1454
        %2554 = vmatprep.subr.mxu0 %v1457
        %2555 = vmatpush1.msra.mxu0 %v1456
        %2556 = vmatprep.subr.mxu0 %v1459
        %2557 = vmatpush1.msra.mxu0 %v1458
        %2558 = vmatprep.subr.mxu0 %v1461
        %2559 = vmatpush1.msra.mxu0 %v1460
        %2560 = vmatprep.subr.mxu0 %v1463
        %2561 = vmatpush1.msra.mxu0 %v1462
        %2562 = vmatprep.subr.mxu0 %v1465
        %2563 = vmatpush1.msra.mxu0 %v1464
        %2564 = vmatprep.subr.mxu0 %v1467
        %2565 = vmatpush1.msra.mxu0 %v1466
        %2566 = vmatprep.subr.mxu0 %v1469
        %2567 = vmatpush1.msra.mxu0 %v1468
        %2568 = vmatprep.subr.mxu0 %v1471
        %2569 = vmatpush1.msra.mxu0 %v1470
        %2570 = vmatprep.subr.mxu0 %v1473
        %2571 = vmatpush1.msra.mxu0 %v1472
        %2572 = vmatprep.subr.mxu0 %v1475
        %2573 = vmatpush1.msra.mxu0 %v1474
        %2574 = vmatprep.subr.mxu0 %v1477
        %2575 = vmatpush1.msra.mxu0 %v1476
        %2576 = vmatprep.subr.mxu0 %v1479
        %2577 = vmatpush1.msra.mxu0 %v1478
        %2578 = vmatprep.mubr.f32.mxu0 %v2069
        %2579 = vmatmul.mubr.f32.gmra.mrb[0].mxu0 %v2068
        %v2580 = vpop.f32.mrb[0].mxu0
        %v2581 = vadd.f32 %v2510, %v2580
        %v2582 = vpop.f32.mrb[0].mxu0
        %v2583 = vadd.f32 %v2512, %v2582
        %2584 = vdwg.mxu0
        %2585 = vmatprep.subr.mxu0 %v1481
        %2586 = vmatpush1.msra.mxu0 %v1480
        %2587 = vmatprep.subr.mxu0 %v1483
        %2588 = vmatpush1.msra.mxu0 %v1482
        %2589 = vmatprep.subr.mxu0 %v1485
        %2590 = vmatpush1.msra.mxu0 %v1484
        %2591 = vmatprep.subr.mxu0 %v1487
        %2592 = vmatpush1.msra.mxu0 %v1486
        %2593 = vmatprep.subr.mxu0 %v1489
        %2594 = vmatpush1.msra.mxu0 %v1488
        %2595 = vmatprep.subr.mxu0 %v1491
        %2596 = vmatpush1.msra.mxu0 %v1490
        %2597 = vmatprep.subr.mxu0 %v1493
        %2598 = vmatpush1.msra.mxu0 %v1492
        %2599 = vmatprep.subr.mxu0 %v1495
        %2600 = vmatpush1.msra.mxu0 %v1494
        %2601 = vmatprep.subr.mxu0 %v1497
        %2602 = vmatpush1.msra.mxu0 %v1496
        %2603 = vmatprep.subr.mxu0 %v1499
        %2604 = vmatpush1.msra.mxu0 %v1498
        %2605 = vmatprep.subr.mxu0 %v1501
        %2606 = vmatpush1.msra.mxu0 %v1500
        %2607 = vmatprep.subr.mxu0 %v1503
        %2608 = vmatpush1.msra.mxu0 %v1502
        %2609 = vmatprep.subr.mxu0 %v1505
        %2610 = vmatpush1.msra.mxu0 %v1504
        %2611 = vmatprep.subr.mxu0 %v1507
        %2612 = vmatpush1.msra.mxu0 %v1506
        %2613 = vmatprep.subr.mxu0 %v1509
        %2614 = vmatpush1.msra.mxu0 %v1508
        %2615 = vmatprep.subr.mxu0 %v1511
        %2616 = vmatpush1.msra.mxu0 %v1510
        %2617 = vmatprep.subr.mxu0 %v1513
        %2618 = vmatpush1.msra.mxu0 %v1512
        %2619 = vmatprep.subr.mxu0 %v1515
        %2620 = vmatpush1.msra.mxu0 %v1514
        %2621 = vmatprep.subr.mxu0 %v1517
        %2622 = vmatpush1.msra.mxu0 %v1516
        %2623 = vmatprep.subr.mxu0 %v1519
        %2624 = vmatpush1.msra.mxu0 %v1518
        %2625 = vmatprep.subr.mxu0 %v1521
        %2626 = vmatpush1.msra.mxu0 %v1520
        %2627 = vmatprep.subr.mxu0 %v1523
        %2628 = vmatpush1.msra.mxu0 %v1522
        %2629 = vmatprep.subr.mxu0 %v1525
        %2630 = vmatpush1.msra.mxu0 %v1524
        %2631 = vmatprep.subr.mxu0 %v1527
        %2632 = vmatpush1.msra.mxu0 %v1526
        %2633 = vmatprep.subr.mxu0 %v1529
        %2634 = vmatpush1.msra.mxu0 %v1528
        %2635 = vmatprep.subr.mxu0 %v1531
        %2636 = vmatpush1.msra.mxu0 %v1530
        %2637 = vmatprep.subr.mxu0 %v1533
        %2638 = vmatpush1.msra.mxu0 %v1532
        %2639 = vmatprep.subr.mxu0 %v1535
        %2640 = vmatpush1.msra.mxu0 %v1534
        %2641 = vmatprep.subr.mxu0 %v1537
        %2642 = vmatpush1.msra.mxu0 %v1536
        %2643 = vmatprep.subr.mxu0 %v1539
        %2644 = vmatpush1.msra.mxu0 %v1538
        %2645 = vmatprep.subr.mxu0 %v1541
        %2646 = vmatpush1.msra.mxu0 %v1540
        %2647 = vmatprep.subr.mxu0 %v1543
        %2648 = vmatpush1.msra.mxu0 %v1542
        %2649 = vmatprep.mubr.f32.mxu0 %v2071
        %2650 = vmatmul.mubr.f32.gmra.mrb[0].mxu0 %v2070
        %v2651 = vpop.f32.mrb[0].mxu0
        %v2652 = vadd.f32 %v2581, %v2651
        %v2653 = vpop.f32.mrb[0].mxu0
        %v2654 = vadd.f32 %v2583, %v2653
        %2655 = vdwg.mxu0
        %2656 = vmatprep.subr.mxu0 %v1545
        %2657 = vmatpush1.msra.mxu0 %v1544
        %2658 = vmatprep.subr.mxu0 %v1547
        %2659 = vmatpush1.msra.mxu0 %v1546
        %2660 = vmatprep.subr.mxu0 %v1549
        %2661 = vmatpush1.msra.mxu0 %v1548
        %2662 = vmatprep.subr.mxu0 %v1551
        %2663 = vmatpush1.msra.mxu0 %v1550
        %2664 = vmatprep.subr.mxu0 %v1553
        %2665 = vmatpush1.msra.mxu0 %v1552
        %2666 = vmatprep.subr.mxu0 %v1555
        %2667 = vmatpush1.msra.mxu0 %v1554
        %2668 = vmatprep.subr.mxu0 %v1557
        %2669 = vmatpush1.msra.mxu0 %v1556
        %2670 = vmatprep.subr.mxu0 %v1559
        %2671 = vmatpush1.msra.mxu0 %v1558
        %2672 = vmatprep.subr.mxu0 %v1561
        %2673 = vmatpush1.msra.mxu0 %v1560
        %2674 = vmatprep.subr.mxu0 %v1563
        %2675 = vmatpush1.msra.mxu0 %v1562
        %2676 = vmatprep.subr.mxu0 %v1565
        %2677 = vmatpush1.msra.mxu0 %v1564
        %2678 = vmatprep.subr.mxu0 %v1567
        %2679 = vmatpush1.msra.mxu0 %v1566
        %2680 = vmatprep.subr.mxu0 %v1569
        %2681 = vmatpush1.msra.mxu0 %v1568
        %2682 = vmatprep.subr.mxu0 %v1571
        %2683 = vmatpush1.msra.mxu0 %v1570
        %2684 = vmatprep.subr.mxu0 %v1573
        %2685 = vmatpush1.msra.mxu0 %v1572
        %2686 = vmatprep.subr.mxu0 %v1575
        %2687 = vmatpush1.msra.mxu0 %v1574
        %2688 = vmatprep.subr.mxu0 %v1577
        %2689 = vmatpush1.msra.mxu0 %v1576
        %2690 = vmatprep.subr.mxu0 %v1579
        %2691 = vmatpush1.msra.mxu0 %v1578
        %2692 = vmatprep.subr.mxu0 %v1581
        %2693 = vmatpush1.msra.mxu0 %v1580
        %2694 = vmatprep.subr.mxu0 %v1583
        %2695 = vmatpush1.msra.mxu0 %v1582
        %2696 = vmatprep.subr.mxu0 %v1585
        %2697 = vmatpush1.msra.mxu0 %v1584
        %2698 = vmatprep.subr.mxu0 %v1587
        %2699 = vmatpush1.msra.mxu0 %v1586
        %2700 = vmatprep.subr.mxu0 %v1589
        %2701 = vmatpush1.msra.mxu0 %v1588
        %2702 = vmatprep.subr.mxu0 %v1591
        %2703 = vmatpush1.msra.mxu0 %v1590
        %2704 = vmatprep.subr.mxu0 %v1593
        %2705 = vmatpush1.msra.mxu0 %v1592
        %2706 = vmatprep.subr.mxu0 %v1595
        %2707 = vmatpush1.msra.mxu0 %v1594
        %2708 = vmatprep.subr.mxu0 %v1597
        %2709 = vmatpush1.msra.mxu0 %v1596
        %2710 = vmatprep.subr.mxu0 %v1599
        %2711 = vmatpush1.msra.mxu0 %v1598
        %2712 = vmatprep.subr.mxu0 %v1601
        %2713 = vmatpush1.msra.mxu0 %v1600
        %2714 = vmatprep.subr.mxu0 %v1603
        %2715 = vmatpush1.msra.mxu0 %v1602
        %2716 = vmatprep.subr.mxu0 %v1605
        %2717 = vmatpush1.msra.mxu0 %v1604
        %2718 = vmatprep.subr.mxu0 %v1607
        %2719 = vmatpush1.msra.mxu0 %v1606
        %2720 = vmatprep.mubr.f32.mxu0 %v2073
        %2721 = vmatmul.mubr.f32.gmra.mrb[0].mxu0 %v2072
        %v2722 = vpop.f32.mrb[0].mxu0
        %v2723 = vadd.f32 %v2652, %v2722
        %v2724 = vpop.f32.mrb[0].mxu0
        %v2725 = vadd.f32 %v2654, %v2724
        %2726 = vdwg.mxu0
        %2727 = vmatprep.subr.mxu0 %v1609
        %2728 = vmatpush1.msra.mxu0 %v1608
        %2729 = vmatprep.subr.mxu0 %v1611
        %2730 = vmatpush1.msra.mxu0 %v1610
        %2731 = vmatprep.subr.mxu0 %v1613
        %2732 = vmatpush1.msra.mxu0 %v1612
        %2733 = vmatprep.subr.mxu0 %v1615
        %2734 = vmatpush1.msra.mxu0 %v1614
        %2735 = vmatprep.subr.mxu0 %v1617
        %2736 = vmatpush1.msra.mxu0 %v1616
        %2737 = vmatprep.subr.mxu0 %v1619
        %2738 = vmatpush1.msra.mxu0 %v1618
        %2739 = vmatprep.subr.mxu0 %v1621
        %2740 = vmatpush1.msra.mxu0 %v1620
        %2741 = vmatprep.subr.mxu0 %v1623
        %2742 = vmatpush1.msra.mxu0 %v1622
        %2743 = vmatprep.subr.mxu0 %v1625
        %2744 = vmatpush1.msra.mxu0 %v1624
        %2745 = vmatprep.subr.mxu0 %v1627
        %2746 = vmatpush1.msra.mxu0 %v1626
        %2747 = vmatprep.subr.mxu0 %v1629
        %2748 = vmatpush1.msra.mxu0 %v1628
        %2749 = vmatprep.subr.mxu0 %v1631
        %2750 = vmatpush1.msra.mxu0 %v1630
        %2751 = vmatprep.subr.mxu0 %v1633
        %2752 = vmatpush1.msra.mxu0 %v1632
        %2753 = vmatprep.subr.mxu0 %v1635
        %2754 = vmatpush1.msra.mxu0 %v1634
        %2755 = vmatprep.subr.mxu0 %v1637
        %2756 = vmatpush1.msra.mxu0 %v1636
        %2757 = vmatprep.subr.mxu0 %v1639
        %2758 = vmatpush1.msra.mxu0 %v1638
        %2759 = vmatprep.subr.mxu0 %v1641
        %2760 = vmatpush1.msra.mxu0 %v1640
        %2761 = vmatprep.subr.mxu0 %v1643
        %2762 = vmatpush1.msra.mxu0 %v1642
        %2763 = vmatprep.subr.mxu0 %v1645
        %2764 = vmatpush1.msra.mxu0 %v1644
        %2765 = vmatprep.subr.mxu0 %v1647
        %2766 = vmatpush1.msra.mxu0 %v1646
        %2767 = vmatprep.subr.mxu0 %v1649
        %2768 = vmatpush1.msra.mxu0 %v1648
        %2769 = vmatprep.subr.mxu0 %v1651
        %2770 = vmatpush1.msra.mxu0 %v1650
        %2771 = vmatprep.subr.mxu0 %v1653
        %2772 = vmatpush1.msra.mxu0 %v1652
        %2773 = vmatprep.subr.mxu0 %v1655
        %2774 = vmatpush1.msra.mxu0 %v1654
        %2775 = vmatprep.subr.mxu0 %v1657
        %2776 = vmatpush1.msra.mxu0 %v1656
        %2777 = vmatprep.subr.mxu0 %v1659
        %2778 = vmatpush1.msra.mxu0 %v1658
        %2779 = vmatprep.subr.mxu0 %v1661
        %2780 = vmatpush1.msra.mxu0 %v1660
        %2781 = vmatprep.subr.mxu0 %v1663
        %2782 = vmatpush1.msra.mxu0 %v1662
        %2783 = vmatprep.subr.mxu0 %v1665
        %2784 = vmatpush1.msra.mxu0 %v1664
        %2785 = vmatprep.subr.mxu0 %v1667
        %2786 = vmatpush1.msra.mxu0 %v1666
        %2787 = vmatprep.subr.mxu0 %v1669
        %2788 = vmatpush1.msra.mxu0 %v1668
        %2789 = vmatprep.subr.mxu0 %v1671
        %2790 = vmatpush1.msra.mxu0 %v1670
        %2791 = vmatprep.mubr.f32.mxu0 %v2075
        %2792 = vmatmul.mubr.f32.gmra.mrb[0].mxu0 %v2074
        %v2793 = vpop.f32.mrb[0].mxu0
        %v2794 = vadd.f32 %v2723, %v2793
        %v2795 = vpop.f32.mrb[0].mxu0
        %v2796 = vadd.f32 %v2725, %v2795
        %2797 = vdwg.mxu0
        %2798 = vmatprep.subr.mxu0 %v1673
        %2799 = vmatpush1.msra.mxu0 %v1672
        %2800 = vmatprep.subr.mxu0 %v1675
        %2801 = vmatpush1.msra.mxu0 %v1674
        %2802 = vmatprep.subr.mxu0 %v1677
        %2803 = vmatpush1.msra.mxu0 %v1676
        %2804 = vmatprep.subr.mxu0 %v1679
        %2805 = vmatpush1.msra.mxu0 %v1678
        %2806 = vmatprep.subr.mxu0 %v1681
        %2807 = vmatpush1.msra.mxu0 %v1680
        %2808 = vmatprep.subr.mxu0 %v1683
        %2809 = vmatpush1.msra.mxu0 %v1682
        %2810 = vmatprep.subr.mxu0 %v1685
        %2811 = vmatpush1.msra.mxu0 %v1684
        %2812 = vmatprep.subr.mxu0 %v1687
        %2813 = vmatpush1.msra.mxu0 %v1686
        %2814 = vmatprep.subr.mxu0 %v1689
        %2815 = vmatpush1.msra.mxu0 %v1688
        %2816 = vmatprep.subr.mxu0 %v1691
        %2817 = vmatpush1.msra.mxu0 %v1690
        %2818 = vmatprep.subr.mxu0 %v1693
        %2819 = vmatpush1.msra.mxu0 %v1692
        %2820 = vmatprep.subr.mxu0 %v1695
        %2821 = vmatpush1.msra.mxu0 %v1694
        %2822 = vmatprep.subr.mxu0 %v1697
        %2823 = vmatpush1.msra.mxu0 %v1696
        %2824 = vmatprep.subr.mxu0 %v1699
        %2825 = vmatpush1.msra.mxu0 %v1698
        %2826 = vmatprep.subr.mxu0 %v1701
        %2827 = vmatpush1.msra.mxu0 %v1700
        %2828 = vmatprep.subr.mxu0 %v1703
        %2829 = vmatpush1.msra.mxu0 %v1702
        %2830 = vmatprep.subr.mxu0 %v1705
        %2831 = vmatpush1.msra.mxu0 %v1704
        %2832 = vmatprep.subr.mxu0 %v1707
        %2833 = vmatpush1.msra.mxu0 %v1706
        %2834 = vmatprep.subr.mxu0 %v1709
        %2835 = vmatpush1.msra.mxu0 %v1708
        %2836 = vmatprep.subr.mxu0 %v1711
        %2837 = vmatpush1.msra.mxu0 %v1710
        %2838 = vmatprep.subr.mxu0 %v1713
        %2839 = vmatpush1.msra.mxu0 %v1712
        %2840 = vmatprep.subr.mxu0 %v1715
        %2841 = vmatpush1.msra.mxu0 %v1714
        %2842 = vmatprep.subr.mxu0 %v1717
        %2843 = vmatpush1.msra.mxu0 %v1716
        %2844 = vmatprep.subr.mxu0 %v1719
        %2845 = vmatpush1.msra.mxu0 %v1718
        %2846 = vmatprep.subr.mxu0 %v1721
        %2847 = vmatpush1.msra.mxu0 %v1720
        %2848 = vmatprep.subr.mxu0 %v1723
        %2849 = vmatpush1.msra.mxu0 %v1722
        %2850 = vmatprep.subr.mxu0 %v1725
        %2851 = vmatpush1.msra.mxu0 %v1724
        %2852 = vmatprep.subr.mxu0 %v1727
        %2853 = vmatpush1.msra.mxu0 %v1726
        %2854 = vmatprep.subr.mxu0 %v1729
        %2855 = vmatpush1.msra.mxu0 %v1728
        %2856 = vmatprep.subr.mxu0 %v1731
        %2857 = vmatpush1.msra.mxu0 %v1730
        %2858 = vmatprep.subr.mxu0 %v1733
        %2859 = vmatpush1.msra.mxu0 %v1732
        %2860 = vmatprep.subr.mxu0 %v1735
        %2861 = vmatpush1.msra.mxu0 %v1734
        %2862 = vmatprep.mubr.f32.mxu0 %v2077
        %2863 = vmatmul.mubr.f32.gmra.mrb[0].mxu0 %v2076
        %v2864 = vpop.f32.mrb[0].mxu0
        %v2865 = vadd.f32 %v2794, %v2864
        %v2866 = vpop.f32.mrb[0].mxu0
        %v2867 = vadd.f32 %v2796, %v2866
        %2868 = vdwg.mxu0
        %2869 = vmatprep.subr.mxu0 %v1737
        %2870 = vmatpush1.msra.mxu0 %v1736
        %2871 = vmatprep.subr.mxu0 %v1739
        %2872 = vmatpush1.msra.mxu0 %v1738
        %2873 = vmatprep.subr.mxu0 %v1741
        %2874 = vmatpush1.msra.mxu0 %v1740
        %2875 = vmatprep.subr.mxu0 %v1743
        %2876 = vmatpush1.msra.mxu0 %v1742
        %2877 = vmatprep.subr.mxu0 %v1745
        %2878 = vmatpush1.msra.mxu0 %v1744
        %2879 = vmatprep.subr.mxu0 %v1747
        %2880 = vmatpush1.msra.mxu0 %v1746
        %2881 = vmatprep.subr.mxu0 %v1749
        %2882 = vmatpush1.msra.mxu0 %v1748
        %2883 = vmatprep.subr.mxu0 %v1751
        %2884 = vmatpush1.msra.mxu0 %v1750
        %2885 = vmatprep.subr.mxu0 %v1753
        %2886 = vmatpush1.msra.mxu0 %v1752
        %2887 = vmatprep.subr.mxu0 %v1755
        %2888 = vmatpush1.msra.mxu0 %v1754
        %2889 = vmatprep.subr.mxu0 %v1757
        %2890 = vmatpush1.msra.mxu0 %v1756
        %2891 = vmatprep.subr.mxu0 %v1759
        %2892 = vmatpush1.msra.mxu0 %v1758
        %2893 = vmatprep.subr.mxu0 %v1761
        %2894 = vmatpush1.msra.mxu0 %v1760
        %2895 = vmatprep.subr.mxu0 %v1763
        %2896 = vmatpush1.msra.mxu0 %v1762
        %2897 = vmatprep.subr.mxu0 %v1765
        %2898 = vmatpush1.msra.mxu0 %v1764
        %2899 = vmatprep.subr.mxu0 %v1767
        %2900 = vmatpush1.msra.mxu0 %v1766
        %2901 = vmatprep.subr.mxu0 %v1769
        %2902 = vmatpush1.msra.mxu0 %v1768
        %2903 = vmatprep.subr.mxu0 %v1771
        %2904 = vmatpush1.msra.mxu0 %v1770
        %2905 = vmatprep.subr.mxu0 %v1773
        %2906 = vmatpush1.msra.mxu0 %v1772
        %2907 = vmatprep.subr.mxu0 %v1775
        %2908 = vmatpush1.msra.mxu0 %v1774
        %2909 = vmatprep.subr.mxu0 %v1777
        %2910 = vmatpush1.msra.mxu0 %v1776
        %2911 = vmatprep.subr.mxu0 %v1779
        %2912 = vmatpush1.msra.mxu0 %v1778
        %2913 = vmatprep.subr.mxu0 %v1781
        %2914 = vmatpush1.msra.mxu0 %v1780
        %2915 = vmatprep.subr.mxu0 %v1783
        %2916 = vmatpush1.msra.mxu0 %v1782
        %2917 = vmatprep.subr.mxu0 %v1785
        %2918 = vmatpush1.msra.mxu0 %v1784
        %2919 = vmatprep.subr.mxu0 %v1787
        %2920 = vmatpush1.msra.mxu0 %v1786
        %2921 = vmatprep.subr.mxu0 %v1789
        %2922 = vmatpush1.msra.mxu0 %v1788
        %2923 = vmatprep.subr.mxu0 %v1791
        %2924 = vmatpush1.msra.mxu0 %v1790
        %2925 = vmatprep.subr.mxu0 %v1793
        %2926 = vmatpush1.msra.mxu0 %v1792
        %2927 = vmatprep.subr.mxu0 %v1795
        %2928 = vmatpush1.msra.mxu0 %v1794
        %2929 = vmatprep.subr.mxu0 %v1797
        %2930 = vmatpush1.msra.mxu0 %v1796
        %2931 = vmatprep.subr.mxu0 %v1799
        %2932 = vmatpush1.msra.mxu0 %v1798
        %2933 = vmatprep.mubr.f32.mxu0 %v2079
        %2934 = vmatmul.mubr.f32.gmra.mrb[0].mxu0 %v2078
        %v2935 = vpop.f32.mrb[0].mxu0
        %v2936 = vadd.f32 %v2865, %v2935
        %v2937 = vpop.f32.mrb[0].mxu0
        %v2938 = vadd.f32 %v2867, %v2937
        %2939 = vdwg.mxu0
        %2940 = vmatprep.subr.mxu0 %v1801
        %2941 = vmatpush1.msra.mxu0 %v1800
        %2942 = vmatprep.subr.mxu0 %v1803
        %2943 = vmatpush1.msra.mxu0 %v1802
        %2944 = vmatprep.subr.mxu0 %v1805
        %2945 = vmatpush1.msra.mxu0 %v1804
        %2946 = vmatprep.subr.mxu0 %v1807
        %2947 = vmatpush1.msra.mxu0 %v1806
        %2948 = vmatprep.subr.mxu0 %v1809
        %2949 = vmatpush1.msra.mxu0 %v1808
        %2950 = vmatprep.subr.mxu0 %v1811
        %2951 = vmatpush1.msra.mxu0 %v1810
        %2952 = vmatprep.subr.mxu0 %v1813
        %2953 = vmatpush1.msra.mxu0 %v1812
        %2954 = vmatprep.subr.mxu0 %v1815
        %2955 = vmatpush1.msra.mxu0 %v1814
        %2956 = vmatprep.subr.mxu0 %v1817
        %2957 = vmatpush1.msra.mxu0 %v1816
        %2958 = vmatprep.subr.mxu0 %v1819
        %2959 = vmatpush1.msra.mxu0 %v1818
        %2960 = vmatprep.subr.mxu0 %v1821
        %2961 = vmatpush1.msra.mxu0 %v1820
        %2962 = vmatprep.subr.mxu0 %v1823
        %2963 = vmatpush1.msra.mxu0 %v1822
        %2964 = vmatprep.subr.mxu0 %v1825
        %2965 = vmatpush1.msra.mxu0 %v1824
        %2966 = vmatprep.subr.mxu0 %v1827
        %2967 = vmatpush1.msra.mxu0 %v1826
        %2968 = vmatprep.subr.mxu0 %v1829
        %2969 = vmatpush1.msra.mxu0 %v1828
        %2970 = vmatprep.subr.mxu0 %v1831
        %2971 = vmatpush1.msra.mxu0 %v1830
        %2972 = vmatprep.subr.mxu0 %v1833
        %2973 = vmatpush1.msra.mxu0 %v1832
        %2974 = vmatprep.subr.mxu0 %v1835
        %2975 = vmatpush1.msra.mxu0 %v1834
        %2976 = vmatprep.subr.mxu0 %v1837
        %2977 = vmatpush1.msra.mxu0 %v1836
        %2978 = vmatprep.subr.mxu0 %v1839
        %2979 = vmatpush1.msra.mxu0 %v1838
        %2980 = vmatprep.subr.mxu0 %v1841
        %2981 = vmatpush1.msra.mxu0 %v1840
        %2982 = vmatprep.subr.mxu0 %v1843
        %2983 = vmatpush1.msra.mxu0 %v1842
        %2984 = vmatprep.subr.mxu0 %v1845
        %2985 = vmatpush1.msra.mxu0 %v1844
        %2986 = vmatprep.subr.mxu0 %v1847
        %2987 = vmatpush1.msra.mxu0 %v1846
        %2988 = vmatprep.subr.mxu0 %v1849
        %2989 = vmatpush1.msra.mxu0 %v1848
        %2990 = vmatprep.subr.mxu0 %v1851
        %2991 = vmatpush1.msra.mxu0 %v1850
        %2992 = vmatprep.subr.mxu0 %v1853
        %2993 = vmatpush1.msra.mxu0 %v1852
        %2994 = vmatprep.subr.mxu0 %v1855
        %2995 = vmatpush1.msra.mxu0 %v1854
        %2996 = vmatprep.subr.mxu0 %v1857
        %2997 = vmatpush1.msra.mxu0 %v1856
        %2998 = vmatprep.subr.mxu0 %v1859
        %2999 = vmatpush1.msra.mxu0 %v1858
        %3000 = vmatprep.subr.mxu0 %v1861
        %3001 = vmatpush1.msra.mxu0 %v1860
        %3002 = vmatprep.subr.mxu0 %v1863
        %3003 = vmatpush1.msra.mxu0 %v1862
        %3004 = vmatprep.mubr.f32.mxu0 %v2081
        %3005 = vmatmul.mubr.f32.gmra.mrb[0].mxu0 %v2080
        %v3006 = vpop.f32.mrb[0].mxu0
        %v3007 = vadd.f32 %v2936, %v3006
        %v3008 = vpop.f32.mrb[0].mxu0
        %v3009 = vadd.f32 %v2938, %v3008
        %3010 = vdwg.mxu0
        %3011 = vmatprep.subr.mxu0 %v1865
        %3012 = vmatpush1.msra.mxu0 %v1864
        %3013 = vmatprep.subr.mxu0 %v1867
        %3014 = vmatpush1.msra.mxu0 %v1866
        %3015 = vmatprep.subr.mxu0 %v1869
        %3016 = vmatpush1.msra.mxu0 %v1868
        %3017 = vmatprep.subr.mxu0 %v1871
        %3018 = vmatpush1.msra.mxu0 %v1870
        %3019 = vmatprep.subr.mxu0 %v1873
        %3020 = vmatpush1.msra.mxu0 %v1872
        %3021 = vmatprep.subr.mxu0 %v1875
        %3022 = vmatpush1.msra.mxu0 %v1874
        %3023 = vmatprep.subr.mxu0 %v1877
        %3024 = vmatpush1.msra.mxu0 %v1876
        %3025 = vmatprep.subr.mxu0 %v1879
        %3026 = vmatpush1.msra.mxu0 %v1878
        %3027 = vmatprep.subr.mxu0 %v1881
        %3028 = vmatpush1.msra.mxu0 %v1880
        %3029 = vmatprep.subr.mxu0 %v1883
        %3030 = vmatpush1.msra.mxu0 %v1882
        %3031 = vmatprep.subr.mxu0 %v1885
        %3032 = vmatpush1.msra.mxu0 %v1884
        %3033 = vmatprep.subr.mxu0 %v1887
        %3034 = vmatpush1.msra.mxu0 %v1886
        %3035 = vmatprep.subr.mxu0 %v1889
        %3036 = vmatpush1.msra.mxu0 %v1888
        %3037 = vmatprep.subr.mxu0 %v1891
        %3038 = vmatpush1.msra.mxu0 %v1890
        %3039 = vmatprep.subr.mxu0 %v1893
        %3040 = vmatpush1.msra.mxu0 %v1892
        %3041 = vmatprep.subr.mxu0 %v1895
        %3042 = vmatpush1.msra.mxu0 %v1894
        %3043 = vmatprep.subr.mxu0 %v1897
        %3044 = vmatpush1.msra.mxu0 %v1896
        %3045 = vmatprep.subr.mxu0 %v1899
        %3046 = vmatpush1.msra.mxu0 %v1898
        %3047 = vmatprep.subr.mxu0 %v1901
        %3048 = vmatpush1.msra.mxu0 %v1900
        %3049 = vmatprep.subr.mxu0 %v1903
        %3050 = vmatpush1.msra.mxu0 %v1902
        %3051 = vmatprep.subr.mxu0 %v1905
        %3052 = vmatpush1.msra.mxu0 %v1904
        %3053 = vmatprep.subr.mxu0 %v1907
        %3054 = vmatpush1.msra.mxu0 %v1906
        %3055 = vmatprep.subr.mxu0 %v1909
        %3056 = vmatpush1.msra.mxu0 %v1908
        %3057 = vmatprep.subr.mxu0 %v1911
        %3058 = vmatpush1.msra.mxu0 %v1910
        %3059 = vmatprep.subr.mxu0 %v1913
        %3060 = vmatpush1.msra.mxu0 %v1912
        %3061 = vmatprep.subr.mxu0 %v1915
        %3062 = vmatpush1.msra.mxu0 %v1914
        %3063 = vmatprep.subr.mxu0 %v1917
        %3064 = vmatpush1.msra.mxu0 %v1916
        %3065 = vmatprep.subr.mxu0 %v1919
        %3066 = vmatpush1.msra.mxu0 %v1918
        %3067 = vmatprep.subr.mxu0 %v1921
        %3068 = vmatpush1.msra.mxu0 %v1920
        %3069 = vmatprep.subr.mxu0 %v1923
        %3070 = vmatpush1.msra.mxu0 %v1922
        %3071 = vmatprep.subr.mxu0 %v1925
        %3072 = vmatpush1.msra.mxu0 %v1924
        %3073 = vmatprep.subr.mxu0 %v1927
        %3074 = vmatpush1.msra.mxu0 %v1926
        %3075 = vmatprep.mubr.f32.mxu0 %v2083
        %3076 = vmatmul.mubr.f32.gmra.mrb[0].mxu0 %v2082
        %v3077 = vpop.f32.mrb[0].mxu0
        %v3078 = vadd.f32 %v3007, %v3077
        %v3079 = vpop.f32.mrb[0].mxu0
        %v3080 = vadd.f32 %v3009, %v3079
        %3081 = vdwg.mxu0
        %3082 = vmatprep.subr.mxu0 %v1929
        %3083 = vmatpush1.msra.mxu0 %v1928
        %3084 = vmatprep.subr.mxu0 %v1931
        %3085 = vmatpush1.msra.mxu0 %v1930
        %3086 = vmatprep.subr.mxu0 %v1933
        %3087 = vmatpush1.msra.mxu0 %v1932
        %3088 = vmatprep.subr.mxu0 %v1935
        %3089 = vmatpush1.msra.mxu0 %v1934
        %3090 = vmatprep.subr.mxu0 %v1937
        %3091 = vmatpush1.msra.mxu0 %v1936
        %3092 = vmatprep.subr.mxu0 %v1939
        %3093 = vmatpush1.msra.mxu0 %v1938
        %3094 = vmatprep.subr.mxu0 %v1941
        %3095 = vmatpush1.msra.mxu0 %v1940
        %3096 = vmatprep.subr.mxu0 %v1943
        %3097 = vmatpush1.msra.mxu0 %v1942
        %3098 = vmatprep.subr.mxu0 %v1945
        %3099 = vmatpush1.msra.mxu0 %v1944
        %3100 = vmatprep.subr.mxu0 %v1947
        %3101 = vmatpush1.msra.mxu0 %v1946
        %3102 = vmatprep.subr.mxu0 %v1949
        %3103 = vmatpush1.msra.mxu0 %v1948
        %3104 = vmatprep.subr.mxu0 %v1951
        %3105 = vmatpush1.msra.mxu0 %v1950
        %3106 = vmatprep.subr.mxu0 %v1953
        %3107 = vmatpush1.msra.mxu0 %v1952
        %3108 = vmatprep.subr.mxu0 %v1955
        %3109 = vmatpush1.msra.mxu0 %v1954
        %3110 = vmatprep.subr.mxu0 %v1957
        %3111 = vmatpush1.msra.mxu0 %v1956
        %3112 = vmatprep.subr.mxu0 %v1959
        %3113 = vmatpush1.msra.mxu0 %v1958
        %3114 = vmatprep.subr.mxu0 %v1961
        %3115 = vmatpush1.msra.mxu0 %v1960
        %3116 = vmatprep.subr.mxu0 %v1963
        %3117 = vmatpush1.msra.mxu0 %v1962
        %3118 = vmatprep.subr.mxu0 %v1965
        %3119 = vmatpush1.msra.mxu0 %v1964
        %3120 = vmatprep.subr.mxu0 %v1967
        %3121 = vmatpush1.msra.mxu0 %v1966
        %3122 = vmatprep.subr.mxu0 %v1969
        %3123 = vmatpush1.msra.mxu0 %v1968
        %3124 = vmatprep.subr.mxu0 %v1971
        %3125 = vmatpush1.msra.mxu0 %v1970
        %3126 = vmatprep.subr.mxu0 %v1973
        %3127 = vmatpush1.msra.mxu0 %v1972
        %3128 = vmatprep.subr.mxu0 %v1975
        %3129 = vmatpush1.msra.mxu0 %v1974
        %3130 = vmatprep.subr.mxu0 %v1977
        %3131 = vmatpush1.msra.mxu0 %v1976
        %3132 = vmatprep.subr.mxu0 %v1979
        %3133 = vmatpush1.msra.mxu0 %v1978
        %3134 = vmatprep.subr.mxu0 %v1981
        %3135 = vmatpush1.msra.mxu0 %v1980
        %3136 = vmatprep.subr.mxu0 %v1983
        %3137 = vmatpush1.msra.mxu0 %v1982
        %3138 = vmatprep.subr.mxu0 %v1985
        %3139 = vmatpush1.msra.mxu0 %v1984
        %3140 = vmatprep.subr.mxu0 %v1987
        %3141 = vmatpush1.msra.mxu0 %v1986
        %3142 = vmatprep.subr.mxu0 %v1989
        %3143 = vmatpush1.msra.mxu0 %v1988
        %3144 = vmatprep.subr.mxu0 %v1991
        %3145 = vmatpush1.msra.mxu0 %v1990
        %3146 = vmatprep.mubr.f32.mxu0 %v2085
        %3147 = vmatmul.mubr.f32.gmra.mrb[0].mxu0 %v2084
        %v3148 = vpop.f32.mrb[0].mxu0
        %v3149 = vadd.f32 %v3078, %v3148
        %v3150 = vpop.f32.mrb[0].mxu0
        %v3151 = vadd.f32 %v3080, %v3150
        %3152 = vdwg.mxu0
        %3153 = vmatprep.subr.mxu0 %v1993
        %3154 = vmatpush1.msra.mxu0 %v1992
        %3155 = vmatprep.subr.mxu0 %v1995
        %3156 = vmatpush1.msra.mxu0 %v1994
        %3157 = vmatprep.subr.mxu0 %v1997
        %3158 = vmatpush1.msra.mxu0 %v1996
        %3159 = vmatprep.subr.mxu0 %v1999
        %3160 = vmatpush1.msra.mxu0 %v1998
        %3161 = vmatprep.subr.mxu0 %v2001
        %3162 = vmatpush1.msra.mxu0 %v2000
        %3163 = vmatprep.subr.mxu0 %v2003
        %3164 = vmatpush1.msra.mxu0 %v2002
        %3165 = vmatprep.subr.mxu0 %v2005
        %3166 = vmatpush1.msra.mxu0 %v2004
        %3167 = vmatprep.subr.mxu0 %v2007
        %3168 = vmatpush1.msra.mxu0 %v2006
        %3169 = vmatprep.subr.mxu0 %v2009
        %3170 = vmatpush1.msra.mxu0 %v2008
        %3171 = vmatprep.subr.mxu0 %v2011
        %3172 = vmatpush1.msra.mxu0 %v2010
        %3173 = vmatprep.subr.mxu0 %v2013
        %3174 = vmatpush1.msra.mxu0 %v2012
        %3175 = vmatprep.subr.mxu0 %v2015
        %3176 = vmatpush1.msra.mxu0 %v2014
        %3177 = vmatprep.subr.mxu0 %v2017
        %3178 = vmatpush1.msra.mxu0 %v2016
        %3179 = vmatprep.subr.mxu0 %v2019
        %3180 = vmatpush1.msra.mxu0 %v2018
        %3181 = vmatprep.subr.mxu0 %v2021
        %3182 = vmatpush1.msra.mxu0 %v2020
        %3183 = vmatprep.subr.mxu0 %v2023
        %3184 = vmatpush1.msra.mxu0 %v2022
        %3185 = vmatprep.subr.mxu0 %v2025
        %3186 = vmatpush1.msra.mxu0 %v2024
        %3187 = vmatprep.subr.mxu0 %v2027
        %3188 = vmatpush1.msra.mxu0 %v2026
        %3189 = vmatprep.subr.mxu0 %v2029
        %3190 = vmatpush1.msra.mxu0 %v2028
        %3191 = vmatprep.subr.mxu0 %v2031
        %3192 = vmatpush1.msra.mxu0 %v2030
        %3193 = vmatprep.subr.mxu0 %v2033
        %3194 = vmatpush1.msra.mxu0 %v2032
        %3195 = vmatprep.subr.mxu0 %v2035
        %3196 = vmatpush1.msra.mxu0 %v2034
        %3197 = vmatprep.subr.mxu0 %v2037
        %3198 = vmatpush1.msra.mxu0 %v2036
        %3199 = vmatprep.subr.mxu0 %v2039
        %3200 = vmatpush1.msra.mxu0 %v2038
        %3201 = vmatprep.subr.mxu0 %v2041
        %3202 = vmatpush1.msra.mxu0 %v2040
        %3203 = vmatprep.subr.mxu0 %v2043
        %3204 = vmatpush1.msra.mxu0 %v2042
        %3205 = vmatprep.subr.mxu0 %v2045
        %3206 = vmatpush1.msra.mxu0 %v2044
        %3207 = vmatprep.subr.mxu0 %v2047
        %3208 = vmatpush1.msra.mxu0 %v2046
        %3209 = vmatprep.subr.mxu0 %v2049
        %3210 = vmatpush1.msra.mxu0 %v2048
        %3211 = vmatprep.subr.mxu0 %v2051
        %3212 = vmatpush1.msra.mxu0 %v2050
        %3213 = vmatprep.subr.mxu0 %v2053
        %3214 = vmatpush1.msra.mxu0 %v2052
        %3215 = vmatprep.subr.mxu0 %v2055
        %3216 = vmatpush1.msra.mxu0 %v2054
        %3217 = vmatprep.mubr.f32.mxu0 %v2087
        %3218 = vmatmul.mubr.f32.gmra.mrb[0].mxu0 %v2086
        %v3219 = vpop.f32.mrb[0].mxu0
        %v3220 = vadd.f32 %v3149, %v3219
        %v3221 = vpop.f32.mrb[0].mxu0
        %v3222 = vadd.f32 %v3151, %v3221
        %3223 = vdwg.mxu0
        %s3224 = smul.u32 %s31, 256
        %v3225 = vld [vmem:[%s443] sm:$0x3]
        %v3226 = vld [vmem:[%s452] sm:$0x3]
        %v3227 = vrot.slane %v3220, 4
        %v3228 = vadd.f32 %v3220, %v3227
        %v3229 = vrot.slane %v3228, 2
        %v3230 = vadd.f32 %v3228, %v3229
        %v3231 = vrot.slane %v3230, 1
        %v3232 = vadd.f32 %v3230, %v3231
        %v3233 = vrot.slane %v3222, 4
        %v3234 = vadd.f32 %v3222, %v3233
        %v3235 = vrot.slane %v3234, 2
        %v3236 = vadd.f32 %v3234, %v3235
        %v3237 = vrot.slane %v3236, 1
        %v3238 = vadd.f32 %v3236, %v3237
        %v3239 = vrcp.pop 8.0
        %v3240 = vmul.f32 %v3232, %v3239
        %v3241 = vmul.f32 %v3238, %v3239
        %v3242 = vsub.f32 %v3220, %v3240
        %v3243 = vsub.f32 %v3222, %v3241
        %v3244 = vmul.f32 %v3242, %v3242
        %v3245 = vmul.f32 %v3243, %v3243
        %v3246 = vrot.slane %v3244, 4
        %v3247 = vadd.f32 %v3244, %v3246
        %v3248 = vrot.slane %v3247, 2
        %v3249 = vadd.f32 %v3247, %v3248
        %v3250 = vrot.slane %v3249, 1
        %v3251 = vadd.f32 %v3249, %v3250
        %v3252 = vrot.slane %v3245, 4
        %v3253 = vadd.f32 %v3245, %v3252
        %v3254 = vrot.slane %v3253, 2
        %v3255 = vadd.f32 %v3253, %v3254
        %v3256 = vrot.slane %v3255, 1
        %v3257 = vadd.f32 %v3255, %v3256
        %v3258 = vmul.f32 %v3251, %v3239
        %v3259 = vmul.f32 %v3257, %v3239
        %v3260 = vadd.f32 %v3258, 1e-05
        %v3261 = vadd.f32 %v3259, 1e-05
        %v3262 = vrsqrt.pop %v3260
        %v3263 = vrsqrt.pop %v3261
        %v3264 = vmul.f32 %v3242, %v3262
        %v3265 = vmul.f32 %v3243, %v3263
        %v3267 = vlaneseq
        %v3268 = vshrl.u32 %v3267, 7
        %v3269 = vsub.s32 0, %v3268
        %v3270 = vrot.slane %v3225, %v3269
        %v3271 = vlaneseq
        %v3272 = vshrl.u32 %v3271, 7
        %v3273 = vsub.s32 1, %v3272
        %v3274 = vrot.slane %v3225, %v3273
        %v3277 = vmul.f32 %v3264, %v3270
        %v3278 = vmul.f32 %v3265, %v3274
        %v3280 = vlaneseq
        %v3281 = vshrl.u32 %v3280, 7
        %v3282 = vsub.s32 0, %v3281
        %v3283 = vrot.slane %v3226, %v3282
        %v3284 = vlaneseq
        %v3285 = vshrl.u32 %v3284, 7
        %v3286 = vsub.s32 1, %v3285
        %v3287 = vrot.slane %v3226, %v3286
        %v3290 = vadd.f32 %v3277, %v3283
        %v3291 = vadd.f32 %v3278, %v3287
        %v3292 = vmax.f32 %v3290, 0.0
        %v3293 = vmax.f32 %v3291, 0.0
        %s3294 = sshra.s32 %s3224, 7
        %s3295 = sand.u32 %s3224, 127
        %s3296 = smul.addr %s3294, 8
        %s3297 = scalar_lea.vmem [#allocation2], %s3296
        %3298 = vst [vmem:[%s3297] sm:$0xff] %v3292
        %3299 = vst [vmem:[%s3297 + $0x8] sm:$0xff] %v3293
        %p3300 = scmp.eq.s32.totalorder %s31, 3
        // Predicated region
        $region97: #{encoder_pallas.1} parent=59 // pred_check
          %p3301 = pneg %p3300
        $region98: #{encoder_pallas.1} parent=59 // pred_check_branch
          %3303 = sbr.rel (%p3301) target = $region100
        $region99: #{encoder_pallas.1} parent=59 // pred_region
          %v3304 = vld [vmem:[#allocation2] sm:$0xff]
          %v3305 = vld [vmem:[#allocation2 + $0x8] sm:$0xff]
          %v3306 = vld [vmem:[#allocation2 + $0x10] sm:$0xff]
          %v3307 = vld [vmem:[#allocation2 + $0x18] sm:$0xff]
          %v3308 = vld [vmem:[#allocation2 + $0x20] sm:$0xff]
          %v3309 = vld [vmem:[#allocation2 + $0x28] sm:$0xff]
          %v3310 = vld [vmem:[#allocation2 + $0x30] sm:$0xff]
          %v3311 = vld [vmem:[#allocation2 + $0x38] sm:$0xff]
          %v3312 = vld [vmem:[#allocation9] sm:$0xff]
          %v3313 = vld [vmem:[#allocation9 + $0x8] sm:$0xff]
          %v3314 = vld [vmem:[#allocation9 + $0x10] sm:$0xff]
          %v3315 = vld [vmem:[#allocation9 + $0x18] sm:$0xff]
          %v3316 = vld [vmem:[#allocation9 + $0x20] sm:$0xff]
          %v3317 = vld [vmem:[#allocation9 + $0x28] sm:$0xff]
          %v3318 = vld [vmem:[#allocation9 + $0x30] sm:$0xff]
          %v3319 = vld [vmem:[#allocation9 + $0x38] sm:$0xff]
          %v3320 = vld [vmem:[#allocation9 + $0x40] sm:$0xff]
          %v3321 = vld [vmem:[#allocation9 + $0x48] sm:$0xff]
          %v3322 = vld [vmem:[#allocation9 + $0x50] sm:$0xff]
          %v3323 = vld [vmem:[#allocation9 + $0x58] sm:$0xff]
          %v3324 = vld [vmem:[#allocation9 + $0x60] sm:$0xff]
          %v3325 = vld [vmem:[#allocation9 + $0x68] sm:$0xff]
          %v3326 = vld [vmem:[#allocation9 + $0x70] sm:$0xff]
          %v3327 = vld [vmem:[#allocation9 + $0x78] sm:$0xff]
          %v3328 = vld [vmem:[#allocation9 + $0x80] sm:$0xff]
          %v3329 = vld [vmem:[#allocation9 + $0x88] sm:$0xff]
          %v3330 = vld [vmem:[#allocation9 + $0x90] sm:$0xff]
          %v3331 = vld [vmem:[#allocation9 + $0x98] sm:$0xff]
          %v3332 = vld [vmem:[#allocation9 + $0xa0] sm:$0xff]
          %v3333 = vld [vmem:[#allocation9 + $0xa8] sm:$0xff]
          %v3334 = vld [vmem:[#allocation9 + $0xb0] sm:$0xff]
          %v3335 = vld [vmem:[#allocation9 + $0xb8] sm:$0xff]
          %v3336 = vld [vmem:[#allocation9 + $0xc0] sm:$0xff]
          %v3337 = vld [vmem:[#allocation9 + $0xc8] sm:$0xff]
          %v3338 = vld [vmem:[#allocation9 + $0xd0] sm:$0xff]
          %v3339 = vld [vmem:[#allocation9 + $0xd8] sm:$0xff]
          %v3340 = vld [vmem:[#allocation9 + $0xe0] sm:$0xff]
          %v3341 = vld [vmem:[#allocation9 + $0xe8] sm:$0xff]
          %v3342 = vld [vmem:[#allocation9 + $0xf0] sm:$0xff]
          %v3343 = vld [vmem:[#allocation9 + $0xf8] sm:$0xff]
          %v3344 = vld [vmem:[#allocation9 + $0x100] sm:$0xff]
          %v3345 = vld [vmem:[#allocation9 + $0x108] sm:$0xff]
          %v3346 = vld [vmem:[#allocation9 + $0x110] sm:$0xff]
          %v3347 = vld [vmem:[#allocation9 + $0x118] sm:$0xff]
          %v3348 = vld [vmem:[#allocation9 + $0x120] sm:$0xff]
          %v3349 = vld [vmem:[#allocation9 + $0x128] sm:$0xff]
          %v3350 = vld [vmem:[#allocation9 + $0x130] sm:$0xff]
          %v3351 = vld [vmem:[#allocation9 + $0x138] sm:$0xff]
          %v3352 = vld [vmem:[#allocation9 + $0x140] sm:$0xff]
          %v3353 = vld [vmem:[#allocation9 + $0x148] sm:$0xff]
          %v3354 = vld [vmem:[#allocation9 + $0x150] sm:$0xff]
          %v3355 = vld [vmem:[#allocation9 + $0x158] sm:$0xff]
          %v3356 = vld [vmem:[#allocation9 + $0x160] sm:$0xff]
          %v3357 = vld [vmem:[#allocation9 + $0x168] sm:$0xff]
          %v3358 = vld [vmem:[#allocation9 + $0x170] sm:$0xff]
          %v3359 = vld [vmem:[#allocation9 + $0x178] sm:$0xff]
          %v3360 = vld [vmem:[#allocation9 + $0x180] sm:$0xff]
          %v3361 = vld [vmem:[#allocation9 + $0x188] sm:$0xff]
          %v3362 = vld [vmem:[#allocation9 + $0x190] sm:$0xff]
          %v3363 = vld [vmem:[#allocation9 + $0x198] sm:$0xff]
          %v3364 = vld [vmem:[#allocation9 + $0x1a0] sm:$0xff]
          %v3365 = vld [vmem:[#allocation9 + $0x1a8] sm:$0xff]
          %v3366 = vld [vmem:[#allocation9 + $0x1b0] sm:$0xff]
          %v3367 = vld [vmem:[#allocation9 + $0x1b8] sm:$0xff]
          %v3368 = vld [vmem:[#allocation9 + $0x1c0] sm:$0xff]
          %v3369 = vld [vmem:[#allocation9 + $0x1c8] sm:$0xff]
          %v3370 = vld [vmem:[#allocation9 + $0x1d0] sm:$0xff]
          %v3371 = vld [vmem:[#allocation9 + $0x1d8] sm:$0xff]
          %v3372 = vld [vmem:[#allocation9 + $0x1e0] sm:$0xff]
          %v3373 = vld [vmem:[#allocation9 + $0x1e8] sm:$0xff]
          %v3374 = vld [vmem:[#allocation9 + $0x1f0] sm:$0xff]
          %v3375 = vld [vmem:[#allocation9 + $0x1f8] sm:$0xff]
          %v3376 = vld [vmem:[#allocation9 + $0x200] sm:$0xff]
          %v3377 = vld [vmem:[#allocation9 + $0x208] sm:$0xff]
          %v3378 = vld [vmem:[#allocation9 + $0x210] sm:$0xff]
          %v3379 = vld [vmem:[#allocation9 + $0x218] sm:$0xff]
          %v3380 = vld [vmem:[#allocation9 + $0x220] sm:$0xff]
          %v3381 = vld [vmem:[#allocation9 + $0x228] sm:$0xff]
          %v3382 = vld [vmem:[#allocation9 + $0x230] sm:$0xff]
          %v3383 = vld [vmem:[#allocation9 + $0x238] sm:$0xff]
          %v3384 = vld [vmem:[#allocation9 + $0x240] sm:$0xff]
          %v3385 = vld [vmem:[#allocation9 + $0x248] sm:$0xff]
          %v3386 = vld [vmem:[#allocation9 + $0x250] sm:$0xff]
          %v3387 = vld [vmem:[#allocation9 + $0x258] sm:$0xff]
          %v3388 = vld [vmem:[#allocation9 + $0x260] sm:$0xff]
          %v3389 = vld [vmem:[#allocation9 + $0x268] sm:$0xff]
          %v3390 = vld [vmem:[#allocation9 + $0x270] sm:$0xff]
          %v3391 = vld [vmem:[#allocation9 + $0x278] sm:$0xff]
          %v3392 = vld [vmem:[#allocation9 + $0x280] sm:$0xff]
          %v3393 = vld [vmem:[#allocation9 + $0x288] sm:$0xff]
          %v3394 = vld [vmem:[#allocation9 + $0x290] sm:$0xff]
          %v3395 = vld [vmem:[#allocation9 + $0x298] sm:$0xff]
          %v3396 = vld [vmem:[#allocation9 + $0x2a0] sm:$0xff]
          %v3397 = vld [vmem:[#allocation9 + $0x2a8] sm:$0xff]
          %v3398 = vld [vmem:[#allocation9 + $0x2b0] sm:$0xff]
          %v3399 = vld [vmem:[#allocation9 + $0x2b8] sm:$0xff]
          %v3400 = vld [vmem:[#allocation9 + $0x2c0] sm:$0xff]
          %v3401 = vld [vmem:[#allocation9 + $0x2c8] sm:$0xff]
          %v3402 = vld [vmem:[#allocation9 + $0x2d0] sm:$0xff]
          %v3403 = vld [vmem:[#allocation9 + $0x2d8] sm:$0xff]
          %v3404 = vld [vmem:[#allocation9 + $0x2e0] sm:$0xff]
          %v3405 = vld [vmem:[#allocation9 + $0x2e8] sm:$0xff]
          %v3406 = vld [vmem:[#allocation9 + $0x2f0] sm:$0xff]
          %v3407 = vld [vmem:[#allocation9 + $0x2f8] sm:$0xff]
          %v3408 = vld [vmem:[#allocation9 + $0x300] sm:$0xff]
          %v3409 = vld [vmem:[#allocation9 + $0x308] sm:$0xff]
          %v3410 = vld [vmem:[#allocation9 + $0x310] sm:$0xff]
          %v3411 = vld [vmem:[#allocation9 + $0x318] sm:$0xff]
          %v3412 = vld [vmem:[#allocation9 + $0x320] sm:$0xff]
          %v3413 = vld [vmem:[#allocation9 + $0x328] sm:$0xff]
          %v3414 = vld [vmem:[#allocation9 + $0x330] sm:$0xff]
          %v3415 = vld [vmem:[#allocation9 + $0x338] sm:$0xff]
          %v3416 = vld [vmem:[#allocation9 + $0x340] sm:$0xff]
          %v3417 = vld [vmem:[#allocation9 + $0x348] sm:$0xff]
          %v3418 = vld [vmem:[#allocation9 + $0x350] sm:$0xff]
          %v3419 = vld [vmem:[#allocation9 + $0x358] sm:$0xff]
          %v3420 = vld [vmem:[#allocation9 + $0x360] sm:$0xff]
          %v3421 = vld [vmem:[#allocation9 + $0x368] sm:$0xff]
          %v3422 = vld [vmem:[#allocation9 + $0x370] sm:$0xff]
          %v3423 = vld [vmem:[#allocation9 + $0x378] sm:$0xff]
          %v3424 = vld [vmem:[#allocation9 + $0x380] sm:$0xff]
          %v3425 = vld [vmem:[#allocation9 + $0x388] sm:$0xff]
          %v3426 = vld [vmem:[#allocation9 + $0x390] sm:$0xff]
          %v3427 = vld [vmem:[#allocation9 + $0x398] sm:$0xff]
          %v3428 = vld [vmem:[#allocation9 + $0x3a0] sm:$0xff]
          %v3429 = vld [vmem:[#allocation9 + $0x3a8] sm:$0xff]
          %v3430 = vld [vmem:[#allocation9 + $0x3b0] sm:$0xff]
          %v3431 = vld [vmem:[#allocation9 + $0x3b8] sm:$0xff]
          %v3432 = vld [vmem:[#allocation9 + $0x3c0] sm:$0xff]
          %v3433 = vld [vmem:[#allocation9 + $0x3c8] sm:$0xff]
          %v3434 = vld [vmem:[#allocation9 + $0x3d0] sm:$0xff]
          %v3435 = vld [vmem:[#allocation9 + $0x3d8] sm:$0xff]
          %v3436 = vld [vmem:[#allocation9 + $0x3e0] sm:$0xff]
          %v3437 = vld [vmem:[#allocation9 + $0x3e8] sm:$0xff]
          %v3438 = vld [vmem:[#allocation9 + $0x3f0] sm:$0xff]
          %v3439 = vld [vmem:[#allocation9 + $0x3f8] sm:$0xff]
          %v3440 = vld [vmem:[#allocation9 + $0x400] sm:$0xff]
          %v3441 = vld [vmem:[#allocation9 + $0x408] sm:$0xff]
          %v3442 = vld [vmem:[#allocation9 + $0x410] sm:$0xff]
          %v3443 = vld [vmem:[#allocation9 + $0x418] sm:$0xff]
          %v3444 = vld [vmem:[#allocation9 + $0x420] sm:$0xff]
          %v3445 = vld [vmem:[#allocation9 + $0x428] sm:$0xff]
          %v3446 = vld [vmem:[#allocation9 + $0x430] sm:$0xff]
          %v3447 = vld [vmem:[#allocation9 + $0x438] sm:$0xff]
          %v3448 = vld [vmem:[#allocation9 + $0x440] sm:$0xff]
          %v3449 = vld [vmem:[#allocation9 + $0x448] sm:$0xff]
          %v3450 = vld [vmem:[#allocation9 + $0x450] sm:$0xff]
          %v3451 = vld [vmem:[#allocation9 + $0x458] sm:$0xff]
          %v3452 = vld [vmem:[#allocation9 + $0x460] sm:$0xff]
          %v3453 = vld [vmem:[#allocation9 + $0x468] sm:$0xff]
          %v3454 = vld [vmem:[#allocation9 + $0x470] sm:$0xff]
          %v3455 = vld [vmem:[#allocation9 + $0x478] sm:$0xff]
          %v3456 = vld [vmem:[#allocation9 + $0x480] sm:$0xff]
          %v3457 = vld [vmem:[#allocation9 + $0x488] sm:$0xff]
          %v3458 = vld [vmem:[#allocation9 + $0x490] sm:$0xff]
          %v3459 = vld [vmem:[#allocation9 + $0x498] sm:$0xff]
          %v3460 = vld [vmem:[#allocation9 + $0x4a0] sm:$0xff]
          %v3461 = vld [vmem:[#allocation9 + $0x4a8] sm:$0xff]
          %v3462 = vld [vmem:[#allocation9 + $0x4b0] sm:$0xff]
          %v3463 = vld [vmem:[#allocation9 + $0x4b8] sm:$0xff]
          %v3464 = vld [vmem:[#allocation9 + $0x4c0] sm:$0xff]
          %v3465 = vld [vmem:[#allocation9 + $0x4c8] sm:$0xff]
          %v3466 = vld [vmem:[#allocation9 + $0x4d0] sm:$0xff]
          %v3467 = vld [vmem:[#allocation9 + $0x4d8] sm:$0xff]
          %v3468 = vld [vmem:[#allocation9 + $0x4e0] sm:$0xff]
          %v3469 = vld [vmem:[#allocation9 + $0x4e8] sm:$0xff]
          %v3470 = vld [vmem:[#allocation9 + $0x4f0] sm:$0xff]
          %v3471 = vld [vmem:[#allocation9 + $0x4f8] sm:$0xff]
          %v3472 = vld [vmem:[#allocation9 + $0x500] sm:$0xff]
          %v3473 = vld [vmem:[#allocation9 + $0x508] sm:$0xff]
          %v3474 = vld [vmem:[#allocation9 + $0x510] sm:$0xff]
          %v3475 = vld [vmem:[#allocation9 + $0x518] sm:$0xff]
          %v3476 = vld [vmem:[#allocation9 + $0x520] sm:$0xff]
          %v3477 = vld [vmem:[#allocation9 + $0x528] sm:$0xff]
          %v3478 = vld [vmem:[#allocation9 + $0x530] sm:$0xff]
          %v3479 = vld [vmem:[#allocation9 + $0x538] sm:$0xff]
          %v3480 = vld [vmem:[#allocation9 + $0x540] sm:$0xff]
          %v3481 = vld [vmem:[#allocation9 + $0x548] sm:$0xff]
          %v3482 = vld [vmem:[#allocation9 + $0x550] sm:$0xff]
          %v3483 = vld [vmem:[#allocation9 + $0x558] sm:$0xff]
          %v3484 = vld [vmem:[#allocation9 + $0x560] sm:$0xff]
          %v3485 = vld [vmem:[#allocation9 + $0x568] sm:$0xff]
          %v3486 = vld [vmem:[#allocation9 + $0x570] sm:$0xff]
          %v3487 = vld [vmem:[#allocation9 + $0x578] sm:$0xff]
          %v3488 = vld [vmem:[#allocation9 + $0x580] sm:$0xff]
          %v3489 = vld [vmem:[#allocation9 + $0x588] sm:$0xff]
          %v3490 = vld [vmem:[#allocation9 + $0x590] sm:$0xff]
          %v3491 = vld [vmem:[#allocation9 + $0x598] sm:$0xff]
          %v3492 = vld [vmem:[#allocation9 + $0x5a0] sm:$0xff]
          %v3493 = vld [vmem:[#allocation9 + $0x5a8] sm:$0xff]
          %v3494 = vld [vmem:[#allocation9 + $0x5b0] sm:$0xff]
          %v3495 = vld [vmem:[#allocation9 + $0x5b8] sm:$0xff]
          %v3496 = vld [vmem:[#allocation9 + $0x5c0] sm:$0xff]
          %v3497 = vld [vmem:[#allocation9 + $0x5c8] sm:$0xff]
          %v3498 = vld [vmem:[#allocation9 + $0x5d0] sm:$0xff]
          %v3499 = vld [vmem:[#allocation9 + $0x5d8] sm:$0xff]
          %v3500 = vld [vmem:[#allocation9 + $0x5e0] sm:$0xff]
          %v3501 = vld [vmem:[#allocation9 + $0x5e8] sm:$0xff]
          %v3502 = vld [vmem:[#allocation9 + $0x5f0] sm:$0xff]
          %v3503 = vld [vmem:[#allocation9 + $0x5f8] sm:$0xff]
          %v3504 = vld [vmem:[#allocation9 + $0x600] sm:$0xff]
          %v3505 = vld [vmem:[#allocation9 + $0x608] sm:$0xff]
          %v3506 = vld [vmem:[#allocation9 + $0x610] sm:$0xff]
          %v3507 = vld [vmem:[#allocation9 + $0x618] sm:$0xff]
          %v3508 = vld [vmem:[#allocation9 + $0x620] sm:$0xff]
          %v3509 = vld [vmem:[#allocation9 + $0x628] sm:$0xff]
          %v3510 = vld [vmem:[#allocation9 + $0x630] sm:$0xff]
          %v3511 = vld [vmem:[#allocation9 + $0x638] sm:$0xff]
          %v3512 = vld [vmem:[#allocation9 + $0x640] sm:$0xff]
          %v3513 = vld [vmem:[#allocation9 + $0x648] sm:$0xff]
          %v3514 = vld [vmem:[#allocation9 + $0x650] sm:$0xff]
          %v3515 = vld [vmem:[#allocation9 + $0x658] sm:$0xff]
          %v3516 = vld [vmem:[#allocation9 + $0x660] sm:$0xff]
          %v3517 = vld [vmem:[#allocation9 + $0x668] sm:$0xff]
          %v3518 = vld [vmem:[#allocation9 + $0x670] sm:$0xff]
          %v3519 = vld [vmem:[#allocation9 + $0x678] sm:$0xff]
          %v3520 = vld [vmem:[#allocation9 + $0x680] sm:$0xff]
          %v3521 = vld [vmem:[#allocation9 + $0x688] sm:$0xff]
          %v3522 = vld [vmem:[#allocation9 + $0x690] sm:$0xff]
          %v3523 = vld [vmem:[#allocation9 + $0x698] sm:$0xff]
          %v3524 = vld [vmem:[#allocation9 + $0x6a0] sm:$0xff]
          %v3525 = vld [vmem:[#allocation9 + $0x6a8] sm:$0xff]
          %v3526 = vld [vmem:[#allocation9 + $0x6b0] sm:$0xff]
          %v3527 = vld [vmem:[#allocation9 + $0x6b8] sm:$0xff]
          %v3528 = vld [vmem:[#allocation9 + $0x6c0] sm:$0xff]
          %v3529 = vld [vmem:[#allocation9 + $0x6c8] sm:$0xff]
          %v3530 = vld [vmem:[#allocation9 + $0x6d0] sm:$0xff]
          %v3531 = vld [vmem:[#allocation9 + $0x6d8] sm:$0xff]
          %v3532 = vld [vmem:[#allocation9 + $0x6e0] sm:$0xff]
          %v3533 = vld [vmem:[#allocation9 + $0x6e8] sm:$0xff]
          %v3534 = vld [vmem:[#allocation9 + $0x6f0] sm:$0xff]
          %v3535 = vld [vmem:[#allocation9 + $0x6f8] sm:$0xff]
          %v3536 = vld [vmem:[#allocation9 + $0x700] sm:$0xff]
          %v3537 = vld [vmem:[#allocation9 + $0x708] sm:$0xff]
          %v3538 = vld [vmem:[#allocation9 + $0x710] sm:$0xff]
          %v3539 = vld [vmem:[#allocation9 + $0x718] sm:$0xff]
          %v3540 = vld [vmem:[#allocation9 + $0x720] sm:$0xff]
          %v3541 = vld [vmem:[#allocation9 + $0x728] sm:$0xff]
          %v3542 = vld [vmem:[#allocation9 + $0x730] sm:$0xff]
          %v3543 = vld [vmem:[#allocation9 + $0x738] sm:$0xff]
          %v3544 = vld [vmem:[#allocation9 + $0x740] sm:$0xff]
          %v3545 = vld [vmem:[#allocation9 + $0x748] sm:$0xff]
          %v3546 = vld [vmem:[#allocation9 + $0x750] sm:$0xff]
          %v3547 = vld [vmem:[#allocation9 + $0x758] sm:$0xff]
          %v3548 = vld [vmem:[#allocation9 + $0x760] sm:$0xff]
          %v3549 = vld [vmem:[#allocation9 + $0x768] sm:$0xff]
          %v3550 = vld [vmem:[#allocation9 + $0x770] sm:$0xff]
          %v3551 = vld [vmem:[#allocation9 + $0x778] sm:$0xff]
          %v3552 = vld [vmem:[#allocation9 + $0x780] sm:$0xff]
          %v3553 = vld [vmem:[#allocation9 + $0x788] sm:$0xff]
          %v3554 = vld [vmem:[#allocation9 + $0x790] sm:$0xff]
          %v3555 = vld [vmem:[#allocation9 + $0x798] sm:$0xff]
          %v3556 = vld [vmem:[#allocation9 + $0x7a0] sm:$0xff]
          %v3557 = vld [vmem:[#allocation9 + $0x7a8] sm:$0xff]
          %v3558 = vld [vmem:[#allocation9 + $0x7b0] sm:$0xff]
          %v3559 = vld [vmem:[#allocation9 + $0x7b8] sm:$0xff]
          %v3560 = vld [vmem:[#allocation9 + $0x7c0] sm:$0xff]
          %v3561 = vld [vmem:[#allocation9 + $0x7c8] sm:$0xff]
          %v3562 = vld [vmem:[#allocation9 + $0x7d0] sm:$0xff]
          %v3563 = vld [vmem:[#allocation9 + $0x7d8] sm:$0xff]
          %v3564 = vld [vmem:[#allocation9 + $0x7e0] sm:$0xff]
          %v3565 = vld [vmem:[#allocation9 + $0x7e8] sm:$0xff]
          %v3566 = vld [vmem:[#allocation9 + $0x7f0] sm:$0xff]
          %v3567 = vld [vmem:[#allocation9 + $0x7f8] sm:$0xff]
          %v3568 = vunpack.c.l.bf16 %v3312
          %v3569 = vunpack.c.h.bf16 %v3312
          %v3570 = vunpack.c.l.bf16 %v3313
          %v3571 = vunpack.c.h.bf16 %v3313
          %v3572 = vunpack.c.l.bf16 %v3314
          %v3573 = vunpack.c.h.bf16 %v3314
          %v3574 = vunpack.c.l.bf16 %v3315
          %v3575 = vunpack.c.h.bf16 %v3315
          %v3576 = vunpack.c.l.bf16 %v3316
          %v3577 = vunpack.c.h.bf16 %v3316
          %v3578 = vunpack.c.l.bf16 %v3317
          %v3579 = vunpack.c.h.bf16 %v3317
          %v3580 = vunpack.c.l.bf16 %v3318
          %v3581 = vunpack.c.h.bf16 %v3318
          %v3582 = vunpack.c.l.bf16 %v3319
          %v3583 = vunpack.c.h.bf16 %v3319
          %v3584 = vunpack.c.l.bf16 %v3320
          %v3585 = vunpack.c.h.bf16 %v3320
          %v3586 = vunpack.c.l.bf16 %v3321
          %v3587 = vunpack.c.h.bf16 %v3321
          %v3588 = vunpack.c.l.bf16 %v3322
          %v3589 = vunpack.c.h.bf16 %v3322
          %v3590 = vunpack.c.l.bf16 %v3323
          %v3591 = vunpack.c.h.bf16 %v3323
          %v3592 = vunpack.c.l.bf16 %v3324
          %v3593 = vunpack.c.h.bf16 %v3324
          %v3594 = vunpack.c.l.bf16 %v3325
          %v3595 = vunpack.c.h.bf16 %v3325
          %v3596 = vunpack.c.l.bf16 %v3326
          %v3597 = vunpack.c.h.bf16 %v3326
          %v3598 = vunpack.c.l.bf16 %v3327
          %v3599 = vunpack.c.h.bf16 %v3327
          %v3600 = vunpack.c.l.bf16 %v3328
          %v3601 = vunpack.c.h.bf16 %v3328
          %v3602 = vunpack.c.l.bf16 %v3329
          %v3603 = vunpack.c.h.bf16 %v3329
          %v3604 = vunpack.c.l.bf16 %v3330
          %v3605 = vunpack.c.h.bf16 %v3330
          %v3606 = vunpack.c.l.bf16 %v3331
          %v3607 = vunpack.c.h.bf16 %v3331
          %v3608 = vunpack.c.l.bf16 %v3332
          %v3609 = vunpack.c.h.bf16 %v3332
          %v3610 = vunpack.c.l.bf16 %v3333
          %v3611 = vunpack.c.h.bf16 %v3333
          %v3612 = vunpack.c.l.bf16 %v3334
          %v3613 = vunpack.c.h.bf16 %v3334
          %v3614 = vunpack.c.l.bf16 %v3335
          %v3615 = vunpack.c.h.bf16 %v3335
          %v3616 = vunpack.c.l.bf16 %v3336
          %v3617 = vunpack.c.h.bf16 %v3336
          %v3618 = vunpack.c.l.bf16 %v3337
          %v3619 = vunpack.c.h.bf16 %v3337
          %v3620 = vunpack.c.l.bf16 %v3338
          %v3621 = vunpack.c.h.bf16 %v3338
          %v3622 = vunpack.c.l.bf16 %v3339
          %v3623 = vunpack.c.h.bf16 %v3339
          %v3624 = vunpack.c.l.bf16 %v3340
          %v3625 = vunpack.c.h.bf16 %v3340
          %v3626 = vunpack.c.l.bf16 %v3341
          %v3627 = vunpack.c.h.bf16 %v3341
          %v3628 = vunpack.c.l.bf16 %v3342
          %v3629 = vunpack.c.h.bf16 %v3342
          %v3630 = vunpack.c.l.bf16 %v3343
          %v3631 = vunpack.c.h.bf16 %v3343
          %v3632 = vunpack.c.l.bf16 %v3344
          %v3633 = vunpack.c.h.bf16 %v3344
          %v3634 = vunpack.c.l.bf16 %v3345
          %v3635 = vunpack.c.h.bf16 %v3345
          %v3636 = vunpack.c.l.bf16 %v3346
          %v3637 = vunpack.c.h.bf16 %v3346
          %v3638 = vunpack.c.l.bf16 %v3347
          %v3639 = vunpack.c.h.bf16 %v3347
          %v3640 = vunpack.c.l.bf16 %v3348
          %v3641 = vunpack.c.h.bf16 %v3348
          %v3642 = vunpack.c.l.bf16 %v3349
          %v3643 = vunpack.c.h.bf16 %v3349
          %v3644 = vunpack.c.l.bf16 %v3350
          %v3645 = vunpack.c.h.bf16 %v3350
          %v3646 = vunpack.c.l.bf16 %v3351
          %v3647 = vunpack.c.h.bf16 %v3351
          %v3648 = vunpack.c.l.bf16 %v3352
          %v3649 = vunpack.c.h.bf16 %v3352
          %v3650 = vunpack.c.l.bf16 %v3353
          %v3651 = vunpack.c.h.bf16 %v3353
          %v3652 = vunpack.c.l.bf16 %v3354
          %v3653 = vunpack.c.h.bf16 %v3354
          %v3654 = vunpack.c.l.bf16 %v3355
          %v3655 = vunpack.c.h.bf16 %v3355
          %v3656 = vunpack.c.l.bf16 %v3356
          %v3657 = vunpack.c.h.bf16 %v3356
          %v3658 = vunpack.c.l.bf16 %v3357
          %v3659 = vunpack.c.h.bf16 %v3357
          %v3660 = vunpack.c.l.bf16 %v3358
          %v3661 = vunpack.c.h.bf16 %v3358
          %v3662 = vunpack.c.l.bf16 %v3359
          %v3663 = vunpack.c.h.bf16 %v3359
          %v3664 = vunpack.c.l.bf16 %v3360
          %v3665 = vunpack.c.h.bf16 %v3360
          %v3666 = vunpack.c.l.bf16 %v3361
          %v3667 = vunpack.c.h.bf16 %v3361
          %v3668 = vunpack.c.l.bf16 %v3362
          %v3669 = vunpack.c.h.bf16 %v3362
          %v3670 = vunpack.c.l.bf16 %v3363
          %v3671 = vunpack.c.h.bf16 %v3363
          %v3672 = vunpack.c.l.bf16 %v3364
          %v3673 = vunpack.c.h.bf16 %v3364
          %v3674 = vunpack.c.l.bf16 %v3365
          %v3675 = vunpack.c.h.bf16 %v3365
          %v3676 = vunpack.c.l.bf16 %v3366
          %v3677 = vunpack.c.h.bf16 %v3366
          %v3678 = vunpack.c.l.bf16 %v3367
          %v3679 = vunpack.c.h.bf16 %v3367
          %v3680 = vunpack.c.l.bf16 %v3368
          %v3681 = vunpack.c.h.bf16 %v3368
          %v3682 = vunpack.c.l.bf16 %v3369
          %v3683 = vunpack.c.h.bf16 %v3369
          %v3684 = vunpack.c.l.bf16 %v3370
          %v3685 = vunpack.c.h.bf16 %v3370
          %v3686 = vunpack.c.l.bf16 %v3371
          %v3687 = vunpack.c.h.bf16 %v3371
          %v3688 = vunpack.c.l.bf16 %v3372
          %v3689 = vunpack.c.h.bf16 %v3372
          %v3690 = vunpack.c.l.bf16 %v3373
          %v3691 = vunpack.c.h.bf16 %v3373
          %v3692 = vunpack.c.l.bf16 %v3374
          %v3693 = vunpack.c.h.bf16 %v3374
          %v3694 = vunpack.c.l.bf16 %v3375
          %v3695 = vunpack.c.h.bf16 %v3375
          %v3696 = vunpack.c.l.bf16 %v3376
          %v3697 = vunpack.c.h.bf16 %v3376
          %v3698 = vunpack.c.l.bf16 %v3377
          %v3699 = vunpack.c.h.bf16 %v3377
          %v3700 = vunpack.c.l.bf16 %v3378
          %v3701 = vunpack.c.h.bf16 %v3378
          %v3702 = vunpack.c.l.bf16 %v3379
          %v3703 = vunpack.c.h.bf16 %v3379
          %v3704 = vunpack.c.l.bf16 %v3380
          %v3705 = vunpack.c.h.bf16 %v3380
          %v3706 = vunpack.c.l.bf16 %v3381
          %v3707 = vunpack.c.h.bf16 %v3381
          %v3708 = vunpack.c.l.bf16 %v3382
          %v3709 = vunpack.c.h.bf16 %v3382
          %v3710 = vunpack.c.l.bf16 %v3383
          %v3711 = vunpack.c.h.bf16 %v3383
          %v3712 = vunpack.c.l.bf16 %v3384
          %v3713 = vunpack.c.h.bf16 %v3384
          %v3714 = vunpack.c.l.bf16 %v3385
          %v3715 = vunpack.c.h.bf16 %v3385
          %v3716 = vunpack.c.l.bf16 %v3386
          %v3717 = vunpack.c.h.bf16 %v3386
          %v3718 = vunpack.c.l.bf16 %v3387
          %v3719 = vunpack.c.h.bf16 %v3387
          %v3720 = vunpack.c.l.bf16 %v3388
          %v3721 = vunpack.c.h.bf16 %v3388
          %v3722 = vunpack.c.l.bf16 %v3389
          %v3723 = vunpack.c.h.bf16 %v3389
          %v3724 = vunpack.c.l.bf16 %v3390
          %v3725 = vunpack.c.h.bf16 %v3390
          %v3726 = vunpack.c.l.bf16 %v3391
          %v3727 = vunpack.c.h.bf16 %v3391
          %v3728 = vunpack.c.l.bf16 %v3392
          %v3729 = vunpack.c.h.bf16 %v3392
          %v3730 = vunpack.c.l.bf16 %v3393
          %v3731 = vunpack.c.h.bf16 %v3393
          %v3732 = vunpack.c.l.bf16 %v3394
          %v3733 = vunpack.c.h.bf16 %v3394
          %v3734 = vunpack.c.l.bf16 %v3395
          %v3735 = vunpack.c.h.bf16 %v3395
          %v3736 = vunpack.c.l.bf16 %v3396
          %v3737 = vunpack.c.h.bf16 %v3396
          %v3738 = vunpack.c.l.bf16 %v3397
          %v3739 = vunpack.c.h.bf16 %v3397
          %v3740 = vunpack.c.l.bf16 %v3398
          %v3741 = vunpack.c.h.bf16 %v3398
          %v3742 = vunpack.c.l.bf16 %v3399
          %v3743 = vunpack.c.h.bf16 %v3399
          %v3744 = vunpack.c.l.bf16 %v3400
          %v3745 = vunpack.c.h.bf16 %v3400
          %v3746 = vunpack.c.l.bf16 %v3401
          %v3747 = vunpack.c.h.bf16 %v3401
          %v3748 = vunpack.c.l.bf16 %v3402
          %v3749 = vunpack.c.h.bf16 %v3402
          %v3750 = vunpack.c.l.bf16 %v3403
          %v3751 = vunpack.c.h.bf16 %v3403
          %v3752 = vunpack.c.l.bf16 %v3404
          %v3753 = vunpack.c.h.bf16 %v3404
          %v3754 = vunpack.c.l.bf16 %v3405
          %v3755 = vunpack.c.h.bf16 %v3405
          %v3756 = vunpack.c.l.bf16 %v3406
          %v3757 = vunpack.c.h.bf16 %v3406
          %v3758 = vunpack.c.l.bf16 %v3407
          %v3759 = vunpack.c.h.bf16 %v3407
          %v3760 = vunpack.c.l.bf16 %v3408
          %v3761 = vunpack.c.h.bf16 %v3408
          %v3762 = vunpack.c.l.bf16 %v3409
          %v3763 = vunpack.c.h.bf16 %v3409
          %v3764 = vunpack.c.l.bf16 %v3410
          %v3765 = vunpack.c.h.bf16 %v3410
          %v3766 = vunpack.c.l.bf16 %v3411
          %v3767 = vunpack.c.h.bf16 %v3411
          %v3768 = vunpack.c.l.bf16 %v3412
          %v3769 = vunpack.c.h.bf16 %v3412
          %v3770 = vunpack.c.l.bf16 %v3413
          %v3771 = vunpack.c.h.bf16 %v3413
          %v3772 = vunpack.c.l.bf16 %v3414
          %v3773 = vunpack.c.h.bf16 %v3414
          %v3774 = vunpack.c.l.bf16 %v3415
          %v3775 = vunpack.c.h.bf16 %v3415
          %v3776 = vunpack.c.l.bf16 %v3416
          %v3777 = vunpack.c.h.bf16 %v3416
          %v3778 = vunpack.c.l.bf16 %v3417
          %v3779 = vunpack.c.h.bf16 %v3417
          %v3780 = vunpack.c.l.bf16 %v3418
          %v3781 = vunpack.c.h.bf16 %v3418
          %v3782 = vunpack.c.l.bf16 %v3419
          %v3783 = vunpack.c.h.bf16 %v3419
          %v3784 = vunpack.c.l.bf16 %v3420
          %v3785 = vunpack.c.h.bf16 %v3420
          %v3786 = vunpack.c.l.bf16 %v3421
          %v3787 = vunpack.c.h.bf16 %v3421
          %v3788 = vunpack.c.l.bf16 %v3422
          %v3789 = vunpack.c.h.bf16 %v3422
          %v3790 = vunpack.c.l.bf16 %v3423
          %v3791 = vunpack.c.h.bf16 %v3423
          %v3792 = vunpack.c.l.bf16 %v3424
          %v3793 = vunpack.c.h.bf16 %v3424
          %v3794 = vunpack.c.l.bf16 %v3425
          %v3795 = vunpack.c.h.bf16 %v3425
          %v3796 = vunpack.c.l.bf16 %v3426
          %v3797 = vunpack.c.h.bf16 %v3426
          %v3798 = vunpack.c.l.bf16 %v3427
          %v3799 = vunpack.c.h.bf16 %v3427
          %v3800 = vunpack.c.l.bf16 %v3428
          %v3801 = vunpack.c.h.bf16 %v3428
          %v3802 = vunpack.c.l.bf16 %v3429
          %v3803 = vunpack.c.h.bf16 %v3429
          %v3804 = vunpack.c.l.bf16 %v3430
          %v3805 = vunpack.c.h.bf16 %v3430
          %v3806 = vunpack.c.l.bf16 %v3431
          %v3807 = vunpack.c.h.bf16 %v3431
          %v3808 = vunpack.c.l.bf16 %v3432
          %v3809 = vunpack.c.h.bf16 %v3432
          %v3810 = vunpack.c.l.bf16 %v3433
          %v3811 = vunpack.c.h.bf16 %v3433
          %v3812 = vunpack.c.l.bf16 %v3434
          %v3813 = vunpack.c.h.bf16 %v3434
          %v3814 = vunpack.c.l.bf16 %v3435
          %v3815 = vunpack.c.h.bf16 %v3435
          %v3816 = vunpack.c.l.bf16 %v3436
          %v3817 = vunpack.c.h.bf16 %v3436
          %v3818 = vunpack.c.l.bf16 %v3437
          %v3819 = vunpack.c.h.bf16 %v3437
          %v3820 = vunpack.c.l.bf16 %v3438
          %v3821 = vunpack.c.h.bf16 %v3438
          %v3822 = vunpack.c.l.bf16 %v3439
          %v3823 = vunpack.c.h.bf16 %v3439
          %v3824 = vunpack.c.l.bf16 %v3440
          %v3825 = vunpack.c.h.bf16 %v3440
          %v3826 = vunpack.c.l.bf16 %v3441
          %v3827 = vunpack.c.h.bf16 %v3441
          %v3828 = vunpack.c.l.bf16 %v3442
          %v3829 = vunpack.c.h.bf16 %v3442
          %v3830 = vunpack.c.l.bf16 %v3443
          %v3831 = vunpack.c.h.bf16 %v3443
          %v3832 = vunpack.c.l.bf16 %v3444
          %v3833 = vunpack.c.h.bf16 %v3444
          %v3834 = vunpack.c.l.bf16 %v3445
          %v3835 = vunpack.c.h.bf16 %v3445
          %v3836 = vunpack.c.l.bf16 %v3446
          %v3837 = vunpack.c.h.bf16 %v3446
          %v3838 = vunpack.c.l.bf16 %v3447
          %v3839 = vunpack.c.h.bf16 %v3447
          %v3840 = vunpack.c.l.bf16 %v3448
          %v3841 = vunpack.c.h.bf16 %v3448
          %v3842 = vunpack.c.l.bf16 %v3449
          %v3843 = vunpack.c.h.bf16 %v3449
          %v3844 = vunpack.c.l.bf16 %v3450
          %v3845 = vunpack.c.h.bf16 %v3450
          %v3846 = vunpack.c.l.bf16 %v3451
          %v3847 = vunpack.c.h.bf16 %v3451
          %v3848 = vunpack.c.l.bf16 %v3452
          %v3849 = vunpack.c.h.bf16 %v3452
          %v3850 = vunpack.c.l.bf16 %v3453
          %v3851 = vunpack.c.h.bf16 %v3453
          %v3852 = vunpack.c.l.bf16 %v3454
          %v3853 = vunpack.c.h.bf16 %v3454
          %v3854 = vunpack.c.l.bf16 %v3455
          %v3855 = vunpack.c.h.bf16 %v3455
          %v3856 = vunpack.c.l.bf16 %v3456
          %v3857 = vunpack.c.h.bf16 %v3456
          %v3858 = vunpack.c.l.bf16 %v3457
          %v3859 = vunpack.c.h.bf16 %v3457
          %v3860 = vunpack.c.l.bf16 %v3458
          %v3861 = vunpack.c.h.bf16 %v3458
          %v3862 = vunpack.c.l.bf16 %v3459
          %v3863 = vunpack.c.h.bf16 %v3459
          %v3864 = vunpack.c.l.bf16 %v3460
          %v3865 = vunpack.c.h.bf16 %v3460
          %v3866 = vunpack.c.l.bf16 %v3461
          %v3867 = vunpack.c.h.bf16 %v3461
          %v3868 = vunpack.c.l.bf16 %v3462
          %v3869 = vunpack.c.h.bf16 %v3462
          %v3870 = vunpack.c.l.bf16 %v3463
          %v3871 = vunpack.c.h.bf16 %v3463
          %v3872 = vunpack.c.l.bf16 %v3464
          %v3873 = vunpack.c.h.bf16 %v3464
          %v3874 = vunpack.c.l.bf16 %v3465
          %v3875 = vunpack.c.h.bf16 %v3465
          %v3876 = vunpack.c.l.bf16 %v3466
          %v3877 = vunpack.c.h.bf16 %v3466
          %v3878 = vunpack.c.l.bf16 %v3467
          %v3879 = vunpack.c.h.bf16 %v3467
          %v3880 = vunpack.c.l.bf16 %v3468
          %v3881 = vunpack.c.h.bf16 %v3468
          %v3882 = vunpack.c.l.bf16 %v3469
          %v3883 = vunpack.c.h.bf16 %v3469
          %v3884 = vunpack.c.l.bf16 %v3470
          %v3885 = vunpack.c.h.bf16 %v3470
          %v3886 = vunpack.c.l.bf16 %v3471
          %v3887 = vunpack.c.h.bf16 %v3471
          %v3888 = vunpack.c.l.bf16 %v3472
          %v3889 = vunpack.c.h.bf16 %v3472
          %v3890 = vunpack.c.l.bf16 %v3473
          %v3891 = vunpack.c.h.bf16 %v3473
          %v3892 = vunpack.c.l.bf16 %v3474
          %v3893 = vunpack.c.h.bf16 %v3474
          %v3894 = vunpack.c.l.bf16 %v3475
          %v3895 = vunpack.c.h.bf16 %v3475
          %v3896 = vunpack.c.l.bf16 %v3476
          %v3897 = vunpack.c.h.bf16 %v3476
          %v3898 = vunpack.c.l.bf16 %v3477
          %v3899 = vunpack.c.h.bf16 %v3477
          %v3900 = vunpack.c.l.bf16 %v3478
          %v3901 = vunpack.c.h.bf16 %v3478
          %v3902 = vunpack.c.l.bf16 %v3479
          %v3903 = vunpack.c.h.bf16 %v3479
          %v3904 = vunpack.c.l.bf16 %v3480
          %v3905 = vunpack.c.h.bf16 %v3480
          %v3906 = vunpack.c.l.bf16 %v3481
          %v3907 = vunpack.c.h.bf16 %v3481
          %v3908 = vunpack.c.l.bf16 %v3482
          %v3909 = vunpack.c.h.bf16 %v3482
          %v3910 = vunpack.c.l.bf16 %v3483
          %v3911 = vunpack.c.h.bf16 %v3483
          %v3912 = vunpack.c.l.bf16 %v3484
          %v3913 = vunpack.c.h.bf16 %v3484
          %v3914 = vunpack.c.l.bf16 %v3485
          %v3915 = vunpack.c.h.bf16 %v3485
          %v3916 = vunpack.c.l.bf16 %v3486
          %v3917 = vunpack.c.h.bf16 %v3486
          %v3918 = vunpack.c.l.bf16 %v3487
          %v3919 = vunpack.c.h.bf16 %v3487
          %v3920 = vunpack.c.l.bf16 %v3488
          %v3921 = vunpack.c.h.bf16 %v3488
          %v3922 = vunpack.c.l.bf16 %v3489
          %v3923 = vunpack.c.h.bf16 %v3489
          %v3924 = vunpack.c.l.bf16 %v3490
          %v3925 = vunpack.c.h.bf16 %v3490
          %v3926 = vunpack.c.l.bf16 %v3491
          %v3927 = vunpack.c.h.bf16 %v3491
          %v3928 = vunpack.c.l.bf16 %v3492
          %v3929 = vunpack.c.h.bf16 %v3492
          %v3930 = vunpack.c.l.bf16 %v3493
          %v3931 = vunpack.c.h.bf16 %v3493
          %v3932 = vunpack.c.l.bf16 %v3494
          %v3933 = vunpack.c.h.bf16 %v3494
          %v3934 = vunpack.c.l.bf16 %v3495
          %v3935 = vunpack.c.h.bf16 %v3495
          %v3936 = vunpack.c.l.bf16 %v3496
          %v3937 = vunpack.c.h.bf16 %v3496
          %v3938 = vunpack.c.l.bf16 %v3497
          %v3939 = vunpack.c.h.bf16 %v3497
          %v3940 = vunpack.c.l.bf16 %v3498
          %v3941 = vunpack.c.h.bf16 %v3498
          %v3942 = vunpack.c.l.bf16 %v3499
          %v3943 = vunpack.c.h.bf16 %v3499
          %v3944 = vunpack.c.l.bf16 %v3500
          %v3945 = vunpack.c.h.bf16 %v3500
          %v3946 = vunpack.c.l.bf16 %v3501
          %v3947 = vunpack.c.h.bf16 %v3501
          %v3948 = vunpack.c.l.bf16 %v3502
          %v3949 = vunpack.c.h.bf16 %v3502
          %v3950 = vunpack.c.l.bf16 %v3503
          %v3951 = vunpack.c.h.bf16 %v3503
          %v3952 = vunpack.c.l.bf16 %v3504
          %v3953 = vunpack.c.h.bf16 %v3504
          %v3954 = vunpack.c.l.bf16 %v3505
          %v3955 = vunpack.c.h.bf16 %v3505
          %v3956 = vunpack.c.l.bf16 %v3506
          %v3957 = vunpack.c.h.bf16 %v3506
          %v3958 = vunpack.c.l.bf16 %v3507
          %v3959 = vunpack.c.h.bf16 %v3507
          %v3960 = vunpack.c.l.bf16 %v3508
          %v3961 = vunpack.c.h.bf16 %v3508
          %v3962 = vunpack.c.l.bf16 %v3509
          %v3963 = vunpack.c.h.bf16 %v3509
          %v3964 = vunpack.c.l.bf16 %v3510
          %v3965 = vunpack.c.h.bf16 %v3510
          %v3966 = vunpack.c.l.bf16 %v3511
          %v3967 = vunpack.c.h.bf16 %v3511
          %v3968 = vunpack.c.l.bf16 %v3512
          %v3969 = vunpack.c.h.bf16 %v3512
          %v3970 = vunpack.c.l.bf16 %v3513
          %v3971 = vunpack.c.h.bf16 %v3513
          %v3972 = vunpack.c.l.bf16 %v3514
          %v3973 = vunpack.c.h.bf16 %v3514
          %v3974 = vunpack.c.l.bf16 %v3515
          %v3975 = vunpack.c.h.bf16 %v3515
          %v3976 = vunpack.c.l.bf16 %v3516
          %v3977 = vunpack.c.h.bf16 %v3516
          %v3978 = vunpack.c.l.bf16 %v3517
          %v3979 = vunpack.c.h.bf16 %v3517
          %v3980 = vunpack.c.l.bf16 %v3518
          %v3981 = vunpack.c.h.bf16 %v3518
          %v3982 = vunpack.c.l.bf16 %v3519
          %v3983 = vunpack.c.h.bf16 %v3519
          %v3984 = vunpack.c.l.bf16 %v3520
          %v3985 = vunpack.c.h.bf16 %v3520
          %v3986 = vunpack.c.l.bf16 %v3521
          %v3987 = vunpack.c.h.bf16 %v3521
          %v3988 = vunpack.c.l.bf16 %v3522
          %v3989 = vunpack.c.h.bf16 %v3522
          %v3990 = vunpack.c.l.bf16 %v3523
          %v3991 = vunpack.c.h.bf16 %v3523
          %v3992 = vunpack.c.l.bf16 %v3524
          %v3993 = vunpack.c.h.bf16 %v3524
          %v3994 = vunpack.c.l.bf16 %v3525
          %v3995 = vunpack.c.h.bf16 %v3525
          %v3996 = vunpack.c.l.bf16 %v3526
          %v3997 = vunpack.c.h.bf16 %v3526
          %v3998 = vunpack.c.l.bf16 %v3527
          %v3999 = vunpack.c.h.bf16 %v3527
          %v4000 = vunpack.c.l.bf16 %v3528
          %v4001 = vunpack.c.h.bf16 %v3528
          %v4002 = vunpack.c.l.bf16 %v3529
          %v4003 = vunpack.c.h.bf16 %v3529
          %v4004 = vunpack.c.l.bf16 %v3530
          %v4005 = vunpack.c.h.bf16 %v3530
          %v4006 = vunpack.c.l.bf16 %v3531
          %v4007 = vunpack.c.h.bf16 %v3531
          %v4008 = vunpack.c.l.bf16 %v3532
          %v4009 = vunpack.c.h.bf16 %v3532
          %v4010 = vunpack.c.l.bf16 %v3533
          %v4011 = vunpack.c.h.bf16 %v3533
          %v4012 = vunpack.c.l.bf16 %v3534
          %v4013 = vunpack.c.h.bf16 %v3534
          %v4014 = vunpack.c.l.bf16 %v3535
          %v4015 = vunpack.c.h.bf16 %v3535
          %v4016 = vunpack.c.l.bf16 %v3536
          %v4017 = vunpack.c.h.bf16 %v3536
          %v4018 = vunpack.c.l.bf16 %v3537
          %v4019 = vunpack.c.h.bf16 %v3537
          %v4020 = vunpack.c.l.bf16 %v3538
          %v4021 = vunpack.c.h.bf16 %v3538
          %v4022 = vunpack.c.l.bf16 %v3539
          %v4023 = vunpack.c.h.bf16 %v3539
          %v4024 = vunpack.c.l.bf16 %v3540
          %v4025 = vunpack.c.h.bf16 %v3540
          %v4026 = vunpack.c.l.bf16 %v3541
          %v4027 = vunpack.c.h.bf16 %v3541
          %v4028 = vunpack.c.l.bf16 %v3542
          %v4029 = vunpack.c.h.bf16 %v3542
          %v4030 = vunpack.c.l.bf16 %v3543
          %v4031 = vunpack.c.h.bf16 %v3543
          %v4032 = vunpack.c.l.bf16 %v3544
          %v4033 = vunpack.c.h.bf16 %v3544
          %v4034 = vunpack.c.l.bf16 %v3545
          %v4035 = vunpack.c.h.bf16 %v3545
          %v4036 = vunpack.c.l.bf16 %v3546
          %v4037 = vunpack.c.h.bf16 %v3546
          %v4038 = vunpack.c.l.bf16 %v3547
          %v4039 = vunpack.c.h.bf16 %v3547
          %v4040 = vunpack.c.l.bf16 %v3548
          %v4041 = vunpack.c.h.bf16 %v3548
          %v4042 = vunpack.c.l.bf16 %v3549
          %v4043 = vunpack.c.h.bf16 %v3549
          %v4044 = vunpack.c.l.bf16 %v3550
          %v4045 = vunpack.c.h.bf16 %v3550
          %v4046 = vunpack.c.l.bf16 %v3551
          %v4047 = vunpack.c.h.bf16 %v3551
          %v4048 = vunpack.c.l.bf16 %v3552
          %v4049 = vunpack.c.h.bf16 %v3552
          %v4050 = vunpack.c.l.bf16 %v3553
          %v4051 = vunpack.c.h.bf16 %v3553
          %v4052 = vunpack.c.l.bf16 %v3554
          %v4053 = vunpack.c.h.bf16 %v3554
          %v4054 = vunpack.c.l.bf16 %v3555
          %v4055 = vunpack.c.h.bf16 %v3555
          %v4056 = vunpack.c.l.bf16 %v3556
          %v4057 = vunpack.c.h.bf16 %v3556
          %v4058 = vunpack.c.l.bf16 %v3557
          %v4059 = vunpack.c.h.bf16 %v3557
          %v4060 = vunpack.c.l.bf16 %v3558
          %v4061 = vunpack.c.h.bf16 %v3558
          %v4062 = vunpack.c.l.bf16 %v3559
          %v4063 = vunpack.c.h.bf16 %v3559
          %v4064 = vunpack.c.l.bf16 %v3560
          %v4065 = vunpack.c.h.bf16 %v3560
          %v4066 = vunpack.c.l.bf16 %v3561
          %v4067 = vunpack.c.h.bf16 %v3561
          %v4068 = vunpack.c.l.bf16 %v3562
          %v4069 = vunpack.c.h.bf16 %v3562
          %v4070 = vunpack.c.l.bf16 %v3563
          %v4071 = vunpack.c.h.bf16 %v3563
          %v4072 = vunpack.c.l.bf16 %v3564
          %v4073 = vunpack.c.h.bf16 %v3564
          %v4074 = vunpack.c.l.bf16 %v3565
          %v4075 = vunpack.c.h.bf16 %v3565
          %v4076 = vunpack.c.l.bf16 %v3566
          %v4077 = vunpack.c.h.bf16 %v3566
          %v4078 = vunpack.c.l.bf16 %v3567
          %v4079 = vunpack.c.h.bf16 %v3567
          %4080 = vmatprep.subr.mxu0 %v3569
          %4081 = vmatpush1.msra.mxu0 %v3568
          %4082 = vmatprep.subr.mxu0 %v3573
          %4083 = vmatpush1.msra.mxu0 %v3572
          %4084 = vmatprep.subr.mxu0 %v3577
          %4085 = vmatpush1.msra.mxu0 %v3576
          %4086 = vmatprep.subr.mxu0 %v3581
          %4087 = vmatpush1.msra.mxu0 %v3580
          %4088 = vmatprep.subr.mxu0 %v3585
          %4089 = vmatpush1.msra.mxu0 %v3584
          %4090 = vmatprep.subr.mxu0 %v3589
          %4091 = vmatpush1.msra.mxu0 %v3588
          %4092 = vmatprep.subr.mxu0 %v3593
          %4093 = vmatpush1.msra.mxu0 %v3592
          %4094 = vmatprep.subr.mxu0 %v3597
          %4095 = vmatpush1.msra.mxu0 %v3596
          %4096 = vmatprep.subr.mxu0 %v3601
          %4097 = vmatpush1.msra.mxu0 %v3600
          %4098 = vmatprep.subr.mxu0 %v3605
          %4099 = vmatpush1.msra.mxu0 %v3604
          %4100 = vmatprep.subr.mxu0 %v3609
          %4101 = vmatpush1.msra.mxu0 %v3608
          %4102 = vmatprep.subr.mxu0 %v3613
          %4103 = vmatpush1.msra.mxu0 %v3612
          %4104 = vmatprep.subr.mxu0 %v3617
          %4105 = vmatpush1.msra.mxu0 %v3616
          %4106 = vmatprep.subr.mxu0 %v3621
          %4107 = vmatpush1.msra.mxu0 %v3620
          %4108 = vmatprep.subr.mxu0 %v3625
          %4109 = vmatpush1.msra.mxu0 %v3624
          %4110 = vmatprep.subr.mxu0 %v3629
          %4111 = vmatpush1.msra.mxu0 %v3628
          %4112 = vmatprep.subr.mxu0 %v3633
          %4113 = vmatpush1.msra.mxu0 %v3632
          %4114 = vmatprep.subr.mxu0 %v3637
          %4115 = vmatpush1.msra.mxu0 %v3636
          %4116 = vmatprep.subr.mxu0 %v3641
          %4117 = vmatpush1.msra.mxu0 %v3640
          %4118 = vmatprep.subr.mxu0 %v3645
          %4119 = vmatpush1.msra.mxu0 %v3644
          %4120 = vmatprep.subr.mxu0 %v3649
          %4121 = vmatpush1.msra.mxu0 %v3648
          %4122 = vmatprep.subr.mxu0 %v3653
          %4123 = vmatpush1.msra.mxu0 %v3652
          %4124 = vmatprep.subr.mxu0 %v3657
          %4125 = vmatpush1.msra.mxu0 %v3656
          %4126 = vmatprep.subr.mxu0 %v3661
          %4127 = vmatpush1.msra.mxu0 %v3660
          %4128 = vmatprep.subr.mxu0 %v3665
          %4129 = vmatpush1.msra.mxu0 %v3664
          %4130 = vmatprep.subr.mxu0 %v3669
          %4131 = vmatpush1.msra.mxu0 %v3668
          %4132 = vmatprep.subr.mxu0 %v3673
          %4133 = vmatpush1.msra.mxu0 %v3672
          %4134 = vmatprep.subr.mxu0 %v3677
          %4135 = vmatpush1.msra.mxu0 %v3676
          %4136 = vmatprep.subr.mxu0 %v3681
          %4137 = vmatpush1.msra.mxu0 %v3680
          %4138 = vmatprep.subr.mxu0 %v3685
          %4139 = vmatpush1.msra.mxu0 %v3684
          %4140 = vmatprep.subr.mxu0 %v3689
          %4141 = vmatpush1.msra.mxu0 %v3688
          %4142 = vmatprep.subr.mxu0 %v3693
          %4143 = vmatpush1.msra.mxu0 %v3692
          %4144 = vmatprep.mubr.f32.mxu0 %v3305
          %4145 = vmatmul.mubr.f32.gmra.mrb[0].mxu0 %v3304
          %v4146 = vpop.f32.mrb[0].mxu0
          %v4147 = vadd.f32 0.0, %v4146
          %v4148 = vpop.f32.mrb[0].mxu0
          %v4149 = vadd.f32 0.0, %v4148
          %4150 = vdwg.mxu0
          %4151 = vmatprep.subr.mxu0 %v3697
          %4152 = vmatpush1.msra.mxu0 %v3696
          %4153 = vmatprep.subr.mxu0 %v3701
          %4154 = vmatpush1.msra.mxu0 %v3700
          %4155 = vmatprep.subr.mxu0 %v3705
          %4156 = vmatpush1.msra.mxu0 %v3704
          %4157 = vmatprep.subr.mxu0 %v3709
          %4158 = vmatpush1.msra.mxu0 %v3708
          %4159 = vmatprep.subr.mxu0 %v3713
          %4160 = vmatpush1.msra.mxu0 %v3712
          %4161 = vmatprep.subr.mxu0 %v3717
          %4162 = vmatpush1.msra.mxu0 %v3716
          %4163 = vmatprep.subr.mxu0 %v3721
          %4164 = vmatpush1.msra.mxu0 %v3720
          %4165 = vmatprep.subr.mxu0 %v3725
          %4166 = vmatpush1.msra.mxu0 %v3724
          %4167 = vmatprep.subr.mxu0 %v3729
          %4168 = vmatpush1.msra.mxu0 %v3728
          %4169 = vmatprep.subr.mxu0 %v3733
          %4170 = vmatpush1.msra.mxu0 %v3732
          %4171 = vmatprep.subr.mxu0 %v3737
          %4172 = vmatpush1.msra.mxu0 %v3736
          %4173 = vmatprep.subr.mxu0 %v3741
          %4174 = vmatpush1.msra.mxu0 %v3740
          %4175 = vmatprep.subr.mxu0 %v3745
          %4176 = vmatpush1.msra.mxu0 %v3744
          %4177 = vmatprep.subr.mxu0 %v3749
          %4178 = vmatpush1.msra.mxu0 %v3748
          %4179 = vmatprep.subr.mxu0 %v3753
          %4180 = vmatpush1.msra.mxu0 %v3752
          %4181 = vmatprep.subr.mxu0 %v3757
          %4182 = vmatpush1.msra.mxu0 %v3756
          %4183 = vmatprep.subr.mxu0 %v3761
          %4184 = vmatpush1.msra.mxu0 %v3760
          %4185 = vmatprep.subr.mxu0 %v3765
          %4186 = vmatpush1.msra.mxu0 %v3764
          %4187 = vmatprep.subr.mxu0 %v3769
          %4188 = vmatpush1.msra.mxu0 %v3768
          %4189 = vmatprep.subr.mxu0 %v3773
          %4190 = vmatpush1.msra.mxu0 %v3772
          %4191 = vmatprep.subr.mxu0 %v3777
          %4192 = vmatpush1.msra.mxu0 %v3776
          %4193 = vmatprep.subr.mxu0 %v3781
          %4194 = vmatpush1.msra.mxu0 %v3780
          %4195 = vmatprep.subr.mxu0 %v3785
          %4196 = vmatpush1.msra.mxu0 %v3784
          %4197 = vmatprep.subr.mxu0 %v3789
          %4198 = vmatpush1.msra.mxu0 %v3788
          %4199 = vmatprep.subr.mxu0 %v3793
          %4200 = vmatpush1.msra.mxu0 %v3792
          %4201 = vmatprep.subr.mxu0 %v3797
          %4202 = vmatpush1.msra.mxu0 %v3796
          %4203 = vmatprep.subr.mxu0 %v3801
          %4204 = vmatpush1.msra.mxu0 %v3800
          %4205 = vmatprep.subr.mxu0 %v3805
          %4206 = vmatpush1.msra.mxu0 %v3804
          %4207 = vmatprep.subr.mxu0 %v3809
          %4208 = vmatpush1.msra.mxu0 %v3808
          %4209 = vmatprep.subr.mxu0 %v3813
          %4210 = vmatpush1.msra.mxu0 %v3812
          %4211 = vmatprep.subr.mxu0 %v3817
          %4212 = vmatpush1.msra.mxu0 %v3816
          %4213 = vmatprep.subr.mxu0 %v3821
          %4214 = vmatpush1.msra.mxu0 %v3820
          %4215 = vmatprep.mubr.f32.mxu0 %v3307
          %4216 = vmatmul.mubr.f32.gmra.mrb[0].mxu0 %v3306
          %v4217 = vpop.f32.mrb[0].mxu0
          %v4218 = vadd.f32 %v4147, %v4217
          %v4219 = vpop.f32.mrb[0].mxu0
          %v4220 = vadd.f32 %v4149, %v4219
          %4221 = vdwg.mxu0
          %4222 = vmatprep.subr.mxu0 %v3825
          %4223 = vmatpush1.msra.mxu0 %v3824
          %4224 = vmatprep.subr.mxu0 %v3829
          %4225 = vmatpush1.msra.mxu0 %v3828
          %4226 = vmatprep.subr.mxu0 %v3833
          %4227 = vmatpush1.msra.mxu0 %v3832
          %4228 = vmatprep.subr.mxu0 %v3837
          %4229 = vmatpush1.msra.mxu0 %v3836
          %4230 = vmatprep.subr.mxu0 %v3841
          %4231 = vmatpush1.msra.mxu0 %v3840
          %4232 = vmatprep.subr.mxu0 %v3845
          %4233 = vmatpush1.msra.mxu0 %v3844
          %4234 = vmatprep.subr.mxu0 %v3849
          %4235 = vmatpush1.msra.mxu0 %v3848
          %4236 = vmatprep.subr.mxu0 %v3853
          %4237 = vmatpush1.msra.mxu0 %v3852
          %4238 = vmatprep.subr.mxu0 %v3857
          %4239 = vmatpush1.msra.mxu0 %v3856
          %4240 = vmatprep.subr.mxu0 %v3861
          %4241 = vmatpush1.msra.mxu0 %v3860
          %4242 = vmatprep.subr.mxu0 %v3865
          %4243 = vmatpush1.msra.mxu0 %v3864
          %4244 = vmatprep.subr.mxu0 %v3869
          %4245 = vmatpush1.msra.mxu0 %v3868
          %4246 = vmatprep.subr.mxu0 %v3873
          %4247 = vmatpush1.msra.mxu0 %v3872
          %4248 = vmatprep.subr.mxu0 %v3877
          %4249 = vmatpush1.msra.mxu0 %v3876
          %4250 = vmatprep.subr.mxu0 %v3881
          %4251 = vmatpush1.msra.mxu0 %v3880
          %4252 = vmatprep.subr.mxu0 %v3885
          %4253 = vmatpush1.msra.mxu0 %v3884
          %4254 = vmatprep.subr.mxu0 %v3889
          %4255 = vmatpush1.msra.mxu0 %v3888
          %4256 = vmatprep.subr.mxu0 %v3893
          %4257 = vmatpush1.msra.mxu0 %v3892
          %4258 = vmatprep.subr.mxu0 %v3897
          %4259 = vmatpush1.msra.mxu0 %v3896
          %4260 = vmatprep.subr.mxu0 %v3901
          %4261 = vmatpush1.msra.mxu0 %v3900
          %4262 = vmatprep.subr.mxu0 %v3905
          %4263 = vmatpush1.msra.mxu0 %v3904
          %4264 = vmatprep.subr.mxu0 %v3909
          %4265 = vmatpush1.msra.mxu0 %v3908
          %4266 = vmatprep.subr.mxu0 %v3913
          %4267 = vmatpush1.msra.mxu0 %v3912
          %4268 = vmatprep.subr.mxu0 %v3917
          %4269 = vmatpush1.msra.mxu0 %v3916
          %4270 = vmatprep.subr.mxu0 %v3921
          %4271 = vmatpush1.msra.mxu0 %v3920
          %4272 = vmatprep.subr.mxu0 %v3925
          %4273 = vmatpush1.msra.mxu0 %v3924
          %4274 = vmatprep.subr.mxu0 %v3929
          %4275 = vmatpush1.msra.mxu0 %v3928
          %4276 = vmatprep.subr.mxu0 %v3933
          %4277 = vmatpush1.msra.mxu0 %v3932
          %4278 = vmatprep.subr.mxu0 %v3937
          %4279 = vmatpush1.msra.mxu0 %v3936
          %4280 = vmatprep.subr.mxu0 %v3941
          %4281 = vmatpush1.msra.mxu0 %v3940
          %4282 = vmatprep.subr.mxu0 %v3945
          %4283 = vmatpush1.msra.mxu0 %v3944
          %4284 = vmatprep.subr.mxu0 %v3949
          %4285 = vmatpush1.msra.mxu0 %v3948
          %4286 = vmatprep.mubr.f32.mxu0 %v3309
          %4287 = vmatmul.mubr.f32.gmra.mrb[0].mxu0 %v3308
          %v4288 = vpop.f32.mrb[0].mxu0
          %v4289 = vadd.f32 %v4218, %v4288
          %v4290 = vpop.f32.mrb[0].mxu0
          %v4291 = vadd.f32 %v4220, %v4290
          %4292 = vdwg.mxu0
          %4293 = vmatprep.subr.mxu0 %v3953
          %4294 = vmatpush1.msra.mxu0 %v3952
          %4295 = vmatprep.subr.mxu0 %v3957
          %4296 = vmatpush1.msra.mxu0 %v3956
          %4297 = vmatprep.subr.mxu0 %v3961
          %4298 = vmatpush1.msra.mxu0 %v3960
          %4299 = vmatprep.subr.mxu0 %v3965
          %4300 = vmatpush1.msra.mxu0 %v3964
          %4301 = vmatprep.subr.mxu0 %v3969
          %4302 = vmatpush1.msra.mxu0 %v3968
          %4303 = vmatprep.subr.mxu0 %v3973
          %4304 = vmatpush1.msra.mxu0 %v3972
          %4305 = vmatprep.subr.mxu0 %v3977
          %4306 = vmatpush1.msra.mxu0 %v3976
          %4307 = vmatprep.subr.mxu0 %v3981
          %4308 = vmatpush1.msra.mxu0 %v3980
          %4309 = vmatprep.subr.mxu0 %v3985
          %4310 = vmatpush1.msra.mxu0 %v3984
          %4311 = vmatprep.subr.mxu0 %v3989
          %4312 = vmatpush1.msra.mxu0 %v3988
          %4313 = vmatprep.subr.mxu0 %v3993
          %4314 = vmatpush1.msra.mxu0 %v3992
          %4315 = vmatprep.subr.mxu0 %v3997
          %4316 = vmatpush1.msra.mxu0 %v3996
          %4317 = vmatprep.subr.mxu0 %v4001
          %4318 = vmatpush1.msra.mxu0 %v4000
          %4319 = vmatprep.subr.mxu0 %v4005
          %4320 = vmatpush1.msra.mxu0 %v4004
          %4321 = vmatprep.subr.mxu0 %v4009
          %4322 = vmatpush1.msra.mxu0 %v4008
          %4323 = vmatprep.subr.mxu0 %v4013
          %4324 = vmatpush1.msra.mxu0 %v4012
          %4325 = vmatprep.subr.mxu0 %v4017
          %4326 = vmatpush1.msra.mxu0 %v4016
          %4327 = vmatprep.subr.mxu0 %v4021
          %4328 = vmatpush1.msra.mxu0 %v4020
          %4329 = vmatprep.subr.mxu0 %v4025
          %4330 = vmatpush1.msra.mxu0 %v4024
          %4331 = vmatprep.subr.mxu0 %v4029
          %4332 = vmatpush1.msra.mxu0 %v4028
          %4333 = vmatprep.subr.mxu0 %v4033
          %4334 = vmatpush1.msra.mxu0 %v4032
          %4335 = vmatprep.subr.mxu0 %v4037
          %4336 = vmatpush1.msra.mxu0 %v4036
          %4337 = vmatprep.subr.mxu0 %v4041
          %4338 = vmatpush1.msra.mxu0 %v4040
          %4339 = vmatprep.subr.mxu0 %v4045
          %4340 = vmatpush1.msra.mxu0 %v4044
          %4341 = vmatprep.subr.mxu0 %v4049
          %4342 = vmatpush1.msra.mxu0 %v4048
          %4343 = vmatprep.subr.mxu0 %v4053
          %4344 = vmatpush1.msra.mxu0 %v4052
          %4345 = vmatprep.subr.mxu0 %v4057
          %4346 = vmatpush1.msra.mxu0 %v4056
          %4347 = vmatprep.subr.mxu0 %v4061
          %4348 = vmatpush1.msra.mxu0 %v4060
          %4349 = vmatprep.subr.mxu0 %v4065
          %4350 = vmatpush1.msra.mxu0 %v4064
          %4351 = vmatprep.subr.mxu0 %v4069
          %4352 = vmatpush1.msra.mxu0 %v4068
          %4353 = vmatprep.subr.mxu0 %v4073
          %4354 = vmatpush1.msra.mxu0 %v4072
          %4355 = vmatprep.subr.mxu0 %v4077
          %4356 = vmatpush1.msra.mxu0 %v4076
          %4357 = vmatprep.mubr.f32.mxu0 %v3311
          %4358 = vmatmul.mubr.f32.gmra.mrb[0].mxu0 %v3310
          %v4359 = vpop.f32.mrb[0].mxu0
          %v4360 = vadd.f32 %v4289, %v4359
          %v4361 = vpop.f32.mrb[0].mxu0
          %v4362 = vadd.f32 %v4291, %v4361
          %4363 = vdwg.mxu0
          %4364 = vmatprep.subr.mxu0 %v3571
          %4365 = vmatpush1.msra.mxu0 %v3570
          %4366 = vmatprep.subr.mxu0 %v3575
          %4367 = vmatpush1.msra.mxu0 %v3574
          %4368 = vmatprep.subr.mxu0 %v3579
          %4369 = vmatpush1.msra.mxu0 %v3578
          %4370 = vmatprep.subr.mxu0 %v3583
          %4371 = vmatpush1.msra.mxu0 %v3582
          %4372 = vmatprep.subr.mxu0 %v3587
          %4373 = vmatpush1.msra.mxu0 %v3586
          %4374 = vmatprep.subr.mxu0 %v3591
          %4375 = vmatpush1.msra.mxu0 %v3590
          %4376 = vmatprep.subr.mxu0 %v3595
          %4377 = vmatpush1.msra.mxu0 %v3594
          %4378 = vmatprep.subr.mxu0 %v3599
          %4379 = vmatpush1.msra.mxu0 %v3598
          %4380 = vmatprep.subr.mxu0 %v3603
          %4381 = vmatpush1.msra.mxu0 %v3602
          %4382 = vmatprep.subr.mxu0 %v3607
          %4383 = vmatpush1.msra.mxu0 %v3606
          %4384 = vmatprep.subr.mxu0 %v3611
          %4385 = vmatpush1.msra.mxu0 %v3610
          %4386 = vmatprep.subr.mxu0 %v3615
          %4387 = vmatpush1.msra.mxu0 %v3614
          %4388 = vmatprep.subr.mxu0 %v3619
          %4389 = vmatpush1.msra.mxu0 %v3618
          %4390 = vmatprep.subr.mxu0 %v3623
          %4391 = vmatpush1.msra.mxu0 %v3622
          %4392 = vmatprep.subr.mxu0 %v3627
          %4393 = vmatpush1.msra.mxu0 %v3626
          %4394 = vmatprep.subr.mxu0 %v3631
          %4395 = vmatpush1.msra.mxu0 %v3630
          %4396 = vmatprep.subr.mxu0 %v3635
          %4397 = vmatpush1.msra.mxu0 %v3634
          %4398 = vmatprep.subr.mxu0 %v3639
          %4399 = vmatpush1.msra.mxu0 %v3638
          %4400 = vmatprep.subr.mxu0 %v3643
          %4401 = vmatpush1.msra.mxu0 %v3642
          %4402 = vmatprep.subr.mxu0 %v3647
          %4403 = vmatpush1.msra.mxu0 %v3646
          %4404 = vmatprep.subr.mxu0 %v3651
          %4405 = vmatpush1.msra.mxu0 %v3650
          %4406 = vmatprep.subr.mxu0 %v3655
          %4407 = vmatpush1.msra.mxu0 %v3654
          %4408 = vmatprep.subr.mxu0 %v3659
          %4409 = vmatpush1.msra.mxu0 %v3658
          %4410 = vmatprep.subr.mxu0 %v3663
          %4411 = vmatpush1.msra.mxu0 %v3662
          %4412 = vmatprep.subr.mxu0 %v3667
          %4413 = vmatpush1.msra.mxu0 %v3666
          %4414 = vmatprep.subr.mxu0 %v3671
          %4415 = vmatpush1.msra.mxu0 %v3670
          %4416 = vmatprep.subr.mxu0 %v3675
          %4417 = vmatpush1.msra.mxu0 %v3674
          %4418 = vmatprep.subr.mxu0 %v3679
          %4419 = vmatpush1.msra.mxu0 %v3678
          %4420 = vmatprep.subr.mxu0 %v3683
          %4421 = vmatpush1.msra.mxu0 %v3682
          %4422 = vmatprep.subr.mxu0 %v3687
          %4423 = vmatpush1.msra.mxu0 %v3686
          %4424 = vmatprep.subr.mxu0 %v3691
          %4425 = vmatpush1.msra.mxu0 %v3690
          %4426 = vmatprep.subr.mxu0 %v3695
          %4427 = vmatpush1.msra.mxu0 %v3694
          %4428 = vmatprep.mubr.f32.mxu0 %v3305
          %4429 = vmatmul.mubr.f32.gmra.mrb[0].mxu0 %v3304
          %v4430 = vpop.f32.mrb[0].mxu0
          %v4431 = vadd.f32 0.0, %v4430
          %v4432 = vpop.f32.mrb[0].mxu0
          %v4433 = vadd.f32 0.0, %v4432
          %4434 = vdwg.mxu0
          %4435 = vmatprep.subr.mxu0 %v3699
          %4436 = vmatpush1.msra.mxu0 %v3698
          %4437 = vmatprep.subr.mxu0 %v3703
          %4438 = vmatpush1.msra.mxu0 %v3702
          %4439 = vmatprep.subr.mxu0 %v3707
          %4440 = vmatpush1.msra.mxu0 %v3706
          %4441 = vmatprep.subr.mxu0 %v3711
          %4442 = vmatpush1.msra.mxu0 %v3710
          %4443 = vmatprep.subr.mxu0 %v3715
          %4444 = vmatpush1.msra.mxu0 %v3714
          %4445 = vmatprep.subr.mxu0 %v3719
          %4446 = vmatpush1.msra.mxu0 %v3718
          %4447 = vmatprep.subr.mxu0 %v3723
          %4448 = vmatpush1.msra.mxu0 %v3722
          %4449 = vmatprep.subr.mxu0 %v3727
          %4450 = vmatpush1.msra.mxu0 %v3726
          %4451 = vmatprep.subr.mxu0 %v3731
          %4452 = vmatpush1.msra.mxu0 %v3730
          %4453 = vmatprep.subr.mxu0 %v3735
          %4454 = vmatpush1.msra.mxu0 %v3734
          %4455 = vmatprep.subr.mxu0 %v3739
          %4456 = vmatpush1.msra.mxu0 %v3738
          %4457 = vmatprep.subr.mxu0 %v3743
          %4458 = vmatpush1.msra.mxu0 %v3742
          %4459 = vmatprep.subr.mxu0 %v3747
          %4460 = vmatpush1.msra.mxu0 %v3746
          %4461 = vmatprep.subr.mxu0 %v3751
          %4462 = vmatpush1.msra.mxu0 %v3750
          %4463 = vmatprep.subr.mxu0 %v3755
          %4464 = vmatpush1.msra.mxu0 %v3754
          %4465 = vmatprep.subr.mxu0 %v3759
          %4466 = vmatpush1.msra.mxu0 %v3758
          %4467 = vmatprep.subr.mxu0 %v3763
          %4468 = vmatpush1.msra.mxu0 %v3762
          %4469 = vmatprep.subr.mxu0 %v3767
          %4470 = vmatpush1.msra.mxu0 %v3766
          %4471 = vmatprep.subr.mxu0 %v3771
          %4472 = vmatpush1.msra.mxu0 %v3770
          %4473 = vmatprep.subr.mxu0 %v3775
          %4474 = vmatpush1.msra.mxu0 %v3774
          %4475 = vmatprep.subr.mxu0 %v3779
          %4476 = vmatpush1.msra.mxu0 %v3778
          %4477 = vmatprep.subr.mxu0 %v3783
          %4478 = vmatpush1.msra.mxu0 %v3782
          %4479 = vmatprep.subr.mxu0 %v3787
          %4480 = vmatpush1.msra.mxu0 %v3786
          %4481 = vmatprep.subr.mxu0 %v3791
          %4482 = vmatpush1.msra.mxu0 %v3790
          %4483 = vmatprep.subr.mxu0 %v3795
          %4484 = vmatpush1.msra.mxu0 %v3794
          %4485 = vmatprep.subr.mxu0 %v3799
          %4486 = vmatpush1.msra.mxu0 %v3798
          %4487 = vmatprep.subr.mxu0 %v3803
          %4488 = vmatpush1.msra.mxu0 %v3802
          %4489 = vmatprep.subr.mxu0 %v3807
          %4490 = vmatpush1.msra.mxu0 %v3806
          %4491 = vmatprep.subr.mxu0 %v3811
          %4492 = vmatpush1.msra.mxu0 %v3810
          %4493 = vmatprep.subr.mxu0 %v3815
          %4494 = vmatpush1.msra.mxu0 %v3814
          %4495 = vmatprep.subr.mxu0 %v3819
          %4496 = vmatpush1.msra.mxu0 %v3818
          %4497 = vmatprep.subr.mxu0 %v3823
          %4498 = vmatpush1.msra.mxu0 %v3822
          %4499 = vmatprep.mubr.f32.mxu0 %v3307
          %4500 = vmatmul.mubr.f32.gmra.mrb[0].mxu0 %v3306
          %v4501 = vpop.f32.mrb[0].mxu0
          %v4502 = vadd.f32 %v4431, %v4501
          %v4503 = vpop.f32.mrb[0].mxu0
          %v4504 = vadd.f32 %v4433, %v4503
          %4505 = vdwg.mxu0
          %4506 = vmatprep.subr.mxu0 %v3827
          %4507 = vmatpush1.msra.mxu0 %v3826
          %4508 = vmatprep.subr.mxu0 %v3831
          %4509 = vmatpush1.msra.mxu0 %v3830
          %4510 = vmatprep.subr.mxu0 %v3835
          %4511 = vmatpush1.msra.mxu0 %v3834
          %4512 = vmatprep.subr.mxu0 %v3839
          %4513 = vmatpush1.msra.mxu0 %v3838
          %4514 = vmatprep.subr.mxu0 %v3843
          %4515 = vmatpush1.msra.mxu0 %v3842
          %4516 = vmatprep.subr.mxu0 %v3847
          %4517 = vmatpush1.msra.mxu0 %v3846
          %4518 = vmatprep.subr.mxu0 %v3851
          %4519 = vmatpush1.msra.mxu0 %v3850
          %4520 = vmatprep.subr.mxu0 %v3855
          %4521 = vmatpush1.msra.mxu0 %v3854
          %4522 = vmatprep.subr.mxu0 %v3859
          %4523 = vmatpush1.msra.mxu0 %v3858
          %4524 = vmatprep.subr.mxu0 %v3863
          %4525 = vmatpush1.msra.mxu0 %v3862
          %4526 = vmatprep.subr.mxu0 %v3867
          %4527 = vmatpush1.msra.mxu0 %v3866
          %4528 = vmatprep.subr.mxu0 %v3871
          %4529 = vmatpush1.msra.mxu0 %v3870
          %4530 = vmatprep.subr.mxu0 %v3875
          %4531 = vmatpush1.msra.mxu0 %v3874
          %4532 = vmatprep.subr.mxu0 %v3879
          %4533 = vmatpush1.msra.mxu0 %v3878
          %4534 = vmatprep.subr.mxu0 %v3883
          %4535 = vmatpush1.msra.mxu0 %v3882
          %4536 = vmatprep.subr.mxu0 %v3887
          %4537 = vmatpush1.msra.mxu0 %v3886
          %4538 = vmatprep.subr.mxu0 %v3891
          %4539 = vmatpush1.msra.mxu0 %v3890
          %4540 = vmatprep.subr.mxu0 %v3895
          %4541 = vmatpush1.msra.mxu0 %v3894
          %4542 = vmatprep.subr.mxu0 %v3899
          %4543 = vmatpush1.msra.mxu0 %v3898
          %4544 = vmatprep.subr.mxu0 %v3903
          %4545 = vmatpush1.msra.mxu0 %v3902
          %4546 = vmatprep.subr.mxu0 %v3907
          %4547 = vmatpush1.msra.mxu0 %v3906
          %4548 = vmatprep.subr.mxu0 %v3911
          %4549 = vmatpush1.msra.mxu0 %v3910
          %4550 = vmatprep.subr.mxu0 %v3915
          %4551 = vmatpush1.msra.mxu0 %v3914
          %4552 = vmatprep.subr.mxu0 %v3919
          %4553 = vmatpush1.msra.mxu0 %v3918
          %4554 = vmatprep.subr.mxu0 %v3923
          %4555 = vmatpush1.msra.mxu0 %v3922
          %4556 = vmatprep.subr.mxu0 %v3927
          %4557 = vmatpush1.msra.mxu0 %v3926
          %4558 = vmatprep.subr.mxu0 %v3931
          %4559 = vmatpush1.msra.mxu0 %v3930
          %4560 = vmatprep.subr.mxu0 %v3935
          %4561 = vmatpush1.msra.mxu0 %v3934
          %4562 = vmatprep.subr.mxu0 %v3939
          %4563 = vmatpush1.msra.mxu0 %v3938
          %4564 = vmatprep.subr.mxu0 %v3943
          %4565 = vmatpush1.msra.mxu0 %v3942
          %4566 = vmatprep.subr.mxu0 %v3947
          %4567 = vmatpush1.msra.mxu0 %v3946
          %4568 = vmatprep.subr.mxu0 %v3951
          %4569 = vmatpush1.msra.mxu0 %v3950
          %4570 = vmatprep.mubr.f32.mxu0 %v3309
          %4571 = vmatmul.mubr.f32.gmra.mrb[0].mxu0 %v3308
          %v4572 = vpop.f32.mrb[0].mxu0
          %v4573 = vadd.f32 %v4502, %v4572
          %v4574 = vpop.f32.mrb[0].mxu0
          %v4575 = vadd.f32 %v4504, %v4574
          %4576 = vdwg.mxu0
          %4577 = vmatprep.subr.mxu0 %v3955
          %4578 = vmatpush1.msra.mxu0 %v3954
          %4579 = vmatprep.subr.mxu0 %v3959
          %4580 = vmatpush1.msra.mxu0 %v3958
          %4581 = vmatprep.subr.mxu0 %v3963
          %4582 = vmatpush1.msra.mxu0 %v3962
          %4583 = vmatprep.subr.mxu0 %v3967
          %4584 = vmatpush1.msra.mxu0 %v3966
          %4585 = vmatprep.subr.mxu0 %v3971
          %4586 = vmatpush1.msra.mxu0 %v3970
          %4587 = vmatprep.subr.mxu0 %v3975
          %4588 = vmatpush1.msra.mxu0 %v3974
          %4589 = vmatprep.subr.mxu0 %v3979
          %4590 = vmatpush1.msra.mxu0 %v3978
          %4591 = vmatprep.subr.mxu0 %v3983
          %4592 = vmatpush1.msra.mxu0 %v3982
          %4593 = vmatprep.subr.mxu0 %v3987
          %4594 = vmatpush1.msra.mxu0 %v3986
          %4595 = vmatprep.subr.mxu0 %v3991
          %4596 = vmatpush1.msra.mxu0 %v3990
          %4597 = vmatprep.subr.mxu0 %v3995
          %4598 = vmatpush1.msra.mxu0 %v3994
          %4599 = vmatprep.subr.mxu0 %v3999
          %4600 = vmatpush1.msra.mxu0 %v3998
          %4601 = vmatprep.subr.mxu0 %v4003
          %4602 = vmatpush1.msra.mxu0 %v4002
          %4603 = vmatprep.subr.mxu0 %v4007
          %4604 = vmatpush1.msra.mxu0 %v4006
          %4605 = vmatprep.subr.mxu0 %v4011
          %4606 = vmatpush1.msra.mxu0 %v4010
          %4607 = vmatprep.subr.mxu0 %v4015
          %4608 = vmatpush1.msra.mxu0 %v4014
          %4609 = vmatprep.subr.mxu0 %v4019
          %4610 = vmatpush1.msra.mxu0 %v4018
          %4611 = vmatprep.subr.mxu0 %v4023
          %4612 = vmatpush1.msra.mxu0 %v4022
          %4613 = vmatprep.subr.mxu0 %v4027
          %4614 = vmatpush1.msra.mxu0 %v4026
          %4615 = vmatprep.subr.mxu0 %v4031
          %4616 = vmatpush1.msra.mxu0 %v4030
          %4617 = vmatprep.subr.mxu0 %v4035
          %4618 = vmatpush1.msra.mxu0 %v4034
          %4619 = vmatprep.subr.mxu0 %v4039
          %4620 = vmatpush1.msra.mxu0 %v4038
          %4621 = vmatprep.subr.mxu0 %v4043
          %4622 = vmatpush1.msra.mxu0 %v4042
          %4623 = vmatprep.subr.mxu0 %v4047
          %4624 = vmatpush1.msra.mxu0 %v4046
          %4625 = vmatprep.subr.mxu0 %v4051
          %4626 = vmatpush1.msra.mxu0 %v4050
          %4627 = vmatprep.subr.mxu0 %v4055
          %4628 = vmatpush1.msra.mxu0 %v4054
          %4629 = vmatprep.subr.mxu0 %v4059
          %4630 = vmatpush1.msra.mxu0 %v4058
          %4631 = vmatprep.subr.mxu0 %v4063
          %4632 = vmatpush1.msra.mxu0 %v4062
          %4633 = vmatprep.subr.mxu0 %v4067
          %4634 = vmatpush1.msra.mxu0 %v4066
          %4635 = vmatprep.subr.mxu0 %v4071
          %4636 = vmatpush1.msra.mxu0 %v4070
          %4637 = vmatprep.subr.mxu0 %v4075
          %4638 = vmatpush1.msra.mxu0 %v4074
          %4639 = vmatprep.subr.mxu0 %v4079
          %4640 = vmatpush1.msra.mxu0 %v4078
          %4641 = vmatprep.mubr.f32.mxu0 %v3311
          %4642 = vmatmul.mubr.f32.gmra.mrb[0].mxu0 %v3310
          %v4643 = vpop.f32.mrb[0].mxu0
          %v4644 = vadd.f32 %v4573, %v4643
          %v4645 = vpop.f32.mrb[0].mxu0
          %v4646 = vadd.f32 %v4575, %v4645
          %4647 = vdwg.mxu0
          %v4648 = vld [vmem:[#allocation11] sm:$0xf]
          %v4649 = vld [vmem:[#allocation12] sm:$0xf]
          %v4650 = vrot.slane %v4360, 4
          %v4651 = vadd.f32 %v4360, %v4650
          %v4652 = vrot.slane %v4651, 2
          %v4653 = vadd.f32 %v4651, %v4652
          %v4654 = vrot.slane %v4653, 1
          %v4655 = vadd.f32 %v4653, %v4654
          %v4656 = vrot.slane %v4362, 4
          %v4657 = vadd.f32 %v4362, %v4656
          %v4658 = vrot.slane %v4657, 2
          %v4659 = vadd.f32 %v4657, %v4658
          %v4660 = vrot.slane %v4659, 1
          %v4661 = vadd.f32 %v4659, %v4660
          %v4662 = vrot.slane %v4644, 4
          %v4663 = vadd.f32 %v4644, %v4662
          %v4664 = vrot.slane %v4663, 2
          %v4665 = vadd.f32 %v4663, %v4664
          %v4666 = vrot.slane %v4665, 1
          %v4667 = vadd.f32 %v4665, %v4666
          %v4668 = vrot.slane %v4646, 4
          %v4669 = vadd.f32 %v4646, %v4668
          %v4670 = vrot.slane %v4669, 2
          %v4671 = vadd.f32 %v4669, %v4670
          %v4672 = vrot.slane %v4671, 1
          %v4673 = vadd.f32 %v4671, %v4672
          %v4674 = vmul.f32 %v4655, %v3239
          %v4675 = vmul.f32 %v4661, %v3239
          %v4676 = vmul.f32 %v4667, %v3239
          %v4677 = vmul.f32 %v4673, %v3239
          %v4678 = vsub.f32 %v4360, %v4674
          %v4679 = vsub.f32 %v4362, %v4675
          %v4680 = vsub.f32 %v4644, %v4676
          %v4681 = vsub.f32 %v4646, %v4677
          %v4682 = vmul.f32 %v4678, %v4678
          %v4683 = vmul.f32 %v4679, %v4679
          %v4684 = vmul.f32 %v4680, %v4680
          %v4685 = vmul.f32 %v4681, %v4681
          %v4686 = vrot.slane %v4682, 4
          %v4687 = vadd.f32 %v4682, %v4686
          %v4688 = vrot.slane %v4687, 2
          %v4689 = vadd.f32 %v4687, %v4688
          %v4690 = vrot.slane %v4689, 1
          %v4691 = vadd.f32 %v4689, %v4690
          %v4692 = vrot.slane %v4683, 4
          %v4693 = vadd.f32 %v4683, %v4692
          %v4694 = vrot.slane %v4693, 2
          %v4695 = vadd.f32 %v4693, %v4694
          %v4696 = vrot.slane %v4695, 1
          %v4697 = vadd.f32 %v4695, %v4696
          %v4698 = vrot.slane %v4684, 4
          %v4699 = vadd.f32 %v4684, %v4698
          %v4700 = vrot.slane %v4699, 2
          %v4701 = vadd.f32 %v4699, %v4700
          %v4702 = vrot.slane %v4701, 1
          %v4703 = vadd.f32 %v4701, %v4702
          %v4704 = vrot.slane %v4685, 4
          %v4705 = vadd.f32 %v4685, %v4704
          %v4706 = vrot.slane %v4705, 2
          %v4707 = vadd.f32 %v4705, %v4706
          %v4708 = vrot.slane %v4707, 1
          %v4709 = vadd.f32 %v4707, %v4708
          %v4710 = vmul.f32 %v4691, %v3239
          %v4711 = vmul.f32 %v4697, %v3239
          %v4712 = vmul.f32 %v4703, %v3239
          %v4713 = vmul.f32 %v4709, %v3239
          %v4714 = vadd.f32 %v4710, 1e-05
          %v4715 = vadd.f32 %v4711, 1e-05
          %v4716 = vadd.f32 %v4712, 1e-05
          %v4717 = vadd.f32 %v4713, 1e-05
          %v4718 = vrsqrt.pop %v4714
          %v4719 = vrsqrt.pop %v4715
          %v4720 = vrsqrt.pop %v4716
          %v4721 = vrsqrt.pop %v4717
          %v4722 = vmul.f32 %v4678, %v4718
          %v4723 = vmul.f32 %v4679, %v4719
          %v4724 = vmul.f32 %v4680, %v4720
          %v4725 = vmul.f32 %v4681, %v4721
          %v4727 = vlaneseq
          %v4728 = vshrl.u32 %v4727, 7
          %v4729 = vsub.s32 0, %v4728
          %v4730 = vrot.slane %v4648, %v4729
          %v4731 = vlaneseq
          %v4732 = vshrl.u32 %v4731, 7
          %v4733 = vsub.s32 1, %v4732
          %v4734 = vrot.slane %v4648, %v4733
          %v4735 = vlaneseq
          %v4736 = vshrl.u32 %v4735, 7
          %v4737 = vsub.s32 2, %v4736
          %v4738 = vrot.slane %v4648, %v4737
          %v4739 = vlaneseq
          %v4740 = vshrl.u32 %v4739, 7
          %v4741 = vsub.s32 3, %v4740
          %v4742 = vrot.slane %v4648, %v4741
          %v4747 = vmul.f32 %v4722, %v4730
          %v4748 = vmul.f32 %v4723, %v4734
          %v4749 = vmul.f32 %v4724, %v4738
          %v4750 = vmul.f32 %v4725, %v4742
          %v4752 = vlaneseq
          %v4753 = vshrl.u32 %v4752, 7
          %v4754 = vsub.s32 0, %v4753
          %v4755 = vrot.slane %v4649, %v4754
          %v4756 = vlaneseq
          %v4757 = vshrl.u32 %v4756, 7
          %v4758 = vsub.s32 1, %v4757
          %v4759 = vrot.slane %v4649, %v4758
          %v4760 = vlaneseq
          %v4761 = vshrl.u32 %v4760, 7
          %v4762 = vsub.s32 2, %v4761
          %v4763 = vrot.slane %v4649, %v4762
          %v4764 = vlaneseq
          %v4765 = vshrl.u32 %v4764, 7
          %v4766 = vsub.s32 3, %v4765
          %v4767 = vrot.slane %v4649, %v4766
          %v4772 = vadd.f32 %v4747, %v4755
          %v4773 = vadd.f32 %v4748, %v4759
          %v4774 = vadd.f32 %v4749, %v4763
          %v4775 = vadd.f32 %v4750, %v4767
          %v4776 = vmax.f32 %v4772, 0.0
          %v4777 = vmax.f32 %v4773, 0.0
          %v4778 = vmax.f32 %v4774, 0.0
          %v4779 = vmax.f32 %v4775, 0.0
          %v4780 = vld [vmem:[#allocation14] sm:$0xff]
          %v4781 = vld [vmem:[#allocation14 + $0x8] sm:$0xff]
          %v4782 = vld [vmem:[#allocation14 + $0x10] sm:$0xff]
          %v4783 = vld [vmem:[#allocation14 + $0x18] sm:$0xff]
          %v4784 = vld [vmem:[#allocation14 + $0x20] sm:$0xff]
          %v4785 = vld [vmem:[#allocation14 + $0x28] sm:$0xff]
          %v4786 = vld [vmem:[#allocation14 + $0x30] sm:$0xff]
          %v4787 = vld [vmem:[#allocation14 + $0x38] sm:$0xff]
          %v4788 = vld [vmem:[#allocation14 + $0x40] sm:$0xff]
          %v4789 = vld [vmem:[#allocation14 + $0x48] sm:$0xff]
          %v4790 = vld [vmem:[#allocation14 + $0x50] sm:$0xff]
          %v4791 = vld [vmem:[#allocation14 + $0x58] sm:$0xff]
          %v4792 = vld [vmem:[#allocation14 + $0x60] sm:$0xff]
          %v4793 = vld [vmem:[#allocation14 + $0x68] sm:$0xff]
          %v4794 = vld [vmem:[#allocation14 + $0x70] sm:$0xff]
          %v4795 = vld [vmem:[#allocation14 + $0x78] sm:$0xff]
          %v4796 = vld [vmem:[#allocation14 + $0x80] sm:$0xff]
          %v4797 = vld [vmem:[#allocation14 + $0x88] sm:$0xff]
          %v4798 = vld [vmem:[#allocation14 + $0x90] sm:$0xff]
          %v4799 = vld [vmem:[#allocation14 + $0x98] sm:$0xff]
          %v4800 = vld [vmem:[#allocation14 + $0xa0] sm:$0xff]
          %v4801 = vld [vmem:[#allocation14 + $0xa8] sm:$0xff]
          %v4802 = vld [vmem:[#allocation14 + $0xb0] sm:$0xff]
          %v4803 = vld [vmem:[#allocation14 + $0xb8] sm:$0xff]
          %v4804 = vld [vmem:[#allocation14 + $0xc0] sm:$0xff]
          %v4805 = vld [vmem:[#allocation14 + $0xc8] sm:$0xff]
          %v4806 = vld [vmem:[#allocation14 + $0xd0] sm:$0xff]
          %v4807 = vld [vmem:[#allocation14 + $0xd8] sm:$0xff]
          %v4808 = vld [vmem:[#allocation14 + $0xe0] sm:$0xff]
          %v4809 = vld [vmem:[#allocation14 + $0xe8] sm:$0xff]
          %v4810 = vld [vmem:[#allocation14 + $0xf0] sm:$0xff]
          %v4811 = vld [vmem:[#allocation14 + $0xf8] sm:$0xff]
          %v4812 = vld [vmem:[#allocation14 + $0x100] sm:$0xff]
          %v4813 = vld [vmem:[#allocation14 + $0x108] sm:$0xff]
          %v4814 = vld [vmem:[#allocation14 + $0x110] sm:$0xff]
          %v4815 = vld [vmem:[#allocation14 + $0x118] sm:$0xff]
          %v4816 = vld [vmem:[#allocation14 + $0x120] sm:$0xff]
          %v4817 = vld [vmem:[#allocation14 + $0x128] sm:$0xff]
          %v4818 = vld [vmem:[#allocation14 + $0x130] sm:$0xff]
          %v4819 = vld [vmem:[#allocation14 + $0x138] sm:$0xff]
          %v4820 = vld [vmem:[#allocation14 + $0x140] sm:$0xff]
          %v4821 = vld [vmem:[#allocation14 + $0x148] sm:$0xff]
          %v4822 = vld [vmem:[#allocation14 + $0x150] sm:$0xff]
          %v4823 = vld [vmem:[#allocation14 + $0x158] sm:$0xff]
          %v4824 = vld [vmem:[#allocation14 + $0x160] sm:$0xff]
          %v4825 = vld [vmem:[#allocation14 + $0x168] sm:$0xff]
          %v4826 = vld [vmem:[#allocation14 + $0x170] sm:$0xff]
          %v4827 = vld [vmem:[#allocation14 + $0x178] sm:$0xff]
          %v4828 = vld [vmem:[#allocation14 + $0x180] sm:$0xff]
          %v4829 = vld [vmem:[#allocation14 + $0x188] sm:$0xff]
          %v4830 = vld [vmem:[#allocation14 + $0x190] sm:$0xff]
          %v4831 = vld [vmem:[#allocation14 + $0x198] sm:$0xff]
          %v4832 = vld [vmem:[#allocation14 + $0x1a0] sm:$0xff]
          %v4833 = vld [vmem:[#allocation14 + $0x1a8] sm:$0xff]
          %v4834 = vld [vmem:[#allocation14 + $0x1b0] sm:$0xff]
          %v4835 = vld [vmem:[#allocation14 + $0x1b8] sm:$0xff]
          %v4836 = vld [vmem:[#allocation14 + $0x1c0] sm:$0xff]
          %v4837 = vld [vmem:[#allocation14 + $0x1c8] sm:$0xff]
          %v4838 = vld [vmem:[#allocation14 + $0x1d0] sm:$0xff]
          %v4839 = vld [vmem:[#allocation14 + $0x1d8] sm:$0xff]
          %v4840 = vld [vmem:[#allocation14 + $0x1e0] sm:$0xff]
          %v4841 = vld [vmem:[#allocation14 + $0x1e8] sm:$0xff]
          %v4842 = vld [vmem:[#allocation14 + $0x1f0] sm:$0xff]
          %v4843 = vld [vmem:[#allocation14 + $0x1f8] sm:$0xff]
          %v4844 = vunpack.c.l.bf16 %v4780
          %v4845 = vunpack.c.h.bf16 %v4780
          %v4846 = vunpack.c.l.bf16 %v4781
          %v4847 = vunpack.c.h.bf16 %v4781
          %v4848 = vunpack.c.l.bf16 %v4782
          %v4849 = vunpack.c.h.bf16 %v4782
          %v4850 = vunpack.c.l.bf16 %v4783
          %v4851 = vunpack.c.h.bf16 %v4783
          %v4852 = vunpack.c.l.bf16 %v4784
          %v4853 = vunpack.c.h.bf16 %v4784
          %v4854 = vunpack.c.l.bf16 %v4785
          %v4855 = vunpack.c.h.bf16 %v4785
          %v4856 = vunpack.c.l.bf16 %v4786
          %v4857 = vunpack.c.h.bf16 %v4786
          %v4858 = vunpack.c.l.bf16 %v4787
          %v4859 = vunpack.c.h.bf16 %v4787
          %v4860 = vunpack.c.l.bf16 %v4788
          %v4861 = vunpack.c.h.bf16 %v4788
          %v4862 = vunpack.c.l.bf16 %v4789
          %v4863 = vunpack.c.h.bf16 %v4789
          %v4864 = vunpack.c.l.bf16 %v4790
          %v4865 = vunpack.c.h.bf16 %v4790
          %v4866 = vunpack.c.l.bf16 %v4791
          %v4867 = vunpack.c.h.bf16 %v4791
          %v4868 = vunpack.c.l.bf16 %v4792
          %v4869 = vunpack.c.h.bf16 %v4792
          %v4870 = vunpack.c.l.bf16 %v4793
          %v4871 = vunpack.c.h.bf16 %v4793
          %v4872 = vunpack.c.l.bf16 %v4794
          %v4873 = vunpack.c.h.bf16 %v4794
          %v4874 = vunpack.c.l.bf16 %v4795
          %v4875 = vunpack.c.h.bf16 %v4795
          %v4876 = vunpack.c.l.bf16 %v4796
          %v4877 = vunpack.c.h.bf16 %v4796
          %v4878 = vunpack.c.l.bf16 %v4797
          %v4879 = vunpack.c.h.bf16 %v4797
          %v4880 = vunpack.c.l.bf16 %v4798
          %v4881 = vunpack.c.h.bf16 %v4798
          %v4882 = vunpack.c.l.bf16 %v4799
          %v4883 = vunpack.c.h.bf16 %v4799
          %v4884 = vunpack.c.l.bf16 %v4800
          %v4885 = vunpack.c.h.bf16 %v4800
          %v4886 = vunpack.c.l.bf16 %v4801
          %v4887 = vunpack.c.h.bf16 %v4801
          %v4888 = vunpack.c.l.bf16 %v4802
          %v4889 = vunpack.c.h.bf16 %v4802
          %v4890 = vunpack.c.l.bf16 %v4803
          %v4891 = vunpack.c.h.bf16 %v4803
          %v4892 = vunpack.c.l.bf16 %v4804
          %v4893 = vunpack.c.h.bf16 %v4804
          %v4894 = vunpack.c.l.bf16 %v4805
          %v4895 = vunpack.c.h.bf16 %v4805
          %v4896 = vunpack.c.l.bf16 %v4806
          %v4897 = vunpack.c.h.bf16 %v4806
          %v4898 = vunpack.c.l.bf16 %v4807
          %v4899 = vunpack.c.h.bf16 %v4807
          %v4900 = vunpack.c.l.bf16 %v4808
          %v4901 = vunpack.c.h.bf16 %v4808
          %v4902 = vunpack.c.l.bf16 %v4809
          %v4903 = vunpack.c.h.bf16 %v4809
          %v4904 = vunpack.c.l.bf16 %v4810
          %v4905 = vunpack.c.h.bf16 %v4810
          %v4906 = vunpack.c.l.bf16 %v4811
          %v4907 = vunpack.c.h.bf16 %v4811
          %v4908 = vunpack.c.l.bf16 %v4812
          %v4909 = vunpack.c.h.bf16 %v4812
          %v4910 = vunpack.c.l.bf16 %v4813
          %v4911 = vunpack.c.h.bf16 %v4813
          %v4912 = vunpack.c.l.bf16 %v4814
          %v4913 = vunpack.c.h.bf16 %v4814
          %v4914 = vunpack.c.l.bf16 %v4815
          %v4915 = vunpack.c.h.bf16 %v4815
          %v4916 = vunpack.c.l.bf16 %v4816
          %v4917 = vunpack.c.h.bf16 %v4816
          %v4918 = vunpack.c.l.bf16 %v4817
          %v4919 = vunpack.c.h.bf16 %v4817
          %v4920 = vunpack.c.l.bf16 %v4818
          %v4921 = vunpack.c.h.bf16 %v4818
          %v4922 = vunpack.c.l.bf16 %v4819
          %v4923 = vunpack.c.h.bf16 %v4819
          %v4924 = vunpack.c.l.bf16 %v4820
          %v4925 = vunpack.c.h.bf16 %v4820
          %v4926 = vunpack.c.l.bf16 %v4821
          %v4927 = vunpack.c.h.bf16 %v4821
          %v4928 = vunpack.c.l.bf16 %v4822
          %v4929 = vunpack.c.h.bf16 %v4822
          %v4930 = vunpack.c.l.bf16 %v4823
          %v4931 = vunpack.c.h.bf16 %v4823
          %v4932 = vunpack.c.l.bf16 %v4824
          %v4933 = vunpack.c.h.bf16 %v4824
          %v4934 = vunpack.c.l.bf16 %v4825
          %v4935 = vunpack.c.h.bf16 %v4825
          %v4936 = vunpack.c.l.bf16 %v4826
          %v4937 = vunpack.c.h.bf16 %v4826
          %v4938 = vunpack.c.l.bf16 %v4827
          %v4939 = vunpack.c.h.bf16 %v4827
          %v4940 = vunpack.c.l.bf16 %v4828
          %v4941 = vunpack.c.h.bf16 %v4828
          %v4942 = vunpack.c.l.bf16 %v4829
          %v4943 = vunpack.c.h.bf16 %v4829
          %v4944 = vunpack.c.l.bf16 %v4830
          %v4945 = vunpack.c.h.bf16 %v4830
          %v4946 = vunpack.c.l.bf16 %v4831
          %v4947 = vunpack.c.h.bf16 %v4831
          %v4948 = vunpack.c.l.bf16 %v4832
          %v4949 = vunpack.c.h.bf16 %v4832
          %v4950 = vunpack.c.l.bf16 %v4833
          %v4951 = vunpack.c.h.bf16 %v4833
          %v4952 = vunpack.c.l.bf16 %v4834
          %v4953 = vunpack.c.h.bf16 %v4834
          %v4954 = vunpack.c.l.bf16 %v4835
          %v4955 = vunpack.c.h.bf16 %v4835
          %v4956 = vunpack.c.l.bf16 %v4836
          %v4957 = vunpack.c.h.bf16 %v4836
          %v4958 = vunpack.c.l.bf16 %v4837
          %v4959 = vunpack.c.h.bf16 %v4837
          %v4960 = vunpack.c.l.bf16 %v4838
          %v4961 = vunpack.c.h.bf16 %v4838
          %v4962 = vunpack.c.l.bf16 %v4839
          %v4963 = vunpack.c.h.bf16 %v4839
          %v4964 = vunpack.c.l.bf16 %v4840
          %v4965 = vunpack.c.h.bf16 %v4840
          %v4966 = vunpack.c.l.bf16 %v4841
          %v4967 = vunpack.c.h.bf16 %v4841
          %v4968 = vunpack.c.l.bf16 %v4842
          %v4969 = vunpack.c.h.bf16 %v4842
          %v4970 = vunpack.c.l.bf16 %v4843
          %v4971 = vunpack.c.h.bf16 %v4843
          %4972 = vmatprep.subr.mxu0 %v4845
          %4973 = vmatpush1.msra.mxu0 %v4844
          %4974 = vmatprep.subr.mxu0 %v4847
          %4975 = vmatpush1.msra.mxu0 %v4846
          %4976 = vmatprep.subr.mxu0 %v4849
          %4977 = vmatpush1.msra.mxu0 %v4848
          %4978 = vmatprep.subr.mxu0 %v4851
          %4979 = vmatpush1.msra.mxu0 %v4850
          %4980 = vmatprep.subr.mxu0 %v4853
          %4981 = vmatpush1.msra.mxu0 %v4852
          %4982 = vmatprep.subr.mxu0 %v4855
          %4983 = vmatpush1.msra.mxu0 %v4854
          %4984 = vmatprep.subr.mxu0 %v4857
          %4985 = vmatpush1.msra.mxu0 %v4856
          %4986 = vmatprep.subr.mxu0 %v4859
          %4987 = vmatpush1.msra.mxu0 %v4858
          %4988 = vmatprep.subr.mxu0 %v4861
          %4989 = vmatpush1.msra.mxu0 %v4860
          %4990 = vmatprep.subr.mxu0 %v4863
          %4991 = vmatpush1.msra.mxu0 %v4862
          %4992 = vmatprep.subr.mxu0 %v4865
          %4993 = vmatpush1.msra.mxu0 %v4864
          %4994 = vmatprep.subr.mxu0 %v4867
          %4995 = vmatpush1.msra.mxu0 %v4866
          %4996 = vmatprep.subr.mxu0 %v4869
          %4997 = vmatpush1.msra.mxu0 %v4868
          %4998 = vmatprep.subr.mxu0 %v4871
          %4999 = vmatpush1.msra.mxu0 %v4870
          %5000 = vmatprep.subr.mxu0 %v4873
          %5001 = vmatpush1.msra.mxu0 %v4872
          %5002 = vmatprep.subr.mxu0 %v4875
          %5003 = vmatpush1.msra.mxu0 %v4874
          %5004 = vmatprep.subr.mxu0 %v4877
          %5005 = vmatpush1.msra.mxu0 %v4876
          %5006 = vmatprep.subr.mxu0 %v4879
          %5007 = vmatpush1.msra.mxu0 %v4878
          %5008 = vmatprep.subr.mxu0 %v4881
          %5009 = vmatpush1.msra.mxu0 %v4880
          %5010 = vmatprep.subr.mxu0 %v4883
          %5011 = vmatpush1.msra.mxu0 %v4882
          %5012 = vmatprep.subr.mxu0 %v4885
          %5013 = vmatpush1.msra.mxu0 %v4884
          %5014 = vmatprep.subr.mxu0 %v4887
          %5015 = vmatpush1.msra.mxu0 %v4886
          %5016 = vmatprep.subr.mxu0 %v4889
          %5017 = vmatpush1.msra.mxu0 %v4888
          %5018 = vmatprep.subr.mxu0 %v4891
          %5019 = vmatpush1.msra.mxu0 %v4890
          %5020 = vmatprep.subr.mxu0 %v4893
          %5021 = vmatpush1.msra.mxu0 %v4892
          %5022 = vmatprep.subr.mxu0 %v4895
          %5023 = vmatpush1.msra.mxu0 %v4894
          %5024 = vmatprep.subr.mxu0 %v4897
          %5025 = vmatpush1.msra.mxu0 %v4896
          %5026 = vmatprep.subr.mxu0 %v4899
          %5027 = vmatpush1.msra.mxu0 %v4898
          %5028 = vmatprep.subr.mxu0 %v4901
          %5029 = vmatpush1.msra.mxu0 %v4900
          %5030 = vmatprep.subr.mxu0 %v4903
          %5031 = vmatpush1.msra.mxu0 %v4902
          %5032 = vmatprep.subr.mxu0 %v4905
          %5033 = vmatpush1.msra.mxu0 %v4904
          %5034 = vmatprep.subr.mxu0 %v4907
          %5035 = vmatpush1.msra.mxu0 %v4906
          %5036 = vmatprep.mubr.f32.mxu0 %v4777
          %5037 = vmatmul.mubr.f32.gmra.mrb[0].mxu0 %v4776
          %v5038 = vpop.f32.mrb[0].mxu0
          %v5039 = vadd.f32 0.0, %v5038
          %v5040 = vpop.f32.mrb[0].mxu0
          %v5041 = vadd.f32 0.0, %v5040
          %5042 = vdwg.mxu0
          %5043 = vmatprep.subr.mxu0 %v4909
          %5044 = vmatpush1.msra.mxu0 %v4908
          %5045 = vmatprep.subr.mxu0 %v4911
          %5046 = vmatpush1.msra.mxu0 %v4910
          %5047 = vmatprep.subr.mxu0 %v4913
          %5048 = vmatpush1.msra.mxu0 %v4912
          %5049 = vmatprep.subr.mxu0 %v4915
          %5050 = vmatpush1.msra.mxu0 %v4914
          %5051 = vmatprep.subr.mxu0 %v4917
          %5052 = vmatpush1.msra.mxu0 %v4916
          %5053 = vmatprep.subr.mxu0 %v4919
          %5054 = vmatpush1.msra.mxu0 %v4918
          %5055 = vmatprep.subr.mxu0 %v4921
          %5056 = vmatpush1.msra.mxu0 %v4920
          %5057 = vmatprep.subr.mxu0 %v4923
          %5058 = vmatpush1.msra.mxu0 %v4922
          %5059 = vmatprep.subr.mxu0 %v4925
          %5060 = vmatpush1.msra.mxu0 %v4924
          %5061 = vmatprep.subr.mxu0 %v4927
          %5062 = vmatpush1.msra.mxu0 %v4926
          %5063 = vmatprep.subr.mxu0 %v4929
          %5064 = vmatpush1.msra.mxu0 %v4928
          %5065 = vmatprep.subr.mxu0 %v4931
          %5066 = vmatpush1.msra.mxu0 %v4930
          %5067 = vmatprep.subr.mxu0 %v4933
          %5068 = vmatpush1.msra.mxu0 %v4932
          %5069 = vmatprep.subr.mxu0 %v4935
          %5070 = vmatpush1.msra.mxu0 %v4934
          %5071 = vmatprep.subr.mxu0 %v4937
          %5072 = vmatpush1.msra.mxu0 %v4936
          %5073 = vmatprep.subr.mxu0 %v4939
          %5074 = vmatpush1.msra.mxu0 %v4938
          %5075 = vmatprep.subr.mxu0 %v4941
          %5076 = vmatpush1.msra.mxu0 %v4940
          %5077 = vmatprep.subr.mxu0 %v4943
          %5078 = vmatpush1.msra.mxu0 %v4942
          %5079 = vmatprep.subr.mxu0 %v4945
          %5080 = vmatpush1.msra.mxu0 %v4944
          %5081 = vmatprep.subr.mxu0 %v4947
          %5082 = vmatpush1.msra.mxu0 %v4946
          %5083 = vmatprep.subr.mxu0 %v4949
          %5084 = vmatpush1.msra.mxu0 %v4948
          %5085 = vmatprep.subr.mxu0 %v4951
          %5086 = vmatpush1.msra.mxu0 %v4950
          %5087 = vmatprep.subr.mxu0 %v4953
          %5088 = vmatpush1.msra.mxu0 %v4952
          %5089 = vmatprep.subr.mxu0 %v4955
          %5090 = vmatpush1.msra.mxu0 %v4954
          %5091 = vmatprep.subr.mxu0 %v4957
          %5092 = vmatpush1.msra.mxu0 %v4956
          %5093 = vmatprep.subr.mxu0 %v4959
          %5094 = vmatpush1.msra.mxu0 %v4958
          %5095 = vmatprep.subr.mxu0 %v4961
          %5096 = vmatpush1.msra.mxu0 %v4960
          %5097 = vmatprep.subr.mxu0 %v4963
          %5098 = vmatpush1.msra.mxu0 %v4962
          %5099 = vmatprep.subr.mxu0 %v4965
          %5100 = vmatpush1.msra.mxu0 %v4964
          %5101 = vmatprep.subr.mxu0 %v4967
          %5102 = vmatpush1.msra.mxu0 %v4966
          %5103 = vmatprep.subr.mxu0 %v4969
          %5104 = vmatpush1.msra.mxu0 %v4968
          %5105 = vmatprep.subr.mxu0 %v4971
          %5106 = vmatpush1.msra.mxu0 %v4970
          %5107 = vmatprep.mubr.f32.mxu0 %v4779
          %5108 = vmatmul.mubr.f32.gmra.mrb[0].mxu0 %v4778
          %v5109 = vpop.f32.mrb[0].mxu0
          %v5110 = vadd.f32 %v5039, %v5109
          %v5111 = vpop.f32.mrb[0].mxu0
          %v5112 = vadd.f32 %v5041, %v5111
          %5113 = vdwg.mxu0
          %v5114 = vld [vmem:[#allocation15] sm:$0x3]
          %v5115 = vld [vmem:[#allocation17] sm:$0x3]
          %v5116 = vrot.slane %v5110, 4
          %v5117 = vadd.f32 %v5110, %v5116
          %v5118 = vrot.slane %v5117, 2
          %v5119 = vadd.f32 %v5117, %v5118
          %v5120 = vrot.slane %v5119, 1
          %v5121 = vadd.f32 %v5119, %v5120
          %v5122 = vrot.slane %v5112, 4
          %v5123 = vadd.f32 %v5112, %v5122
          %v5124 = vrot.slane %v5123, 2
          %v5125 = vadd.f32 %v5123, %v5124
          %v5126 = vrot.slane %v5125, 1
          %v5127 = vadd.f32 %v5125, %v5126
          %v5128 = vmul.f32 %v5121, %v3239
          %v5129 = vmul.f32 %v5127, %v3239
          %v5130 = vsub.f32 %v5110, %v5128
          %v5131 = vsub.f32 %v5112, %v5129
          %v5132 = vmul.f32 %v5130, %v5130
          %v5133 = vmul.f32 %v5131, %v5131
          %v5134 = vrot.slane %v5132, 4
          %v5135 = vadd.f32 %v5132, %v5134
          %v5136 = vrot.slane %v5135, 2
          %v5137 = vadd.f32 %v5135, %v5136
          %v5138 = vrot.slane %v5137, 1
          %v5139 = vadd.f32 %v5137, %v5138
          %v5140 = vrot.slane %v5133, 4
          %v5141 = vadd.f32 %v5133, %v5140
          %v5142 = vrot.slane %v5141, 2
          %v5143 = vadd.f32 %v5141, %v5142
          %v5144 = vrot.slane %v5143, 1
          %v5145 = vadd.f32 %v5143, %v5144
          %v5146 = vmul.f32 %v5139, %v3239
          %v5147 = vmul.f32 %v5145, %v3239
          %v5148 = vadd.f32 %v5146, 1e-05
          %v5149 = vadd.f32 %v5147, 1e-05
          %v5150 = vrsqrt.pop %v5148
          %v5151 = vrsqrt.pop %v5149
          %v5152 = vmul.f32 %v5130, %v5150
          %v5153 = vmul.f32 %v5131, %v5151
          %v5155 = vlaneseq
          %v5156 = vshrl.u32 %v5155, 7
          %v5157 = vsub.s32 0, %v5156
          %v5158 = vrot.slane %v5114, %v5157
          %v5159 = vlaneseq
          %v5160 = vshrl.u32 %v5159, 7
          %v5161 = vsub.s32 1, %v5160
          %v5162 = vrot.slane %v5114, %v5161
          %v5165 = vmul.f32 %v5152, %v5158
          %v5166 = vmul.f32 %v5153, %v5162
          %v5168 = vlaneseq
          %v5169 = vshrl.u32 %v5168, 7
          %v5170 = vsub.s32 0, %v5169
          %v5171 = vrot.slane %v5115, %v5170
          %v5172 = vlaneseq
          %v5173 = vshrl.u32 %v5172, 7
          %v5174 = vsub.s32 1, %v5173
          %v5175 = vrot.slane %v5115, %v5174
          %v5178 = vadd.f32 %v5165, %v5171
          %v5179 = vadd.f32 %v5166, %v5175
          %v5180 = vmax.f32 %v5178, 0.0
          %v5181 = vmax.f32 %v5179, 0.0
          %5182 = vst [vmem:[#allocation18] sm:$0xff] %v5180
          %5183 = vst [vmem:[#allocation18 + $0x8] sm:$0xff] %v5181
        $region100: #{encoder_pallas.1} parent=59 // pred_fallthru
          _
        // Predicated region
        $region101: #{encoder_pallas.1} parent=59 // pred_check
          %p5184 = pneg %p269
        $region102: #{encoder_pallas.1} parent=59 // pred_check_branch
          %5186 = sbr.rel (%p5184) target = $region104
        $region103: #{encoder_pallas.1} parent=59 // pred_region
          %s5188 = ssub.s32 256, 256
          %5189 = vsyncadd [#allocation5], %s5188
          %s5191 = sshll.u32 [#allocation18], 4
          %s5192 = int_to_ptr.vmem [resolvable:$true] %s5191
          %5194 = dma.vmem_to_hbm [thread:$0]  %s5192, 256, %s10, [#allocation5]
        $region104: #{encoder_pallas.1} parent=59 // pred_fallthru
          _
        // Predicated region
        $region105: #{encoder_pallas.1} parent=59 // pred_check
          %p5195 = pneg %p269
        $region106: #{encoder_pallas.1} parent=59 // pred_check_branch
          %5197 = sbr.rel (%p5195) target = $region108
        $region107: #{encoder_pallas.1} parent=59 // pred_region
          %5198 = dma.done [#allocation5], 256
        $region108: #{encoder_pallas.1} parent=59 // pred_fallthru
          _
      $region60: #{encoder_pallas.1} parent=5 // pred_fallthru
        _
      %p5199 = scmp.le.s32.totalorder 2, %s26
      // Predicated region
      $region109: #{encoder_pallas.1} parent=5 // pred_check
        %p5200 = pneg %p5199
      $region110: #{encoder_pallas.1} parent=5 // pred_check_branch
        %5202 = sbr.rel (%p5200) target = $region112
      $region111: #{encoder_pallas.1} parent=5 // pred_region
        %s5203 = ssub.s32 %s26, 2
      $region112: #{encoder_pallas.1} parent=5 // pred_fallthru
        _
    $region6: #{encoder_pallas.1} parent=1 // loop_footer
      %s30 = sadd.s32 1, %s26
    $region7: #{encoder_pallas.1} parent=1 // loop_footer_branch
      %25 = sbr.rel target = $region3
    $region8: #{encoder_pallas.1} parent=1 // loop_exit
      _
    %5204 = vsyncpa [#allocation4], 1
    %s5205 = scalar_lea.sflag [#allocation4], 1
    %5206 = vsyncpa %s5205, 1
    %5207 = vsyncpa [#allocation7], 1
    %s5208 = scalar_lea.sflag [#allocation7], 1
    %5209 = vsyncpa %s5208, 1
    %5210 = vsyncpa [#allocation10], 1
    %5211 = vsyncpa [#allocation13], 1
    %5212 = vsyncpa [#allocation16], 1
    %5213 = vsyncpa [#allocation5], 1
    %s5214 = scalar_lea.sflag [#allocation5], 1
    %5215 = vsyncpa %s5214, 1

</llo_original>
